<compile_context>
chip_gen: v7x
topology: tpu7x:2x2x1
jax: 0.10.0
libtpu: 0.0.40
codegen_flags: <defaults>
</compile_context>

<pallas_src>
import functools

import jax
import jax.numpy as jnp
from jax.experimental import pallas as pl
from jax.experimental.pallas import tpu as pltpu


# ----------------------------- fused Pallas kernel ---------------------------

def _bert_fused_kernel(emb_ref, mask_ref, eln_g_ref, eln_b_ref,
                       qkv_w_ref, qkv_b_ref, ao_w_ref, ao_b_ref,
                       aln_g_ref, aln_b_ref,
                       fi_w_ref, fi_b_ref, fo_w_ref, fo_b_ref,
                       fln_g_ref, fln_b_ref,
                       asp_w_ref, asp_b_ref,
                       o_ref, ctx_ref, *,
                       num_layers, batch, seq, num_heads, head_dim, eps):
    H = num_heads * head_dim
    scale = 1.0 / float(head_dim) ** 0.5

    def layer_norm(x, g, b):
        mu = jnp.mean(x, axis=-1, keepdims=True)
        var = jnp.mean((x - mu) ** 2, axis=-1, keepdims=True)
        return (x - mu) * jax.lax.rsqrt(var + eps) * g + b

    # embeddings LayerNorm (dropout layers are identity in eval mode)
    x = layer_norm(emb_ref[...].astype(jnp.float32), eln_g_ref[...], eln_b_ref[...])

    for l in range(num_layers):                      # static unroll (L = 2)
        # ---- fused QKV projection: one [H, 3H] matmul ----
        qkv = jnp.dot(x, qkv_w_ref[l], preferred_element_type=jnp.float32) + qkv_b_ref[l]
        q = qkv[:, 0:H]
        k = qkv[:, H:2 * H]
        v = qkv[:, 2 * H:3 * H]

        # ---- self-attention: all batches / heads handled inside this kernel ----
        for b in range(batch):
            bias = mask_ref[b:b + 1, :]                       # [1, S] additive mask
            r0 = b * seq
            for h in range(num_heads):
                c0 = h * head_dim
                qh = q[r0:r0 + seq, c0:c0 + head_dim]         # [S, dh]
                kh = k[r0:r0 + seq, c0:c0 + head_dim]
                vh = v[r0:r0 + seq, c0:c0 + head_dim]
                s = jax.lax.dot_general(qh, kh, (((1,), (1,)), ((), ())),
                                        preferred_element_type=jnp.float32) * scale
                s = s + bias
                s = s - jnp.max(s, axis=-1, keepdims=True)
                p = jnp.exp(s)
                p = p * pl.reciprocal(jnp.sum(p, axis=-1, keepdims=True), approx=True)
                ctx_ref[r0:r0 + seq, c0:c0 + head_dim] = jnp.dot(
                    p, vh, preferred_element_type=jnp.float32)

        # ---- attention out-projection + residual + LayerNorm (fused epilogue) ----
        attn = jnp.dot(ctx_ref[...], ao_w_ref[l],
                       preferred_element_type=jnp.float32) + ao_b_ref[l]
        x = layer_norm(attn + x, aln_g_ref[l], aln_b_ref[l])

        # ---- feed-forward: GELU + residual + LayerNorm fused in the same kernel ----
        ff = jnp.dot(x, fi_w_ref[l], preferred_element_type=jnp.float32) + fi_b_ref[l]
        # TODO(synk): BERT uses exact (erf) GELU; tanh approximation used for TPU lowering safety.
        ff = jax.nn.gelu(ff, approximate=True)
        ff = jnp.dot(ff, fo_w_ref[l], preferred_element_type=jnp.float32) + fo_b_ref[l]
        x = layer_norm(ff + x, fln_g_ref[l], fln_b_ref[l])

    # ---- aspect head: lane-dense (zero-padded to 128 lanes) output store ----
    o_ref[...] = (jnp.dot(x, asp_w_ref[...], preferred_element_type=jnp.float32)
                  + asp_b_ref[...]).astype(o_ref.dtype)


def _full_spec(shape):
    nd = len(shape)
    return pl.BlockSpec(shape, lambda i: (0,) * nd)


# ----------------------------- model definition ------------------------------

CFG = dict(
    hidden_size=32,
    num_attention_heads=2,
    num_hidden_layers=2,
    intermediate_size=64,
    vocab_size=100,
    max_position_embeddings=64,
    type_vocab_size=2,
    layer_norm_eps=1e-12,
)
OUT_ASPECT = 5


def init_params(key, cfg, out_aspect):
    H, I = cfg["hidden_size"], cfg["intermediate_size"]
    keys = list(jax.random.split(key, 8 + 16 * cfg["num_hidden_layers"]))
    kit = iter(keys)

    def dense(i, o):
        return {"w": 0.02 * jax.random.normal(next(kit), (i, o), jnp.float32),
                "b": jnp.zeros((o,), jnp.float32)}

    def ln():
        return {"g": jnp.ones((H,), jnp.float32), "b": jnp.zeros((H,), jnp.float32)}

    params = {
        "word_emb": 0.02 * jax.random.normal(next(kit), (cfg["vocab_size"], H), jnp.float32),
        "pos_emb": 0.02 * jax.random.normal(next(kit), (cfg["max_position_embeddings"], H), jnp.float32),
        "type_emb": 0.02 * jax.random.normal(next(kit), (cfg["type_vocab_size"], H), jnp.float32),
        "emb_ln": ln(),
        "layers": [],
        "aspect_out": dense(H, out_aspect),
    }
    for _ in range(cfg["num_hidden_layers"]):
        params["layers"].append({
            "q": dense(H, H), "k": dense(H, H), "v": dense(H, H),
            "attn_out": dense(H, H), "attn_ln": ln(),
            "ffn_in": dense(H, I), "ffn_out": dense(I, H), "ffn_ln": ln(),
        })
    return params


def model_bert_forward(params, attention_mask, input_ids, token_type_ids, cfg=CFG):
    B, S = input_ids.shape
    H = cfg["hidden_size"]
    nh = cfg["num_attention_heads"]
    dh = H // nh
    L = cfg["num_hidden_layers"]
    eps = cfg["layer_norm_eps"]
    M = B * S

    # ---- embeddings (gather is XLA glue; everything else is one Pallas kernel) ----
    pos_ids = jnp.broadcast_to(jnp.arange(S, dtype=jnp.int32)[None, :], (B, S))
    emb = (jnp.take(params["word_emb"], input_ids, axis=0)
           + jnp.take(params["pos_emb"], pos_ids, axis=0)
           + jnp.take(params["type_emb"], token_type_ids, axis=0)).reshape(M, H)

    # additive attention-mask bias shared by all layers/heads: [B, S]
    mask_bias = (1.0 - attention_mask.astype(jnp.float32)) * -10000.0

    # ---- stack per-layer weights so the kernel indexes a leading layer axis ----
    def stack(fn):
        return jnp.stack([fn(lp) for lp in params["layers"]])

    qkv_w = stack(lambda lp: jnp.concatenate(
        [lp["q"]["w"], lp["k"]["w"], lp["v"]["w"]], axis=1))                 # [L, H, 3H]
    qkv_b = stack(lambda lp: jnp.concatenate(
        [lp["q"]["b"], lp["k"]["b"], lp["v"]["b"]])[None, :])                # [L, 1, 3H]
    ao_w = stack(lambda lp: lp["attn_out"]["w"])
    ao_b = stack(lambda lp: lp["attn_out"]["b"][None, :])
    aln_g = stack(lambda lp: lp["attn_ln"]["g"][None, :])
    aln_b = stack(lambda lp: lp["attn_ln"]["b"][None, :])
    fi_w = stack(lambda lp: lp["ffn_in"]["w"])
    fi_b = stack(lambda lp: lp["ffn_in"]["b"][None, :])
    fo_w = stack(lambda lp: lp["ffn_out"]["w"])
    fo_b = stack(lambda lp: lp["ffn_out"]["b"][None, :])
    fln_g = stack(lambda lp: lp["ffn_ln"]["g"][None, :])
    fln_b = stack(lambda lp: lp["ffn_ln"]["b"][None, :])

    # lane-dense padded aspect head (avoid 5-wide masked partial stores)
    n_out = params["aspect_out"]["w"].shape[1]
    NP = ((n_out + 127) // 128) * 128
    asp_w = jnp.zeros((H, NP), jnp.float32).at[:, :n_out].set(params["aspect_out"]["w"])
    asp_b = jnp.zeros((1, NP), jnp.float32).at[:, :n_out].set(params["aspect_out"]["b"])

    inputs = [emb, mask_bias,
              params["emb_ln"]["g"][None, :], params["emb_ln"]["b"][None, :],
              qkv_w, qkv_b, ao_w, ao_b, aln_g, aln_b,
              fi_w, fi_b, fo_w, fo_b, fln_g, fln_b,
              asp_w, asp_b]

    kernel = functools.partial(_bert_fused_kernel, num_layers=L, batch=B, seq=S,
                               num_heads=nh, head_dim=dh, eps=eps)

    out = pl.pallas_call(
        kernel,
        out_shape=jax.ShapeDtypeStruct((M, NP), jnp.float32),
        grid=(1,),
        in_specs=[_full_spec(a.shape) for a in inputs],
        out_specs=_full_spec((M, NP)),
        scratch_shapes=[pltpu.VMEM((M, H), jnp.float32)],   # attention context buffer
        compiler_params=pltpu.CompilerParams(dimension_semantics=("arbitrary",)),
    )(*inputs)

    # slice away lane padding, then match PyTorch's permute(0, 2, 1)
    return out[:, :n_out].reshape(B, S, n_out).transpose(0, 2, 1)   # [B, out_aspect, S]


# ----------------------------------- main ------------------------------------

if __name__ == "__main__":
    B, S = 2, 8
    key = jax.random.PRNGKey(0)
    k_param, k_ids, k_type = jax.random.split(key, 3)

    params = init_params(k_param, CFG, OUT_ASPECT)

    input_ids = jax.random.randint(k_ids, (B, S), 0, CFG["vocab_size"], dtype=jnp.int32)
    token_type_ids = jax.random.randint(k_type, (B, S), 0, CFG["type_vocab_size"], dtype=jnp.int32)
    attention_mask = jnp.ones((B, S), jnp.float32).at[1, -2:].set(0.0)   # batch 1 has 2 pad tokens

    forward = jax.jit(model_bert_forward)
    out = jax.block_until_ready(forward(params, attention_mask, input_ids, token_type_ids))

    assert out.shape == (B, OUT_ASPECT, S), out.shape
    assert bool(jnp.all(jnp.isfinite(out)))
    print("KERNEL_OK")
</pallas_src>

<mosaic_0001>
module attributes {stable_mosaic.version = 11 : i64} {
  func.func @_bert_fused_kernel(%arg0: i32, %arg1: memref<16x32xf32, #tpu.memory_space<vmem>>, %arg2: memref<2x8xf32, #tpu.memory_space<vmem>>, %arg3: memref<1x32xf32, #tpu.memory_space<vmem>>, %arg4: memref<1x32xf32, #tpu.memory_space<vmem>>, %arg5: memref<2x32x96xf32, #tpu.memory_space<vmem>>, %arg6: memref<2x1x96xf32, #tpu.memory_space<vmem>>, %arg7: memref<2x32x32xf32, #tpu.memory_space<vmem>>, %arg8: memref<2x1x32xf32, #tpu.memory_space<vmem>>, %arg9: memref<2x1x32xf32, #tpu.memory_space<vmem>>, %arg10: memref<2x1x32xf32, #tpu.memory_space<vmem>>, %arg11: memref<2x32x64xf32, #tpu.memory_space<vmem>>, %arg12: memref<2x1x64xf32, #tpu.memory_space<vmem>>, %arg13: memref<2x64x32xf32, #tpu.memory_space<vmem>>, %arg14: memref<2x1x32xf32, #tpu.memory_space<vmem>>, %arg15: memref<2x1x32xf32, #tpu.memory_space<vmem>>, %arg16: memref<2x1x32xf32, #tpu.memory_space<vmem>>, %arg17: memref<32x128xf32, #tpu.memory_space<vmem>>, %arg18: memref<1x128xf32, #tpu.memory_space<vmem>>, %arg19: memref<16x128xf32, #tpu.memory_space<vmem>>, %arg20: memref<16x32xf32, #tpu.memory_space<vmem>>) attributes {dimension_semantics = [#tpu.dimension_semantics<arbitrary>], iteration_bounds = array<i64: 1>, scalar_prefetch = 0 : i64, scratch_operands = 1 : i64, tpu.core_type = #tpu.core_type<tc>, window_params = [{pipeline_mode = #tpu.pipeline_mode<synchronous>, transform_indices = @transform_0, window_bounds = array<i64: 16, 32>}, {pipeline_mode = #tpu.pipeline_mode<synchronous>, transform_indices = @transform_1, window_bounds = array<i64: 2, 8>}, {pipeline_mode = #tpu.pipeline_mode<synchronous>, transform_indices = @transform_2, window_bounds = array<i64: 1, 32>}, {pipeline_mode = #tpu.pipeline_mode<synchronous>, transform_indices = @transform_3, window_bounds = array<i64: 1, 32>}, {pipeline_mode = #tpu.pipeline_mode<synchronous>, transform_indices = @transform_4, window_bounds = array<i64: 2, 32, 96>}, {pipeline_mode = #tpu.pipeline_mode<synchronous>, transform_indices = @transform_5, window_bounds = array<i64: 2, 1, 96>}, {pipeline_mode = #tpu.pipeline_mode<synchronous>, transform_indices = @transform_6, window_bounds = array<i64: 2, 32, 32>}, {pipeline_mode = #tpu.pipeline_mode<synchronous>, transform_indices = @transform_7, window_bounds = array<i64: 2, 1, 32>}, {pipeline_mode = #tpu.pipeline_mode<synchronous>, transform_indices = @transform_8, window_bounds = array<i64: 2, 1, 32>}, {pipeline_mode = #tpu.pipeline_mode<synchronous>, transform_indices = @transform_9, window_bounds = array<i64: 2, 1, 32>}, {pipeline_mode = #tpu.pipeline_mode<synchronous>, transform_indices = @transform_10, window_bounds = array<i64: 2, 32, 64>}, {pipeline_mode = #tpu.pipeline_mode<synchronous>, transform_indices = @transform_11, window_bounds = array<i64: 2, 1, 64>}, {pipeline_mode = #tpu.pipeline_mode<synchronous>, transform_indices = @transform_12, window_bounds = array<i64: 2, 64, 32>}, {pipeline_mode = #tpu.pipeline_mode<synchronous>, transform_indices = @transform_13, window_bounds = array<i64: 2, 1, 32>}, {pipeline_mode = #tpu.pipeline_mode<synchronous>, transform_indices = @transform_14, window_bounds = array<i64: 2, 1, 32>}, {pipeline_mode = #tpu.pipeline_mode<synchronous>, transform_indices = @transform_15, window_bounds = array<i64: 2, 1, 32>}, {pipeline_mode = #tpu.pipeline_mode<synchronous>, transform_indices = @transform_16, window_bounds = array<i64: 32, 128>}, {pipeline_mode = #tpu.pipeline_mode<synchronous>, transform_indices = @transform_17, window_bounds = array<i64: 1, 128>}, {pipeline_mode = #tpu.pipeline_mode<synchronous>, transform_indices = @transform_18, window_bounds = array<i64: 16, 128>}]} {
    %c0 = arith.constant 0 : index
    %c0_0 = arith.constant 0 : index
    %0 = vector.load %arg1[%c0, %c0_0] : memref<16x32xf32, #tpu.memory_space<vmem>>, vector<16x32xf32>
    %c0_1 = arith.constant 0 : index
    %c0_2 = arith.constant 0 : index
    %1 = vector.load %arg3[%c0_1, %c0_2] : memref<1x32xf32, #tpu.memory_space<vmem>>, vector<1x32xf32>
    %c0_3 = arith.constant 0 : index
    %c0_4 = arith.constant 0 : index
    %2 = vector.load %arg4[%c0_3, %c0_4] : memref<1x32xf32, #tpu.memory_space<vmem>>, vector<1x32xf32>
    %cst = arith.constant dense<0.000000e+00> : vector<16xf32>
    %3 = vector.multi_reduction <add>, %0, %cst [1] : vector<16x32xf32> to vector<16xf32>
    %4 = vector.shape_cast %3 : vector<16xf32> to vector<16x1xf32>
    %cst_5 = arith.constant 3.200000e+01 : f32
    %5 = vector.broadcast %cst_5 : f32 to vector<16x1xf32>
    %6 = arith.divf %4, %5 : vector<16x1xf32>
    %7 = vector.broadcast %6 : vector<16x1xf32> to vector<16x32xf32>
    %8 = arith.subf %0, %7 : vector<16x32xf32>
    %9 = arith.mulf %8, %8 : vector<16x32xf32>
    %cst_6 = arith.constant dense<0.000000e+00> : vector<16xf32>
    %10 = vector.multi_reduction <add>, %9, %cst_6 [1] : vector<16x32xf32> to vector<16xf32>
    %11 = vector.shape_cast %10 : vector<16xf32> to vector<16x1xf32>
    %cst_7 = arith.constant 3.200000e+01 : f32
    %12 = vector.broadcast %cst_7 : f32 to vector<16x1xf32>
    %13 = arith.divf %11, %12 : vector<16x1xf32>
    %14 = vector.broadcast %6 : vector<16x1xf32> to vector<16x32xf32>
    %15 = arith.subf %0, %14 : vector<16x32xf32>
    %cst_8 = arith.constant 9.99999996E-13 : f32
    %16 = vector.broadcast %cst_8 : f32 to vector<16x1xf32>
    %17 = arith.addf %13, %16 : vector<16x1xf32>
    %18 = math.rsqrt %17 : vector<16x1xf32>
    %19 = vector.broadcast %18 : vector<16x1xf32> to vector<16x32xf32>
    %20 = arith.mulf %15, %19 : vector<16x32xf32>
    %21 = vector.broadcast %1 : vector<1x32xf32> to vector<16x32xf32>
    %22 = arith.mulf %20, %21 : vector<16x32xf32>
    %23 = vector.broadcast %2 : vector<1x32xf32> to vector<16x32xf32>
    %24 = arith.addf %22, %23 : vector<16x32xf32>
    %c0_9 = arith.constant 0 : index
    %c0_10 = arith.constant 0 : index
    %c0_11 = arith.constant 0 : index
    %25 = vector.load %arg5[%c0_9, %c0_10, %c0_11] : memref<2x32x96xf32, #tpu.memory_space<vmem>>, vector<1x32x96xf32>
    %26 = vector.shape_cast %25 : vector<1x32x96xf32> to vector<32x96xf32>
    %cst_12 = arith.constant dense<0.000000e+00> : vector<16x96xf32>
    %27 = tpu.matmul %24, %26, %cst_12 {dimension_numbers = #tpu.dot_dimension_numbers<[1], [0], [0], [1], [0, 0, 1, 1], [], []>} : vector<16x32xf32>, vector<32x96xf32>, vector<16x96xf32> -> vector<16x96xf32>
    %c0_13 = arith.constant 0 : index
    %c0_14 = arith.constant 0 : index
    %c0_15 = arith.constant 0 : index
    %28 = vector.load %arg6[%c0_13, %c0_14, %c0_15] : memref<2x1x96xf32, #tpu.memory_space<vmem>>, vector<1x1x96xf32>
    %29 = vector.shape_cast %28 : vector<1x1x96xf32> to vector<1x96xf32>
    %30 = vector.broadcast %29 : vector<1x96xf32> to vector<16x96xf32>
    %31 = arith.addf %27, %30 : vector<16x96xf32>
    %32 = vector.extract_strided_slice %31 {offsets = [0, 0], sizes = [16, 32], strides = [1, 1]} : vector<16x96xf32> to vector<16x32xf32>
    %33 = vector.extract_strided_slice %31 {offsets = [0, 32], sizes = [16, 32], strides = [1, 1]} : vector<16x96xf32> to vector<16x32xf32>
    %34 = vector.extract_strided_slice %31 {offsets = [0, 64], sizes = [16, 32], strides = [1, 1]} : vector<16x96xf32> to vector<16x32xf32>
    %c0_16 = arith.constant 0 : index
    %c0_17 = arith.constant 0 : index
    %35 = vector.load %arg2[%c0_16, %c0_17] : memref<2x8xf32, #tpu.memory_space<vmem>>, vector<1x8xf32>
    %36 = vector.extract_strided_slice %32 {offsets = [0, 0], sizes = [8, 16], strides = [1, 1]} : vector<16x32xf32> to vector<8x16xf32>
    %37 = vector.extract_strided_slice %33 {offsets = [0, 0], sizes = [8, 16], strides = [1, 1]} : vector<16x32xf32> to vector<8x16xf32>
    %38 = vector.extract_strided_slice %34 {offsets = [0, 0], sizes = [8, 16], strides = [1, 1]} : vector<16x32xf32> to vector<8x16xf32>
    %cst_18 = arith.constant dense<0.000000e+00> : vector<8x8xf32>
    %39 = tpu.matmul %36, %37, %cst_18 {dimension_numbers = #tpu.dot_dimension_numbers<[1], [1], [0], [0], [0, 0, 1, 0], [], []>} : vector<8x16xf32>, vector<8x16xf32>, vector<8x8xf32> -> vector<8x8xf32>
    %cst_19 = arith.constant 2.500000e-01 : f32
    %40 = vector.broadcast %cst_19 : f32 to vector<8x8xf32>
    %41 = arith.mulf %39, %40 : vector<8x8xf32>
    %42 = vector.broadcast %35 : vector<1x8xf32> to vector<8x8xf32>
    %43 = arith.addf %41, %42 : vector<8x8xf32>
    %cst_20 = arith.constant dense<0xFF800000> : vector<8xf32>
    %44 = vector.multi_reduction <maximumf>, %43, %cst_20 [1] : vector<8x8xf32> to vector<8xf32>
    %45 = vector.shape_cast %44 : vector<8xf32> to vector<8x1xf32>
    %46 = vector.broadcast %45 : vector<8x1xf32> to vector<8x8xf32>
    %47 = arith.subf %43, %46 : vector<8x8xf32>
    %48 = math.exp %47 : vector<8x8xf32>
    %cst_21 = arith.constant dense<0.000000e+00> : vector<8xf32>
    %49 = vector.multi_reduction <add>, %48, %cst_21 [1] : vector<8x8xf32> to vector<8xf32>
    %50 = vector.shape_cast %49 : vector<8xf32> to vector<8x1xf32>
    %51 = tpu.reciprocal %50 {approx = true} : vector<8x1xf32> -> vector<8x1xf32>
    %52 = vector.broadcast %51 : vector<8x1xf32> to vector<8x8xf32>
    %53 = arith.mulf %48, %52 : vector<8x8xf32>
    %cst_22 = arith.constant dense<0.000000e+00> : vector<8x16xf32>
    %54 = tpu.matmul %53, %38, %cst_22 {dimension_numbers = #tpu.dot_dimension_numbers<[1], [0], [0], [1], [0, 0, 1, 1], [], []>} : vector<8x8xf32>, vector<8x16xf32>, vector<8x16xf32> -> vector<8x16xf32>
    %c0_23 = arith.constant 0 : index
    %c0_24 = arith.constant 0 : index
    %55 = vector.load %arg20[%c0_23, %c0_24] : memref<16x32xf32, #tpu.memory_space<vmem>>, vector<8x16xf32>
    tpu.vector_store %arg20[%c0_23, %c0_24], %54 {strides = array<i32>} : memref<16x32xf32, #tpu.memory_space<vmem>>, vector<8x16xf32>,
    %56 = vector.extract_strided_slice %32 {offsets = [0, 16], sizes = [8, 16], strides = [1, 1]} : vector<16x32xf32> to vector<8x16xf32>
    %57 = vector.extract_strided_slice %33 {offsets = [0, 16], sizes = [8, 16], strides = [1, 1]} : vector<16x32xf32> to vector<8x16xf32>
    %58 = vector.extract_strided_slice %34 {offsets = [0, 16], sizes = [8, 16], strides = [1, 1]} : vector<16x32xf32> to vector<8x16xf32>
    %cst_25 = arith.constant dense<0.000000e+00> : vector<8x8xf32>
    %59 = tpu.matmul %56, %57, %cst_25 {dimension_numbers = #tpu.dot_dimension_numbers<[1], [1], [0], [0], [0, 0, 1, 0], [], []>} : vector<8x16xf32>, vector<8x16xf32>, vector<8x8xf32> -> vector<8x8xf32>
    %cst_26 = arith.constant 2.500000e-01 : f32
    %60 = vector.broadcast %cst_26 : f32 to vector<8x8xf32>
    %61 = arith.mulf %59, %60 : vector<8x8xf32>
    %62 = vector.broadcast %35 : vector<1x8xf32> to vector<8x8xf32>
    %63 = arith.addf %61, %62 : vector<8x8xf32>
    %cst_27 = arith.constant dense<0xFF800000> : vector<8xf32>
    %64 = vector.multi_reduction <maximumf>, %63, %cst_27 [1] : vector<8x8xf32> to vector<8xf32>
    %65 = vector.shape_cast %64 : vector<8xf32> to vector<8x1xf32>
    %66 = vector.broadcast %65 : vector<8x1xf32> to vector<8x8xf32>
    %67 = arith.subf %63, %66 : vector<8x8xf32>
    %68 = math.exp %67 : vector<8x8xf32>
    %cst_28 = arith.constant dense<0.000000e+00> : vector<8xf32>
    %69 = vector.multi_reduction <add>, %68, %cst_28 [1] : vector<8x8xf32> to vector<8xf32>
    %70 = vector.shape_cast %69 : vector<8xf32> to vector<8x1xf32>
    %71 = tpu.reciprocal %70 {approx = true} : vector<8x1xf32> -> vector<8x1xf32>
    %72 = vector.broadcast %71 : vector<8x1xf32> to vector<8x8xf32>
    %73 = arith.mulf %68, %72 : vector<8x8xf32>
    %cst_29 = arith.constant dense<0.000000e+00> : vector<8x16xf32>
    %74 = tpu.matmul %73, %58, %cst_29 {dimension_numbers = #tpu.dot_dimension_numbers<[1], [0], [0], [1], [0, 0, 1, 1], [], []>} : vector<8x8xf32>, vector<8x16xf32>, vector<8x16xf32> -> vector<8x16xf32>
    %c0_30 = arith.constant 0 : index
    %c16 = arith.constant 16 : index
    %75 = vector.load %arg20[%c0_30, %c16] : memref<16x32xf32, #tpu.memory_space<vmem>>, vector<8x16xf32>
    tpu.vector_store %arg20[%c0_30, %c16], %74 {strides = array<i32>} : memref<16x32xf32, #tpu.memory_space<vmem>>, vector<8x16xf32>,
    %c1 = arith.constant 1 : index
    %c0_31 = arith.constant 0 : index
    %76 = vector.load %arg2[%c1, %c0_31] : memref<2x8xf32, #tpu.memory_space<vmem>>, vector<1x8xf32>
    %77 = vector.extract_strided_slice %32 {offsets = [8, 0], sizes = [8, 16], strides = [1, 1]} : vector<16x32xf32> to vector<8x16xf32>
    %78 = vector.extract_strided_slice %33 {offsets = [8, 0], sizes = [8, 16], strides = [1, 1]} : vector<16x32xf32> to vector<8x16xf32>
    %79 = vector.extract_strided_slice %34 {offsets = [8, 0], sizes = [8, 16], strides = [1, 1]} : vector<16x32xf32> to vector<8x16xf32>
    %cst_32 = arith.constant dense<0.000000e+00> : vector<8x8xf32>
    %80 = tpu.matmul %77, %78, %cst_32 {dimension_numbers = #tpu.dot_dimension_numbers<[1], [1], [0], [0], [0, 0, 1, 0], [], []>} : vector<8x16xf32>, vector<8x16xf32>, vector<8x8xf32> -> vector<8x8xf32>
    %cst_33 = arith.constant 2.500000e-01 : f32
    %81 = vector.broadcast %cst_33 : f32 to vector<8x8xf32>
    %82 = arith.mulf %80, %81 : vector<8x8xf32>
    %83 = vector.broadcast %76 : vector<1x8xf32> to vector<8x8xf32>
    %84 = arith.addf %82, %83 : vector<8x8xf32>
    %cst_34 = arith.constant dense<0xFF800000> : vector<8xf32>
    %85 = vector.multi_reduction <maximumf>, %84, %cst_34 [1] : vector<8x8xf32> to vector<8xf32>
    %86 = vector.shape_cast %85 : vector<8xf32> to vector<8x1xf32>
    %87 = vector.broadcast %86 : vector<8x1xf32> to vector<8x8xf32>
    %88 = arith.subf %84, %87 : vector<8x8xf32>
    %89 = math.exp %88 : vector<8x8xf32>
    %cst_35 = arith.constant dense<0.000000e+00> : vector<8xf32>
    %90 = vector.multi_reduction <add>, %89, %cst_35 [1] : vector<8x8xf32> to vector<8xf32>
    %91 = vector.shape_cast %90 : vector<8xf32> to vector<8x1xf32>
    %92 = tpu.reciprocal %91 {approx = true} : vector<8x1xf32> -> vector<8x1xf32>
    %93 = vector.broadcast %92 : vector<8x1xf32> to vector<8x8xf32>
    %94 = arith.mulf %89, %93 : vector<8x8xf32>
    %cst_36 = arith.constant dense<0.000000e+00> : vector<8x16xf32>
    %95 = tpu.matmul %94, %79, %cst_36 {dimension_numbers = #tpu.dot_dimension_numbers<[1], [0], [0], [1], [0, 0, 1, 1], [], []>} : vector<8x8xf32>, vector<8x16xf32>, vector<8x16xf32> -> vector<8x16xf32>
    %c8 = arith.constant 8 : index
    %c0_37 = arith.constant 0 : index
    %96 = vector.load %arg20[%c8, %c0_37] : memref<16x32xf32, #tpu.memory_space<vmem>>, vector<8x16xf32>
    tpu.vector_store %arg20[%c8, %c0_37], %95 {strides = array<i32>} : memref<16x32xf32, #tpu.memory_space<vmem>>, vector<8x16xf32>,
    %97 = vector.extract_strided_slice %32 {offsets = [8, 16], sizes = [8, 16], strides = [1, 1]} : vector<16x32xf32> to vector<8x16xf32>
    %98 = vector.extract_strided_slice %33 {offsets = [8, 16], sizes = [8, 16], strides = [1, 1]} : vector<16x32xf32> to vector<8x16xf32>
    %99 = vector.extract_strided_slice %34 {offsets = [8, 16], sizes = [8, 16], strides = [1, 1]} : vector<16x32xf32> to vector<8x16xf32>
    %cst_38 = arith.constant dense<0.000000e+00> : vector<8x8xf32>
    %100 = tpu.matmul %97, %98, %cst_38 {dimension_numbers = #tpu.dot_dimension_numbers<[1], [1], [0], [0], [0, 0, 1, 0], [], []>} : vector<8x16xf32>, vector<8x16xf32>, vector<8x8xf32> -> vector<8x8xf32>
    %cst_39 = arith.constant 2.500000e-01 : f32
    %101 = vector.broadcast %cst_39 : f32 to vector<8x8xf32>
    %102 = arith.mulf %100, %101 : vector<8x8xf32>
    %103 = vector.broadcast %76 : vector<1x8xf32> to vector<8x8xf32>
    %104 = arith.addf %102, %103 : vector<8x8xf32>
    %cst_40 = arith.constant dense<0xFF800000> : vector<8xf32>
    %105 = vector.multi_reduction <maximumf>, %104, %cst_40 [1] : vector<8x8xf32> to vector<8xf32>
    %106 = vector.shape_cast %105 : vector<8xf32> to vector<8x1xf32>
    %107 = vector.broadcast %106 : vector<8x1xf32> to vector<8x8xf32>
    %108 = arith.subf %104, %107 : vector<8x8xf32>
    %109 = math.exp %108 : vector<8x8xf32>
    %cst_41 = arith.constant dense<0.000000e+00> : vector<8xf32>
    %110 = vector.multi_reduction <add>, %109, %cst_41 [1] : vector<8x8xf32> to vector<8xf32>
    %111 = vector.shape_cast %110 : vector<8xf32> to vector<8x1xf32>
    %112 = tpu.reciprocal %111 {approx = true} : vector<8x1xf32> -> vector<8x1xf32>
    %113 = vector.broadcast %112 : vector<8x1xf32> to vector<8x8xf32>
    %114 = arith.mulf %109, %113 : vector<8x8xf32>
    %cst_42 = arith.constant dense<0.000000e+00> : vector<8x16xf32>
    %115 = tpu.matmul %114, %99, %cst_42 {dimension_numbers = #tpu.dot_dimension_numbers<[1], [0], [0], [1], [0, 0, 1, 1], [], []>} : vector<8x8xf32>, vector<8x16xf32>, vector<8x16xf32> -> vector<8x16xf32>
    %c8_43 = arith.constant 8 : index
    %c16_44 = arith.constant 16 : index
    %116 = vector.load %arg20[%c8_43, %c16_44] : memref<16x32xf32, #tpu.memory_space<vmem>>, vector<8x16xf32>
    tpu.vector_store %arg20[%c8_43, %c16_44], %115 {strides = array<i32>} : memref<16x32xf32, #tpu.memory_space<vmem>>, vector<8x16xf32>,
    %c0_45 = arith.constant 0 : index
    %c0_46 = arith.constant 0 : index
    %117 = vector.load %arg20[%c0_45, %c0_46] : memref<16x32xf32, #tpu.memory_space<vmem>>, vector<16x32xf32>
    %c0_47 = arith.constant 0 : index
    %c0_48 = arith.constant 0 : index
    %c0_49 = arith.constant 0 : index
    %118 = vector.load %arg7[%c0_47, %c0_48, %c0_49] : memref<2x32x32xf32, #tpu.memory_space<vmem>>, vector<1x32x32xf32>
    %119 = vector.shape_cast %118 : vector<1x32x32xf32> to vector<32x32xf32>
    %cst_50 = arith.constant dense<0.000000e+00> : vector<16x32xf32>
    %120 = tpu.matmul %117, %119, %cst_50 {dimension_numbers = #tpu.dot_dimension_numbers<[1], [0], [0], [1], [0, 0, 1, 1], [], []>} : vector<16x32xf32>, vector<32x32xf32>, vector<16x32xf32> -> vector<16x32xf32>
    %c0_51 = arith.constant 0 : index
    %c0_52 = arith.constant 0 : index
    %c0_53 = arith.constant 0 : index
    %121 = vector.load %arg8[%c0_51, %c0_52, %c0_53] : memref<2x1x32xf32, #tpu.memory_space<vmem>>, vector<1x1x32xf32>
    %122 = vector.shape_cast %121 : vector<1x1x32xf32> to vector<1x32xf32>
    %123 = vector.broadcast %122 : vector<1x32xf32> to vector<16x32xf32>
    %124 = arith.addf %120, %123 : vector<16x32xf32>
    %125 = arith.addf %124, %24 : vector<16x32xf32>
    %c0_54 = arith.constant 0 : index
    %c0_55 = arith.constant 0 : index
    %c0_56 = arith.constant 0 : index
    %126 = vector.load %arg9[%c0_54, %c0_55, %c0_56] : memref<2x1x32xf32, #tpu.memory_space<vmem>>, vector<1x1x32xf32>
    %127 = vector.shape_cast %126 : vector<1x1x32xf32> to vector<1x32xf32>
    %c0_57 = arith.constant 0 : index
    %c0_58 = arith.constant 0 : index
    %c0_59 = arith.constant 0 : index
    %128 = vector.load %arg10[%c0_57, %c0_58, %c0_59] : memref<2x1x32xf32, #tpu.memory_space<vmem>>, vector<1x1x32xf32>
    %129 = vector.shape_cast %128 : vector<1x1x32xf32> to vector<1x32xf32>
    %cst_60 = arith.constant dense<0.000000e+00> : vector<16xf32>
    %130 = vector.multi_reduction <add>, %125, %cst_60 [1] : vector<16x32xf32> to vector<16xf32>
    %131 = vector.shape_cast %130 : vector<16xf32> to vector<16x1xf32>
    %cst_61 = arith.constant 3.200000e+01 : f32
    %132 = vector.broadcast %cst_61 : f32 to vector<16x1xf32>
    %133 = arith.divf %131, %132 : vector<16x1xf32>
    %134 = vector.broadcast %133 : vector<16x1xf32> to vector<16x32xf32>
    %135 = arith.subf %125, %134 : vector<16x32xf32>
    %136 = arith.mulf %135, %135 : vector<16x32xf32>
    %cst_62 = arith.constant dense<0.000000e+00> : vector<16xf32>
    %137 = vector.multi_reduction <add>, %136, %cst_62 [1] : vector<16x32xf32> to vector<16xf32>
    %138 = vector.shape_cast %137 : vector<16xf32> to vector<16x1xf32>
    %cst_63 = arith.constant 3.200000e+01 : f32
    %139 = vector.broadcast %cst_63 : f32 to vector<16x1xf32>
    %140 = arith.divf %138, %139 : vector<16x1xf32>
    %141 = vector.broadcast %133 : vector<16x1xf32> to vector<16x32xf32>
    %142 = arith.subf %125, %141 : vector<16x32xf32>
    %cst_64 = arith.constant 9.99999996E-13 : f32
    %143 = vector.broadcast %cst_64 : f32 to vector<16x1xf32>
    %144 = arith.addf %140, %143 : vector<16x1xf32>
    %145 = math.rsqrt %144 : vector<16x1xf32>
    %146 = vector.broadcast %145 : vector<16x1xf32> to vector<16x32xf32>
    %147 = arith.mulf %142, %146 : vector<16x32xf32>
    %148 = vector.broadcast %127 : vector<1x32xf32> to vector<16x32xf32>
    %149 = arith.mulf %147, %148 : vector<16x32xf32>
    %150 = vector.broadcast %129 : vector<1x32xf32> to vector<16x32xf32>
    %151 = arith.addf %149, %150 : vector<16x32xf32>
    %c0_65 = arith.constant 0 : index
    %c0_66 = arith.constant 0 : index
    %c0_67 = arith.constant 0 : index
    %152 = vector.load %arg11[%c0_65, %c0_66, %c0_67] : memref<2x32x64xf32, #tpu.memory_space<vmem>>, vector<1x32x64xf32>
    %153 = vector.shape_cast %152 : vector<1x32x64xf32> to vector<32x64xf32>
    %cst_68 = arith.constant dense<0.000000e+00> : vector<16x64xf32>
    %154 = tpu.matmul %151, %153, %cst_68 {dimension_numbers = #tpu.dot_dimension_numbers<[1], [0], [0], [1], [0, 0, 1, 1], [], []>} : vector<16x32xf32>, vector<32x64xf32>, vector<16x64xf32> -> vector<16x64xf32>
    %c0_69 = arith.constant 0 : index
    %c0_70 = arith.constant 0 : index
    %c0_71 = arith.constant 0 : index
    %155 = vector.load %arg12[%c0_69, %c0_70, %c0_71] : memref<2x1x64xf32, #tpu.memory_space<vmem>>, vector<1x1x64xf32>
    %156 = vector.shape_cast %155 : vector<1x1x64xf32> to vector<1x64xf32>
    %157 = vector.broadcast %156 : vector<1x64xf32> to vector<16x64xf32>
    %158 = arith.addf %154, %157 : vector<16x64xf32>
    %159 = arith.mulf %158, %158 : vector<16x64xf32>
    %160 = arith.mulf %158, %159 : vector<16x64xf32>
    %cst_72 = arith.constant 4.471500e-02 : f32
    %161 = vector.broadcast %cst_72 : f32 to vector<16x64xf32>
    %162 = arith.mulf %161, %160 : vector<16x64xf32>
    %163 = arith.addf %158, %162 : vector<16x64xf32>
    %cst_73 = arith.constant 0.797884583 : f32
    %164 = vector.broadcast %cst_73 : f32 to vector<16x64xf32>
    %165 = arith.mulf %164, %163 : vector<16x64xf32>
    %166 = math.tanh %165 : vector<16x64xf32>
    %cst_74 = arith.constant 1.000000e+00 : f32
    %167 = vector.broadcast %cst_74 : f32 to vector<16x64xf32>
    %168 = arith.addf %167, %166 : vector<16x64xf32>
    %cst_75 = arith.constant 5.000000e-01 : f32
    %169 = vector.broadcast %cst_75 : f32 to vector<16x64xf32>
    %170 = arith.mulf %169, %168 : vector<16x64xf32>
    %171 = arith.mulf %158, %170 : vector<16x64xf32>
    %c0_76 = arith.constant 0 : index
    %c0_77 = arith.constant 0 : index
    %c0_78 = arith.constant 0 : index
    %172 = vector.load %arg13[%c0_76, %c0_77, %c0_78] : memref<2x64x32xf32, #tpu.memory_space<vmem>>, vector<1x64x32xf32>
    %173 = vector.shape_cast %172 : vector<1x64x32xf32> to vector<64x32xf32>
    %cst_79 = arith.constant dense<0.000000e+00> : vector<16x32xf32>
    %174 = tpu.matmul %171, %173, %cst_79 {dimension_numbers = #tpu.dot_dimension_numbers<[1], [0], [0], [1], [0, 0, 1, 1], [], []>} : vector<16x64xf32>, vector<64x32xf32>, vector<16x32xf32> -> vector<16x32xf32>
    %c0_80 = arith.constant 0 : index
    %c0_81 = arith.constant 0 : index
    %c0_82 = arith.constant 0 : index
    %175 = vector.load %arg14[%c0_80, %c0_81, %c0_82] : memref<2x1x32xf32, #tpu.memory_space<vmem>>, vector<1x1x32xf32>
    %176 = vector.shape_cast %175 : vector<1x1x32xf32> to vector<1x32xf32>
    %177 = vector.broadcast %176 : vector<1x32xf32> to vector<16x32xf32>
    %178 = arith.addf %174, %177 : vector<16x32xf32>
    %179 = arith.addf %178, %151 : vector<16x32xf32>
    %c0_83 = arith.constant 0 : index
    %c0_84 = arith.constant 0 : index
    %c0_85 = arith.constant 0 : index
    %180 = vector.load %arg15[%c0_83, %c0_84, %c0_85] : memref<2x1x32xf32, #tpu.memory_space<vmem>>, vector<1x1x32xf32>
    %181 = vector.shape_cast %180 : vector<1x1x32xf32> to vector<1x32xf32>
    %c0_86 = arith.constant 0 : index
    %c0_87 = arith.constant 0 : index
    %c0_88 = arith.constant 0 : index
    %182 = vector.load %arg16[%c0_86, %c0_87, %c0_88] : memref<2x1x32xf32, #tpu.memory_space<vmem>>, vector<1x1x32xf32>
    %183 = vector.shape_cast %182 : vector<1x1x32xf32> to vector<1x32xf32>
    %cst_89 = arith.constant dense<0.000000e+00> : vector<16xf32>
    %184 = vector.multi_reduction <add>, %179, %cst_89 [1] : vector<16x32xf32> to vector<16xf32>
    %185 = vector.shape_cast %184 : vector<16xf32> to vector<16x1xf32>
    %cst_90 = arith.constant 3.200000e+01 : f32
    %186 = vector.broadcast %cst_90 : f32 to vector<16x1xf32>
    %187 = arith.divf %185, %186 : vector<16x1xf32>
    %188 = vector.broadcast %187 : vector<16x1xf32> to vector<16x32xf32>
    %189 = arith.subf %179, %188 : vector<16x32xf32>
    %190 = arith.mulf %189, %189 : vector<16x32xf32>
    %cst_91 = arith.constant dense<0.000000e+00> : vector<16xf32>
    %191 = vector.multi_reduction <add>, %190, %cst_91 [1] : vector<16x32xf32> to vector<16xf32>
    %192 = vector.shape_cast %191 : vector<16xf32> to vector<16x1xf32>
    %cst_92 = arith.constant 3.200000e+01 : f32
    %193 = vector.broadcast %cst_92 : f32 to vector<16x1xf32>
    %194 = arith.divf %192, %193 : vector<16x1xf32>
    %195 = vector.broadcast %187 : vector<16x1xf32> to vector<16x32xf32>
    %196 = arith.subf %179, %195 : vector<16x32xf32>
    %cst_93 = arith.constant 9.99999996E-13 : f32
    %197 = vector.broadcast %cst_93 : f32 to vector<16x1xf32>
    %198 = arith.addf %194, %197 : vector<16x1xf32>
    %199 = math.rsqrt %198 : vector<16x1xf32>
    %200 = vector.broadcast %199 : vector<16x1xf32> to vector<16x32xf32>
    %201 = arith.mulf %196, %200 : vector<16x32xf32>
    %202 = vector.broadcast %181 : vector<1x32xf32> to vector<16x32xf32>
    %203 = arith.mulf %201, %202 : vector<16x32xf32>
    %204 = vector.broadcast %183 : vector<1x32xf32> to vector<16x32xf32>
    %205 = arith.addf %203, %204 : vector<16x32xf32>
    %c1_94 = arith.constant 1 : index
    %c0_95 = arith.constant 0 : index
    %c0_96 = arith.constant 0 : index
    %206 = vector.load %arg5[%c1_94, %c0_95, %c0_96] : memref<2x32x96xf32, #tpu.memory_space<vmem>>, vector<1x32x96xf32>
    %207 = vector.shape_cast %206 : vector<1x32x96xf32> to vector<32x96xf32>
    %cst_97 = arith.constant dense<0.000000e+00> : vector<16x96xf32>
    %208 = tpu.matmul %205, %207, %cst_97 {dimension_numbers = #tpu.dot_dimension_numbers<[1], [0], [0], [1], [0, 0, 1, 1], [], []>} : vector<16x32xf32>, vector<32x96xf32>, vector<16x96xf32> -> vector<16x96xf32>
    %c1_98 = arith.constant 1 : index
    %c0_99 = arith.constant 0 : index
    %c0_100 = arith.constant 0 : index
    %209 = vector.load %arg6[%c1_98, %c0_99, %c0_100] : memref<2x1x96xf32, #tpu.memory_space<vmem>>, vector<1x1x96xf32>
    %210 = vector.shape_cast %209 : vector<1x1x96xf32> to vector<1x96xf32>
    %211 = vector.broadcast %210 : vector<1x96xf32> to vector<16x96xf32>
    %212 = arith.addf %208, %211 : vector<16x96xf32>
    %213 = vector.extract_strided_slice %212 {offsets = [0, 0], sizes = [16, 32], strides = [1, 1]} : vector<16x96xf32> to vector<16x32xf32>
    %214 = vector.extract_strided_slice %212 {offsets = [0, 32], sizes = [16, 32], strides = [1, 1]} : vector<16x96xf32> to vector<16x32xf32>
    %215 = vector.extract_strided_slice %212 {offsets = [0, 64], sizes = [16, 32], strides = [1, 1]} : vector<16x96xf32> to vector<16x32xf32>
    %c0_101 = arith.constant 0 : index
    %c0_102 = arith.constant 0 : index
    %216 = vector.load %arg2[%c0_101, %c0_102] : memref<2x8xf32, #tpu.memory_space<vmem>>, vector<1x8xf32>
    %217 = vector.extract_strided_slice %213 {offsets = [0, 0], sizes = [8, 16], strides = [1, 1]} : vector<16x32xf32> to vector<8x16xf32>
    %218 = vector.extract_strided_slice %214 {offsets = [0, 0], sizes = [8, 16], strides = [1, 1]} : vector<16x32xf32> to vector<8x16xf32>
    %219 = vector.extract_strided_slice %215 {offsets = [0, 0], sizes = [8, 16], strides = [1, 1]} : vector<16x32xf32> to vector<8x16xf32>
    %cst_103 = arith.constant dense<0.000000e+00> : vector<8x8xf32>
    %220 = tpu.matmul %217, %218, %cst_103 {dimension_numbers = #tpu.dot_dimension_numbers<[1], [1], [0], [0], [0, 0, 1, 0], [], []>} : vector<8x16xf32>, vector<8x16xf32>, vector<8x8xf32> -> vector<8x8xf32>
    %cst_104 = arith.constant 2.500000e-01 : f32
    %221 = vector.broadcast %cst_104 : f32 to vector<8x8xf32>
    %222 = arith.mulf %220, %221 : vector<8x8xf32>
    %223 = vector.broadcast %216 : vector<1x8xf32> to vector<8x8xf32>
    %224 = arith.addf %222, %223 : vector<8x8xf32>
    %cst_105 = arith.constant dense<0xFF800000> : vector<8xf32>
    %225 = vector.multi_reduction <maximumf>, %224, %cst_105 [1] : vector<8x8xf32> to vector<8xf32>
    %226 = vector.shape_cast %225 : vector<8xf32> to vector<8x1xf32>
    %227 = vector.broadcast %226 : vector<8x1xf32> to vector<8x8xf32>
    %228 = arith.subf %224, %227 : vector<8x8xf32>
    %229 = math.exp %228 : vector<8x8xf32>
    %cst_106 = arith.constant dense<0.000000e+00> : vector<8xf32>
    %230 = vector.multi_reduction <add>, %229, %cst_106 [1] : vector<8x8xf32> to vector<8xf32>
    %231 = vector.shape_cast %230 : vector<8xf32> to vector<8x1xf32>
    %232 = tpu.reciprocal %231 {approx = true} : vector<8x1xf32> -> vector<8x1xf32>
    %233 = vector.broadcast %232 : vector<8x1xf32> to vector<8x8xf32>
    %234 = arith.mulf %229, %233 : vector<8x8xf32>
    %cst_107 = arith.constant dense<0.000000e+00> : vector<8x16xf32>
    %235 = tpu.matmul %234, %219, %cst_107 {dimension_numbers = #tpu.dot_dimension_numbers<[1], [0], [0], [1], [0, 0, 1, 1], [], []>} : vector<8x8xf32>, vector<8x16xf32>, vector<8x16xf32> -> vector<8x16xf32>
    %c0_108 = arith.constant 0 : index
    %c0_109 = arith.constant 0 : index
    %236 = vector.load %arg20[%c0_108, %c0_109] : memref<16x32xf32, #tpu.memory_space<vmem>>, vector<8x16xf32>
    tpu.vector_store %arg20[%c0_108, %c0_109], %235 {strides = array<i32>} : memref<16x32xf32, #tpu.memory_space<vmem>>, vector<8x16xf32>,
    %237 = vector.extract_strided_slice %213 {offsets = [0, 16], sizes = [8, 16], strides = [1, 1]} : vector<16x32xf32> to vector<8x16xf32>
    %238 = vector.extract_strided_slice %214 {offsets = [0, 16], sizes = [8, 16], strides = [1, 1]} : vector<16x32xf32> to vector<8x16xf32>
    %239 = vector.extract_strided_slice %215 {offsets = [0, 16], sizes = [8, 16], strides = [1, 1]} : vector<16x32xf32> to vector<8x16xf32>
    %cst_110 = arith.constant dense<0.000000e+00> : vector<8x8xf32>
    %240 = tpu.matmul %237, %238, %cst_110 {dimension_numbers = #tpu.dot_dimension_numbers<[1], [1], [0], [0], [0, 0, 1, 0], [], []>} : vector<8x16xf32>, vector<8x16xf32>, vector<8x8xf32> -> vector<8x8xf32>
    %cst_111 = arith.constant 2.500000e-01 : f32
    %241 = vector.broadcast %cst_111 : f32 to vector<8x8xf32>
    %242 = arith.mulf %240, %241 : vector<8x8xf32>
    %243 = vector.broadcast %216 : vector<1x8xf32> to vector<8x8xf32>
    %244 = arith.addf %242, %243 : vector<8x8xf32>
    %cst_112 = arith.constant dense<0xFF800000> : vector<8xf32>
    %245 = vector.multi_reduction <maximumf>, %244, %cst_112 [1] : vector<8x8xf32> to vector<8xf32>
    %246 = vector.shape_cast %245 : vector<8xf32> to vector<8x1xf32>
    %247 = vector.broadcast %246 : vector<8x1xf32> to vector<8x8xf32>
    %248 = arith.subf %244, %247 : vector<8x8xf32>
    %249 = math.exp %248 : vector<8x8xf32>
    %cst_113 = arith.constant dense<0.000000e+00> : vector<8xf32>
    %250 = vector.multi_reduction <add>, %249, %cst_113 [1] : vector<8x8xf32> to vector<8xf32>
    %251 = vector.shape_cast %250 : vector<8xf32> to vector<8x1xf32>
    %252 = tpu.reciprocal %251 {approx = true} : vector<8x1xf32> -> vector<8x1xf32>
    %253 = vector.broadcast %252 : vector<8x1xf32> to vector<8x8xf32>
    %254 = arith.mulf %249, %253 : vector<8x8xf32>
    %cst_114 = arith.constant dense<0.000000e+00> : vector<8x16xf32>
    %255 = tpu.matmul %254, %239, %cst_114 {dimension_numbers = #tpu.dot_dimension_numbers<[1], [0], [0], [1], [0, 0, 1, 1], [], []>} : vector<8x8xf32>, vector<8x16xf32>, vector<8x16xf32> -> vector<8x16xf32>
    %c0_115 = arith.constant 0 : index
    %c16_116 = arith.constant 16 : index
    %256 = vector.load %arg20[%c0_115, %c16_116] : memref<16x32xf32, #tpu.memory_space<vmem>>, vector<8x16xf32>
    tpu.vector_store %arg20[%c0_115, %c16_116], %255 {strides = array<i32>} : memref<16x32xf32, #tpu.memory_space<vmem>>, vector<8x16xf32>,
    %c1_117 = arith.constant 1 : index
    %c0_118 = arith.constant 0 : index
    %257 = vector.load %arg2[%c1_117, %c0_118] : memref<2x8xf32, #tpu.memory_space<vmem>>, vector<1x8xf32>
    %258 = vector.extract_strided_slice %213 {offsets = [8, 0], sizes = [8, 16], strides = [1, 1]} : vector<16x32xf32> to vector<8x16xf32>
    %259 = vector.extract_strided_slice %214 {offsets = [8, 0], sizes = [8, 16], strides = [1, 1]} : vector<16x32xf32> to vector<8x16xf32>
    %260 = vector.extract_strided_slice %215 {offsets = [8, 0], sizes = [8, 16], strides = [1, 1]} : vector<16x32xf32> to vector<8x16xf32>
    %cst_119 = arith.constant dense<0.000000e+00> : vector<8x8xf32>
    %261 = tpu.matmul %258, %259, %cst_119 {dimension_numbers = #tpu.dot_dimension_numbers<[1], [1], [0], [0], [0, 0, 1, 0], [], []>} : vector<8x16xf32>, vector<8x16xf32>, vector<8x8xf32> -> vector<8x8xf32>
    %cst_120 = arith.constant 2.500000e-01 : f32
    %262 = vector.broadcast %cst_120 : f32 to vector<8x8xf32>
    %263 = arith.mulf %261, %262 : vector<8x8xf32>
    %264 = vector.broadcast %257 : vector<1x8xf32> to vector<8x8xf32>
    %265 = arith.addf %263, %264 : vector<8x8xf32>
    %cst_121 = arith.constant dense<0xFF800000> : vector<8xf32>
    %266 = vector.multi_reduction <maximumf>, %265, %cst_121 [1] : vector<8x8xf32> to vector<8xf32>
    %267 = vector.shape_cast %266 : vector<8xf32> to vector<8x1xf32>
    %268 = vector.broadcast %267 : vector<8x1xf32> to vector<8x8xf32>
    %269 = arith.subf %265, %268 : vector<8x8xf32>
    %270 = math.exp %269 : vector<8x8xf32>
    %cst_122 = arith.constant dense<0.000000e+00> : vector<8xf32>
    %271 = vector.multi_reduction <add>, %270, %cst_122 [1] : vector<8x8xf32> to vector<8xf32>
    %272 = vector.shape_cast %271 : vector<8xf32> to vector<8x1xf32>
    %273 = tpu.reciprocal %272 {approx = true} : vector<8x1xf32> -> vector<8x1xf32>
    %274 = vector.broadcast %273 : vector<8x1xf32> to vector<8x8xf32>
    %275 = arith.mulf %270, %274 : vector<8x8xf32>
    %cst_123 = arith.constant dense<0.000000e+00> : vector<8x16xf32>
    %276 = tpu.matmul %275, %260, %cst_123 {dimension_numbers = #tpu.dot_dimension_numbers<[1], [0], [0], [1], [0, 0, 1, 1], [], []>} : vector<8x8xf32>, vector<8x16xf32>, vector<8x16xf32> -> vector<8x16xf32>
    %c8_124 = arith.constant 8 : index
    %c0_125 = arith.constant 0 : index
    %277 = vector.load %arg20[%c8_124, %c0_125] : memref<16x32xf32, #tpu.memory_space<vmem>>, vector<8x16xf32>
    tpu.vector_store %arg20[%c8_124, %c0_125], %276 {strides = array<i32>} : memref<16x32xf32, #tpu.memory_space<vmem>>, vector<8x16xf32>,
    %278 = vector.extract_strided_slice %213 {offsets = [8, 16], sizes = [8, 16], strides = [1, 1]} : vector<16x32xf32> to vector<8x16xf32>
    %279 = vector.extract_strided_slice %214 {offsets = [8, 16], sizes = [8, 16], strides = [1, 1]} : vector<16x32xf32> to vector<8x16xf32>
    %280 = vector.extract_strided_slice %215 {offsets = [8, 16], sizes = [8, 16], strides = [1, 1]} : vector<16x32xf32> to vector<8x16xf32>
    %cst_126 = arith.constant dense<0.000000e+00> : vector<8x8xf32>
    %281 = tpu.matmul %278, %279, %cst_126 {dimension_numbers = #tpu.dot_dimension_numbers<[1], [1], [0], [0], [0, 0, 1, 0], [], []>} : vector<8x16xf32>, vector<8x16xf32>, vector<8x8xf32> -> vector<8x8xf32>
    %cst_127 = arith.constant 2.500000e-01 : f32
    %282 = vector.broadcast %cst_127 : f32 to vector<8x8xf32>
    %283 = arith.mulf %281, %282 : vector<8x8xf32>
    %284 = vector.broadcast %257 : vector<1x8xf32> to vector<8x8xf32>
    %285 = arith.addf %283, %284 : vector<8x8xf32>
    %cst_128 = arith.constant dense<0xFF800000> : vector<8xf32>
    %286 = vector.multi_reduction <maximumf>, %285, %cst_128 [1] : vector<8x8xf32> to vector<8xf32>
    %287 = vector.shape_cast %286 : vector<8xf32> to vector<8x1xf32>
    %288 = vector.broadcast %287 : vector<8x1xf32> to vector<8x8xf32>
    %289 = arith.subf %285, %288 : vector<8x8xf32>
    %290 = math.exp %289 : vector<8x8xf32>
    %cst_129 = arith.constant dense<0.000000e+00> : vector<8xf32>
    %291 = vector.multi_reduction <add>, %290, %cst_129 [1] : vector<8x8xf32> to vector<8xf32>
    %292 = vector.shape_cast %291 : vector<8xf32> to vector<8x1xf32>
    %293 = tpu.reciprocal %292 {approx = true} : vector<8x1xf32> -> vector<8x1xf32>
    %294 = vector.broadcast %293 : vector<8x1xf32> to vector<8x8xf32>
    %295 = arith.mulf %290, %294 : vector<8x8xf32>
    %cst_130 = arith.constant dense<0.000000e+00> : vector<8x16xf32>
    %296 = tpu.matmul %295, %280, %cst_130 {dimension_numbers = #tpu.dot_dimension_numbers<[1], [0], [0], [1], [0, 0, 1, 1], [], []>} : vector<8x8xf32>, vector<8x16xf32>, vector<8x16xf32> -> vector<8x16xf32>
    %c8_131 = arith.constant 8 : index
    %c16_132 = arith.constant 16 : index
    %297 = vector.load %arg20[%c8_131, %c16_132] : memref<16x32xf32, #tpu.memory_space<vmem>>, vector<8x16xf32>
    tpu.vector_store %arg20[%c8_131, %c16_132], %296 {strides = array<i32>} : memref<16x32xf32, #tpu.memory_space<vmem>>, vector<8x16xf32>,
    %c0_133 = arith.constant 0 : index
    %c0_134 = arith.constant 0 : index
    %298 = vector.load %arg20[%c0_133, %c0_134] : memref<16x32xf32, #tpu.memory_space<vmem>>, vector<16x32xf32>
    %c1_135 = arith.constant 1 : index
    %c0_136 = arith.constant 0 : index
    %c0_137 = arith.constant 0 : index
    %299 = vector.load %arg7[%c1_135, %c0_136, %c0_137] : memref<2x32x32xf32, #tpu.memory_space<vmem>>, vector<1x32x32xf32>
    %300 = vector.shape_cast %299 : vector<1x32x32xf32> to vector<32x32xf32>
    %cst_138 = arith.constant dense<0.000000e+00> : vector<16x32xf32>
    %301 = tpu.matmul %298, %300, %cst_138 {dimension_numbers = #tpu.dot_dimension_numbers<[1], [0], [0], [1], [0, 0, 1, 1], [], []>} : vector<16x32xf32>, vector<32x32xf32>, vector<16x32xf32> -> vector<16x32xf32>
    %c1_139 = arith.constant 1 : index
    %c0_140 = arith.constant 0 : index
    %c0_141 = arith.constant 0 : index
    %302 = vector.load %arg8[%c1_139, %c0_140, %c0_141] : memref<2x1x32xf32, #tpu.memory_space<vmem>>, vector<1x1x32xf32>
    %303 = vector.shape_cast %302 : vector<1x1x32xf32> to vector<1x32xf32>
    %304 = vector.broadcast %303 : vector<1x32xf32> to vector<16x32xf32>
    %305 = arith.addf %301, %304 : vector<16x32xf32>
    %306 = arith.addf %305, %205 : vector<16x32xf32>
    %c1_142 = arith.constant 1 : index
    %c0_143 = arith.constant 0 : index
    %c0_144 = arith.constant 0 : index
    %307 = vector.load %arg9[%c1_142, %c0_143, %c0_144] : memref<2x1x32xf32, #tpu.memory_space<vmem>>, vector<1x1x32xf32>
    %308 = vector.shape_cast %307 : vector<1x1x32xf32> to vector<1x32xf32>
    %c1_145 = arith.constant 1 : index
    %c0_146 = arith.constant 0 : index
    %c0_147 = arith.constant 0 : index
    %309 = vector.load %arg10[%c1_145, %c0_146, %c0_147] : memref<2x1x32xf32, #tpu.memory_space<vmem>>, vector<1x1x32xf32>
    %310 = vector.shape_cast %309 : vector<1x1x32xf32> to vector<1x32xf32>
    %cst_148 = arith.constant dense<0.000000e+00> : vector<16xf32>
    %311 = vector.multi_reduction <add>, %306, %cst_148 [1] : vector<16x32xf32> to vector<16xf32>
    %312 = vector.shape_cast %311 : vector<16xf32> to vector<16x1xf32>
    %cst_149 = arith.constant 3.200000e+01 : f32
    %313 = vector.broadcast %cst_149 : f32 to vector<16x1xf32>
    %314 = arith.divf %312, %313 : vector<16x1xf32>
    %315 = vector.broadcast %314 : vector<16x1xf32> to vector<16x32xf32>
    %316 = arith.subf %306, %315 : vector<16x32xf32>
    %317 = arith.mulf %316, %316 : vector<16x32xf32>
    %cst_150 = arith.constant dense<0.000000e+00> : vector<16xf32>
    %318 = vector.multi_reduction <add>, %317, %cst_150 [1] : vector<16x32xf32> to vector<16xf32>
    %319 = vector.shape_cast %318 : vector<16xf32> to vector<16x1xf32>
    %cst_151 = arith.constant 3.200000e+01 : f32
    %320 = vector.broadcast %cst_151 : f32 to vector<16x1xf32>
    %321 = arith.divf %319, %320 : vector<16x1xf32>
    %322 = vector.broadcast %314 : vector<16x1xf32> to vector<16x32xf32>
    %323 = arith.subf %306, %322 : vector<16x32xf32>
    %cst_152 = arith.constant 9.99999996E-13 : f32
    %324 = vector.broadcast %cst_152 : f32 to vector<16x1xf32>
    %325 = arith.addf %321, %324 : vector<16x1xf32>
    %326 = math.rsqrt %325 : vector<16x1xf32>
    %327 = vector.broadcast %326 : vector<16x1xf32> to vector<16x32xf32>
    %328 = arith.mulf %323, %327 : vector<16x32xf32>
    %329 = vector.broadcast %308 : vector<1x32xf32> to vector<16x32xf32>
    %330 = arith.mulf %328, %329 : vector<16x32xf32>
    %331 = vector.broadcast %310 : vector<1x32xf32> to vector<16x32xf32>
    %332 = arith.addf %330, %331 : vector<16x32xf32>
    %c1_153 = arith.constant 1 : index
    %c0_154 = arith.constant 0 : index
    %c0_155 = arith.constant 0 : index
    %333 = vector.load %arg11[%c1_153, %c0_154, %c0_155] : memref<2x32x64xf32, #tpu.memory_space<vmem>>, vector<1x32x64xf32>
    %334 = vector.shape_cast %333 : vector<1x32x64xf32> to vector<32x64xf32>
    %cst_156 = arith.constant dense<0.000000e+00> : vector<16x64xf32>
    %335 = tpu.matmul %332, %334, %cst_156 {dimension_numbers = #tpu.dot_dimension_numbers<[1], [0], [0], [1], [0, 0, 1, 1], [], []>} : vector<16x32xf32>, vector<32x64xf32>, vector<16x64xf32> -> vector<16x64xf32>
    %c1_157 = arith.constant 1 : index
    %c0_158 = arith.constant 0 : index
    %c0_159 = arith.constant 0 : index
    %336 = vector.load %arg12[%c1_157, %c0_158, %c0_159] : memref<2x1x64xf32, #tpu.memory_space<vmem>>, vector<1x1x64xf32>
    %337 = vector.shape_cast %336 : vector<1x1x64xf32> to vector<1x64xf32>
    %338 = vector.broadcast %337 : vector<1x64xf32> to vector<16x64xf32>
    %339 = arith.addf %335, %338 : vector<16x64xf32>
    %340 = arith.mulf %339, %339 : vector<16x64xf32>
    %341 = arith.mulf %339, %340 : vector<16x64xf32>
    %cst_160 = arith.constant 4.471500e-02 : f32
    %342 = vector.broadcast %cst_160 : f32 to vector<16x64xf32>
    %343 = arith.mulf %342, %341 : vector<16x64xf32>
    %344 = arith.addf %339, %343 : vector<16x64xf32>
    %cst_161 = arith.constant 0.797884583 : f32
    %345 = vector.broadcast %cst_161 : f32 to vector<16x64xf32>
    %346 = arith.mulf %345, %344 : vector<16x64xf32>
    %347 = math.tanh %346 : vector<16x64xf32>
    %cst_162 = arith.constant 1.000000e+00 : f32
    %348 = vector.broadcast %cst_162 : f32 to vector<16x64xf32>
    %349 = arith.addf %348, %347 : vector<16x64xf32>
    %cst_163 = arith.constant 5.000000e-01 : f32
    %350 = vector.broadcast %cst_163 : f32 to vector<16x64xf32>
    %351 = arith.mulf %350, %349 : vector<16x64xf32>
    %352 = arith.mulf %339, %351 : vector<16x64xf32>
    %c1_164 = arith.constant 1 : index
    %c0_165 = arith.constant 0 : index
    %c0_166 = arith.constant 0 : index
    %353 = vector.load %arg13[%c1_164, %c0_165, %c0_166] : memref<2x64x32xf32, #tpu.memory_space<vmem>>, vector<1x64x32xf32>
    %354 = vector.shape_cast %353 : vector<1x64x32xf32> to vector<64x32xf32>
    %cst_167 = arith.constant dense<0.000000e+00> : vector<16x32xf32>
    %355 = tpu.matmul %352, %354, %cst_167 {dimension_numbers = #tpu.dot_dimension_numbers<[1], [0], [0], [1], [0, 0, 1, 1], [], []>} : vector<16x64xf32>, vector<64x32xf32>, vector<16x32xf32> -> vector<16x32xf32>
    %c1_168 = arith.constant 1 : index
    %c0_169 = arith.constant 0 : index
    %c0_170 = arith.constant 0 : index
    %356 = vector.load %arg14[%c1_168, %c0_169, %c0_170] : memref<2x1x32xf32, #tpu.memory_space<vmem>>, vector<1x1x32xf32>
    %357 = vector.shape_cast %356 : vector<1x1x32xf32> to vector<1x32xf32>
    %358 = vector.broadcast %357 : vector<1x32xf32> to vector<16x32xf32>
    %359 = arith.addf %355, %358 : vector<16x32xf32>
    %360 = arith.addf %359, %332 : vector<16x32xf32>
    %c1_171 = arith.constant 1 : index
    %c0_172 = arith.constant 0 : index
    %c0_173 = arith.constant 0 : index
    %361 = vector.load %arg15[%c1_171, %c0_172, %c0_173] : memref<2x1x32xf32, #tpu.memory_space<vmem>>, vector<1x1x32xf32>
    %362 = vector.shape_cast %361 : vector<1x1x32xf32> to vector<1x32xf32>
    %c1_174 = arith.constant 1 : index
    %c0_175 = arith.constant 0 : index
    %c0_176 = arith.constant 0 : index
    %363 = vector.load %arg16[%c1_174, %c0_175, %c0_176] : memref<2x1x32xf32, #tpu.memory_space<vmem>>, vector<1x1x32xf32>
    %364 = vector.shape_cast %363 : vector<1x1x32xf32> to vector<1x32xf32>
    %cst_177 = arith.constant dense<0.000000e+00> : vector<16xf32>
    %365 = vector.multi_reduction <add>, %360, %cst_177 [1] : vector<16x32xf32> to vector<16xf32>
    %366 = vector.shape_cast %365 : vector<16xf32> to vector<16x1xf32>
    %cst_178 = arith.constant 3.200000e+01 : f32
    %367 = vector.broadcast %cst_178 : f32 to vector<16x1xf32>
    %368 = arith.divf %366, %367 : vector<16x1xf32>
    %369 = vector.broadcast %368 : vector<16x1xf32> to vector<16x32xf32>
    %370 = arith.subf %360, %369 : vector<16x32xf32>
    %371 = arith.mulf %370, %370 : vector<16x32xf32>
    %cst_179 = arith.constant dense<0.000000e+00> : vector<16xf32>
    %372 = vector.multi_reduction <add>, %371, %cst_179 [1] : vector<16x32xf32> to vector<16xf32>
    %373 = vector.shape_cast %372 : vector<16xf32> to vector<16x1xf32>
    %cst_180 = arith.constant 3.200000e+01 : f32
    %374 = vector.broadcast %cst_180 : f32 to vector<16x1xf32>
    %375 = arith.divf %373, %374 : vector<16x1xf32>
    %376 = vector.broadcast %368 : vector<16x1xf32> to vector<16x32xf32>
    %377 = arith.subf %360, %376 : vector<16x32xf32>
    %cst_181 = arith.constant 9.99999996E-13 : f32
    %378 = vector.broadcast %cst_181 : f32 to vector<16x1xf32>
    %379 = arith.addf %375, %378 : vector<16x1xf32>
    %380 = math.rsqrt %379 : vector<16x1xf32>
    %381 = vector.broadcast %380 : vector<16x1xf32> to vector<16x32xf32>
    %382 = arith.mulf %377, %381 : vector<16x32xf32>
    %383 = vector.broadcast %362 : vector<1x32xf32> to vector<16x32xf32>
    %384 = arith.mulf %382, %383 : vector<16x32xf32>
    %385 = vector.broadcast %364 : vector<1x32xf32> to vector<16x32xf32>
    %386 = arith.addf %384, %385 : vector<16x32xf32>
    %c0_182 = arith.constant 0 : index
    %c0_183 = arith.constant 0 : index
    %387 = vector.load %arg17[%c0_182, %c0_183] : memref<32x128xf32, #tpu.memory_space<vmem>>, vector<32x128xf32>
    %cst_184 = arith.constant dense<0.000000e+00> : vector<16x128xf32>
    %388 = tpu.matmul %386, %387, %cst_184 {dimension_numbers = #tpu.dot_dimension_numbers<[1], [0], [0], [1], [0, 0, 1, 1], [], []>} : vector<16x32xf32>, vector<32x128xf32>, vector<16x128xf32> -> vector<16x128xf32>
    %c0_185 = arith.constant 0 : index
    %c0_186 = arith.constant 0 : index
    %389 = vector.load %arg18[%c0_185, %c0_186] : memref<1x128xf32, #tpu.memory_space<vmem>>, vector<1x128xf32>
    %390 = vector.broadcast %389 : vector<1x128xf32> to vector<16x128xf32>
    %391 = arith.addf %388, %390 : vector<16x128xf32>
    %c0_187 = arith.constant 0 : index
    %c0_188 = arith.constant 0 : index
    %392 = vector.load %arg19[%c0_187, %c0_188] : memref<16x128xf32, #tpu.memory_space<vmem>>, vector<16x128xf32>
    tpu.vector_store %arg19[%c0_187, %c0_188], %391 {strides = array<i32>} : memref<16x128xf32, #tpu.memory_space<vmem>>, vector<16x128xf32>,
    return
  }
  func.func @transform_0(%arg0: i32) -> (i32, i32) {
    %c0_i32 = arith.constant 0 : i32
    %c0_i32_0 = arith.constant 0 : i32
    %c0_i32_1 = arith.constant 0 : i32
    return %c0_i32, %c0_i32_0 : i32, i32
  }
  func.func @transform_1(%arg0: i32) -> (i32, i32) {
    %c0_i32 = arith.constant 0 : i32
    %c0_i32_0 = arith.constant 0 : i32
    %c0_i32_1 = arith.constant 0 : i32
    return %c0_i32, %c0_i32_0 : i32, i32
  }
  func.func @transform_2(%arg0: i32) -> (i32, i32) {
    %c0_i32 = arith.constant 0 : i32
    %c0_i32_0 = arith.constant 0 : i32
    %c0_i32_1 = arith.constant 0 : i32
    return %c0_i32, %c0_i32_0 : i32, i32
  }
  func.func @transform_3(%arg0: i32) -> (i32, i32) {
    %c0_i32 = arith.constant 0 : i32
    %c0_i32_0 = arith.constant 0 : i32
    %c0_i32_1 = arith.constant 0 : i32
    return %c0_i32, %c0_i32_0 : i32, i32
  }
  func.func @transform_4(%arg0: i32) -> (i32, i32, i32) {
    %c0_i32 = arith.constant 0 : i32
    %c0_i32_0 = arith.constant 0 : i32
    %c0_i32_1 = arith.constant 0 : i32
    %c0_i32_2 = arith.constant 0 : i32
    return %c0_i32, %c0_i32_0, %c0_i32_1 : i32, i32, i32
  }
  func.func @transform_5(%arg0: i32) -> (i32, i32, i32) {
    %c0_i32 = arith.constant 0 : i32
    %c0_i32_0 = arith.constant 0 : i32
    %c0_i32_1 = arith.constant 0 : i32
    %c0_i32_2 = arith.constant 0 : i32
    return %c0_i32, %c0_i32_0, %c0_i32_1 : i32, i32, i32
  }
  func.func @transform_6(%arg0: i32) -> (i32, i32, i32) {
    %c0_i32 = arith.constant 0 : i32
    %c0_i32_0 = arith.constant 0 : i32
    %c0_i32_1 = arith.constant 0 : i32
    %c0_i32_2 = arith.constant 0 : i32
    return %c0_i32, %c0_i32_0, %c0_i32_1 : i32, i32, i32
  }
  func.func @transform_7(%arg0: i32) -> (i32, i32, i32) {
    %c0_i32 = arith.constant 0 : i32
    %c0_i32_0 = arith.constant 0 : i32
    %c0_i32_1 = arith.constant 0 : i32
    %c0_i32_2 = arith.constant 0 : i32
    return %c0_i32, %c0_i32_0, %c0_i32_1 : i32, i32, i32
  }
  func.func @transform_8(%arg0: i32) -> (i32, i32, i32) {
    %c0_i32 = arith.constant 0 : i32
    %c0_i32_0 = arith.constant 0 : i32
    %c0_i32_1 = arith.constant 0 : i32
    %c0_i32_2 = arith.constant 0 : i32
    return %c0_i32, %c0_i32_0, %c0_i32_1 : i32, i32, i32
  }
  func.func @transform_9(%arg0: i32) -> (i32, i32, i32) {
    %c0_i32 = arith.constant 0 : i32
    %c0_i32_0 = arith.constant 0 : i32
    %c0_i32_1 = arith.constant 0 : i32
    %c0_i32_2 = arith.constant 0 : i32
    return %c0_i32, %c0_i32_0, %c0_i32_1 : i32, i32, i32
  }
  func.func @transform_10(%arg0: i32) -> (i32, i32, i32) {
    %c0_i32 = arith.constant 0 : i32
    %c0_i32_0 = arith.constant 0 : i32
    %c0_i32_1 = arith.constant 0 : i32
    %c0_i32_2 = arith.constant 0 : i32
    return %c0_i32, %c0_i32_0, %c0_i32_1 : i32, i32, i32
  }
  func.func @transform_11(%arg0: i32) -> (i32, i32, i32) {
    %c0_i32 = arith.constant 0 : i32
    %c0_i32_0 = arith.constant 0 : i32
    %c0_i32_1 = arith.constant 0 : i32
    %c0_i32_2 = arith.constant 0 : i32
    return %c0_i32, %c0_i32_0, %c0_i32_1 : i32, i32, i32
  }
  func.func @transform_12(%arg0: i32) -> (i32, i32, i32) {
    %c0_i32 = arith.constant 0 : i32
    %c0_i32_0 = arith.constant 0 : i32
    %c0_i32_1 = arith.constant 0 : i32
    %c0_i32_2 = arith.constant 0 : i32
    return %c0_i32, %c0_i32_0, %c0_i32_1 : i32, i32, i32
  }
  func.func @transform_13(%arg0: i32) -> (i32, i32, i32) {
    %c0_i32 = arith.constant 0 : i32
    %c0_i32_0 = arith.constant 0 : i32
    %c0_i32_1 = arith.constant 0 : i32
    %c0_i32_2 = arith.constant 0 : i32
    return %c0_i32, %c0_i32_0, %c0_i32_1 : i32, i32, i32
  }
  func.func @transform_14(%arg0: i32) -> (i32, i32, i32) {
    %c0_i32 = arith.constant 0 : i32
    %c0_i32_0 = arith.constant 0 : i32
    %c0_i32_1 = arith.constant 0 : i32
    %c0_i32_2 = arith.constant 0 : i32
    return %c0_i32, %c0_i32_0, %c0_i32_1 : i32, i32, i32
  }
  func.func @transform_15(%arg0: i32) -> (i32, i32, i32) {
    %c0_i32 = arith.constant 0 : i32
    %c0_i32_0 = arith.constant 0 : i32
    %c0_i32_1 = arith.constant 0 : i32
    %c0_i32_2 = arith.constant 0 : i32
    return %c0_i32, %c0_i32_0, %c0_i32_1 : i32, i32, i32
  }
  func.func @transform_16(%arg0: i32) -> (i32, i32) {
    %c0_i32 = arith.constant 0 : i32
    %c0_i32_0 = arith.constant 0 : i32
    %c0_i32_1 = arith.constant 0 : i32
    return %c0_i32, %c0_i32_0 : i32, i32
  }
  func.func @transform_17(%arg0: i32) -> (i32, i32) {
    %c0_i32 = arith.constant 0 : i32
    %c0_i32_0 = arith.constant 0 : i32
    %c0_i32_1 = arith.constant 0 : i32
    return %c0_i32, %c0_i32_0 : i32, i32
  }
  func.func @transform_18(%arg0: i32) -> (i32, i32) {
    %c0_i32 = arith.constant 0 : i32
    %c0_i32_0 = arith.constant 0 : i32
    %c0_i32_1 = arith.constant 0 : i32
    return %c0_i32, %c0_i32_0 : i32, i32
  }
}

</mosaic_0001>

<llo_original>
// kernel: model_bert_forward.1
$region0: #{model_bert_forward.1}
  #allocation0 [shape = 'u32[]', space=smem, size = 0x4, offset = 0x4, fixed_abs, tag = 'smem constant byte address 0x4 - core index']
  #allocation1 [shape = 'u32[144,128]{1,0:T(1,128)}', space=vmem, size = 0x12000, scoped, tag = 'internal scratch']
  #allocation2 [shape = 'f32[16,32]{1,0:T(8,128)}', space=vmem, size = 0x2000, scoped, tag = 'scratch operand']
  %s0 = inlined_call_operand.vmem [shape: f32[16,32], index: 0, kind: input, shape index: {}]
  %s1 = inlined_call_operand.vmem [shape: f32[2,8], index: 1, kind: input, shape index: {}]
  %s2 = inlined_call_operand.vmem [shape: f32[1,32], index: 2, kind: input, shape index: {}]
  %s3 = inlined_call_operand.vmem [shape: f32[1,32], index: 3, kind: input, shape index: {}]
  %s4 = inlined_call_operand.vmem [shape: f32[2,32,96], index: 4, kind: input, shape index: {}]
  %s5 = inlined_call_operand.vmem [shape: f32[2,1,96], index: 5, kind: input, shape index: {}]
  %s6 = inlined_call_operand.vmem [shape: f32[2,32,32], index: 6, kind: input, shape index: {}]
  %s7 = inlined_call_operand.vmem [shape: f32[2,1,32], index: 7, kind: input, shape index: {}]
  %s8 = inlined_call_operand.vmem [shape: f32[2,1,32], index: 8, kind: input, shape index: {}]
  %s9 = inlined_call_operand.vmem [shape: f32[2,1,32], index: 9, kind: input, shape index: {}]
  %s10 = inlined_call_operand.vmem [shape: f32[2,32,64], index: 10, kind: input, shape index: {}]
  %s11 = inlined_call_operand.vmem [shape: f32[2,1,64], index: 11, kind: input, shape index: {}]
  %s12 = inlined_call_operand.vmem [shape: f32[2,64,32], index: 12, kind: input, shape index: {}]
  %s13 = inlined_call_operand.vmem [shape: f32[2,1,32], index: 13, kind: input, shape index: {}]
  %s14 = inlined_call_operand.vmem [shape: f32[2,1,32], index: 14, kind: input, shape index: {}]
  %s15 = inlined_call_operand.vmem [shape: f32[2,1,32], index: 15, kind: input, shape index: {}]
  %s16 = inlined_call_operand.vmem [shape: f32[32,128], index: 16, kind: input, shape index: {}]
  %s17 = inlined_call_operand.vmem [shape: f32[1,128], index: 17, kind: input, shape index: {}]
  %s18 = inlined_call_operand.vmem [shape: f32[16,128], index: 18, kind: output, shape index: {}]
  %s19 = sld [smem:[#allocation0]]
  $region82: #{model_bert_forward.1} parent=0
    _
  %s21 = ssub.s32 1, %s19
  %s22 = scalar_select 0, %s21, %s19
  // Predicated region
  $region2: #{model_bert_forward.1} parent=0 // pred_check
    _
  $region3: #{model_bert_forward.1} parent=0 // pred_check_branch
    %24 = sbr.rel (0) target = $region5
  $region4: #{model_bert_forward.1} parent=0 // pred_region
    _
  $region5: #{model_bert_forward.1} parent=0 // pred_fallthru
    _
  // Predicated region
  $region6: #{model_bert_forward.1} parent=0 // pred_check
    _
  $region7: #{model_bert_forward.1} parent=0 // pred_check_branch
    %26 = sbr.rel (0) target = $region9
  $region8: #{model_bert_forward.1} parent=0 // pred_region
    _
  $region9: #{model_bert_forward.1} parent=0 // pred_fallthru
    _
  // Predicated region
  $region10: #{model_bert_forward.1} parent=0 // pred_check
    _
  $region11: #{model_bert_forward.1} parent=0 // pred_check_branch
    %28 = sbr.rel (0) target = $region13
  $region12: #{model_bert_forward.1} parent=0 // pred_region
    _
  $region13: #{model_bert_forward.1} parent=0 // pred_fallthru
    _
  // Predicated region
  $region14: #{model_bert_forward.1} parent=0 // pred_check
    _
  $region15: #{model_bert_forward.1} parent=0 // pred_check_branch
    %30 = sbr.rel (0) target = $region17
  $region16: #{model_bert_forward.1} parent=0 // pred_region
    _
  $region17: #{model_bert_forward.1} parent=0 // pred_fallthru
    _
  // Predicated region
  $region18: #{model_bert_forward.1} parent=0 // pred_check
    _
  $region19: #{model_bert_forward.1} parent=0 // pred_check_branch
    %32 = sbr.rel (0) target = $region21
  $region20: #{model_bert_forward.1} parent=0 // pred_region
    _
  $region21: #{model_bert_forward.1} parent=0 // pred_fallthru
    _
  // Predicated region
  $region22: #{model_bert_forward.1} parent=0 // pred_check
    _
  $region23: #{model_bert_forward.1} parent=0 // pred_check_branch
    %34 = sbr.rel (0) target = $region25
  $region24: #{model_bert_forward.1} parent=0 // pred_region
    _
  $region25: #{model_bert_forward.1} parent=0 // pred_fallthru
    _
  // Predicated region
  $region26: #{model_bert_forward.1} parent=0 // pred_check
    _
  $region27: #{model_bert_forward.1} parent=0 // pred_check_branch
    %36 = sbr.rel (0) target = $region29
  $region28: #{model_bert_forward.1} parent=0 // pred_region
    _
  $region29: #{model_bert_forward.1} parent=0 // pred_fallthru
    _
  // Predicated region
  $region30: #{model_bert_forward.1} parent=0 // pred_check
    _
  $region31: #{model_bert_forward.1} parent=0 // pred_check_branch
    %38 = sbr.rel (0) target = $region33
  $region32: #{model_bert_forward.1} parent=0 // pred_region
    _
  $region33: #{model_bert_forward.1} parent=0 // pred_fallthru
    _
  // Predicated region
  $region34: #{model_bert_forward.1} parent=0 // pred_check
    _
  $region35: #{model_bert_forward.1} parent=0 // pred_check_branch
    %40 = sbr.rel (0) target = $region37
  $region36: #{model_bert_forward.1} parent=0 // pred_region
    _
  $region37: #{model_bert_forward.1} parent=0 // pred_fallthru
    _
  // Predicated region
  $region38: #{model_bert_forward.1} parent=0 // pred_check
    _
  $region39: #{model_bert_forward.1} parent=0 // pred_check_branch
    %42 = sbr.rel (0) target = $region41
  $region40: #{model_bert_forward.1} parent=0 // pred_region
    _
  $region41: #{model_bert_forward.1} parent=0 // pred_fallthru
    _
  // Predicated region
  $region42: #{model_bert_forward.1} parent=0 // pred_check
    _
  $region43: #{model_bert_forward.1} parent=0 // pred_check_branch
    %44 = sbr.rel (0) target = $region45
  $region44: #{model_bert_forward.1} parent=0 // pred_region
    _
  $region45: #{model_bert_forward.1} parent=0 // pred_fallthru
    _
  // Predicated region
  $region46: #{model_bert_forward.1} parent=0 // pred_check
    _
  $region47: #{model_bert_forward.1} parent=0 // pred_check_branch
    %46 = sbr.rel (0) target = $region49
  $region48: #{model_bert_forward.1} parent=0 // pred_region
    _
  $region49: #{model_bert_forward.1} parent=0 // pred_fallthru
    _
  // Predicated region
  $region50: #{model_bert_forward.1} parent=0 // pred_check
    _
  $region51: #{model_bert_forward.1} parent=0 // pred_check_branch
    %48 = sbr.rel (0) target = $region53
  $region52: #{model_bert_forward.1} parent=0 // pred_region
    _
  $region53: #{model_bert_forward.1} parent=0 // pred_fallthru
    _
  // Predicated region
  $region54: #{model_bert_forward.1} parent=0 // pred_check
    _
  $region55: #{model_bert_forward.1} parent=0 // pred_check_branch
    %50 = sbr.rel (0) target = $region57
  $region56: #{model_bert_forward.1} parent=0 // pred_region
    _
  $region57: #{model_bert_forward.1} parent=0 // pred_fallthru
    _
  // Predicated region
  $region58: #{model_bert_forward.1} parent=0 // pred_check
    _
  $region59: #{model_bert_forward.1} parent=0 // pred_check_branch
    %52 = sbr.rel (0) target = $region61
  $region60: #{model_bert_forward.1} parent=0 // pred_region
    _
  $region61: #{model_bert_forward.1} parent=0 // pred_fallthru
    _
  // Predicated region
  $region62: #{model_bert_forward.1} parent=0 // pred_check
    _
  $region63: #{model_bert_forward.1} parent=0 // pred_check_branch
    %54 = sbr.rel (0) target = $region65
  $region64: #{model_bert_forward.1} parent=0 // pred_region
    _
  $region65: #{model_bert_forward.1} parent=0 // pred_fallthru
    _
  // Predicated region
  $region66: #{model_bert_forward.1} parent=0 // pred_check
    _
  $region67: #{model_bert_forward.1} parent=0 // pred_check_branch
    %56 = sbr.rel (0) target = $region69
  $region68: #{model_bert_forward.1} parent=0 // pred_region
    _
  $region69: #{model_bert_forward.1} parent=0 // pred_fallthru
    _
  // Predicated region
  $region70: #{model_bert_forward.1} parent=0 // pred_check
    _
  $region71: #{model_bert_forward.1} parent=0 // pred_check_branch
    %58 = sbr.rel (0) target = $region73
  $region72: #{model_bert_forward.1} parent=0 // pred_region
    _
  $region73: #{model_bert_forward.1} parent=0 // pred_fallthru
    _
  %v59 = vld [vmem:[%s0] sm:$0xff]
  %v60 = vld [vmem:[%s0 + $0x8] sm:$0xff]
  %v61 = vld [vmem:[%s2] sm:$0x1]
  %v62 = vld [vmem:[%s3] sm:$0x1]
  %vm63 = vcmask 261120
  %v64 = vsel %vm63, %v59, 0.0
  %65 = vadd.xlane.f32.xlu0 %v64
  %v66 = vpop.xlane.xlu0 %65
  %v67 = vsel %vm63, %v60, 0.0
  %68 = vadd.xlane.f32.xlu0 %v67
  %v69 = vpop.xlane.xlu0 %68
  %v70 = vrcp.pop 32.0
  %v71 = vmul.f32 %v66, %v70
  %v72 = vmul.f32 %v69, %v70
  %v73 = vsub.f32 %v59, %v71
  %v74 = vsub.f32 %v60, %v72
  %v75 = vmul.f32 %v73, %v73
  %v76 = vmul.f32 %v74, %v74
  %v77 = vsel %vm63, %v75, 0.0
  %78 = vadd.xlane.f32.xlu0 %v77
  %v79 = vpop.xlane.xlu0 %78
  %v80 = vsel %vm63, %v76, 0.0
  %81 = vadd.xlane.f32.xlu0 %v80
  %v82 = vpop.xlane.xlu0 %81
  %v83 = vmul.f32 %v79, %v70
  %v84 = vmul.f32 %v82, %v70
  %v85 = vadd.f32 %v83, 1e-12
  %v86 = vadd.f32 %v84, 1e-12
  %v87 = vrsqrt.pop %v85
  %v88 = vrsqrt.pop %v86
  %v89 = vmul.f32 %v73, %v87
  %v90 = vmul.f32 %v74, %v88
  %v92 = vlaneseq
  %v93 = vshrl.u32 %v92, 7
  %v94 = vsub.s32 0, %v93
  %v95 = vrot.slane %v61, %v94
  %v97 = vmul.f32 %v89, %v95
  %v98 = vmul.f32 %v90, %v95
  %v100 = vlaneseq
  %v101 = vshrl.u32 %v100, 7
  %v102 = vsub.s32 0, %v101
  %v103 = vrot.slane %v62, %v102
  %v105 = vadd.f32 %v97, %v103
  %v106 = vadd.f32 %v98, %v103
  %v107 = vld [vmem:[%s4] sm:$0xff]
  %v108 = vld [vmem:[%s4 + $0x8] sm:$0xff]
  %v109 = vld [vmem:[%s4 + $0x10] sm:$0xff]
  %v110 = vld [vmem:[%s4 + $0x18] sm:$0xff]
  %v111 = vld [vmem:[%s5] sm:$0x1]
  %v113 = vlaneseq
  %v114 = vshrl.u32 %v113, 7
  %v115 = vsub.s32 0, %v114
  %v116 = vrot.slane %v111, %v115
  %v119 = vsel %vm63, %v105, 0
  %v122 = vsel %vm63, %v106, 0
  %124 = vmatprep.subr.mxu0 0.0
  %125 = vmatpush1.msra.mxu0 %v107
  %126 = vmatprep.subr.mxu0 0.0
  %127 = vmatpush1.msra.mxu0 %v108
  %128 = vmatprep.subr.mxu0 0.0
  %129 = vmatpush1.msra.mxu0 %v109
  %130 = vmatprep.subr.mxu0 0.0
  %131 = vmatpush1.msra.mxu0 %v110
  %132 = vmatprep.subr.mxu0 0.0
  %133 = vmatpush1.msra.mxu0 0.0
  %134 = vmatprep.subr.mxu0 0.0
  %135 = vmatpush1.msra.mxu0 0.0
  %136 = vmatprep.subr.mxu0 0.0
  %137 = vmatpush1.msra.mxu0 0.0
  %138 = vmatprep.subr.mxu0 0.0
  %139 = vmatpush1.msra.mxu0 0.0
  %140 = vmatprep.subr.mxu0 0.0
  %141 = vmatpush1.msra.mxu0 0.0
  %142 = vmatprep.subr.mxu0 0.0
  %143 = vmatpush1.msra.mxu0 0.0
  %144 = vmatprep.subr.mxu0 0.0
  %145 = vmatpush1.msra.mxu0 0.0
  %146 = vmatprep.subr.mxu0 0.0
  %147 = vmatpush1.msra.mxu0 0.0
  %148 = vmatprep.subr.mxu0 0.0
  %149 = vmatpush1.msra.mxu0 0.0
  %150 = vmatprep.subr.mxu0 0.0
  %151 = vmatpush1.msra.mxu0 0.0
  %152 = vmatprep.subr.mxu0 0.0
  %153 = vmatpush1.msra.mxu0 0.0
  %154 = vmatprep.subr.mxu0 0.0
  %155 = vmatpush1.msra.mxu0 0.0
  %156 = vmatprep.subr.mxu0 0.0
  %157 = vmatpush1.msra.mxu0 0.0
  %158 = vmatprep.subr.mxu0 0.0
  %159 = vmatpush1.msra.mxu0 0.0
  %160 = vmatprep.subr.mxu0 0.0
  %161 = vmatpush1.msra.mxu0 0.0
  %162 = vmatprep.subr.mxu0 0.0
  %163 = vmatpush1.msra.mxu0 0.0
  %164 = vmatprep.subr.mxu0 0.0
  %165 = vmatpush1.msra.mxu0 0.0
  %166 = vmatprep.subr.mxu0 0.0
  %167 = vmatpush1.msra.mxu0 0.0
  %168 = vmatprep.subr.mxu0 0.0
  %169 = vmatpush1.msra.mxu0 0.0
  %170 = vmatprep.subr.mxu0 0.0
  %171 = vmatpush1.msra.mxu0 0.0
  %172 = vmatprep.subr.mxu0 0.0
  %173 = vmatpush1.msra.mxu0 0.0
  %174 = vmatprep.subr.mxu0 0.0
  %175 = vmatpush1.msra.mxu0 0.0
  %176 = vmatprep.subr.mxu0 0.0
  %177 = vmatpush1.msra.mxu0 0.0
  %178 = vmatprep.subr.mxu0 0.0
  %179 = vmatpush1.msra.mxu0 0.0
  %180 = vmatprep.subr.mxu0 0.0
  %181 = vmatpush1.msra.mxu0 0.0
  %182 = vmatprep.subr.mxu0 0.0
  %183 = vmatpush1.msra.mxu0 0.0
  %184 = vmatprep.subr.mxu0 0.0
  %185 = vmatpush1.msra.mxu0 0.0
  %186 = vmatprep.subr.mxu0 0.0
  %187 = vmatpush1.msra.mxu0 0.0
  %188 = vmatprep.mubr.f32.mxu0 0.0
  %189 = vmatmul.mubr.f32.gmra.mrb[0].mxu0 %v119
  %v190 = vpop.f32.mrb[0].mxu0
  %v191 = vadd.f32 %v116, %v190
  %v192 = vpop.f32.mrb[0].mxu0
  %193 = vmatprep.mubr.f32.mxu0 0.0
  %194 = vmatmul.mubr.f32.gmra.mrb[0].mxu0 %v122
  %v195 = vpop.f32.mrb[0].mxu0
  %v196 = vadd.f32 %v116, %v195
  %v197 = vpop.f32.mrb[0].mxu0
  %198 = vdwg.mxu0
  %v199 = vld [vmem:[%s1] sm:$0x1]
  %201 = vrot.lane.b32.xlu0 %v191, 96
  %v202 = vpop.permute.xlu0 %201
  %vm203 = vcmask 130048
  %v204 = vsel %vm203, %v191, 0
  %v206 = vsel %vm203, %v202, 0
  %208 = vmatprep.subr.mxu0 0.0
  %209 = vmatpush1.xpose.msra.mxu0 %v206
  %210 = vmatprep.subr.mxu0 0.0
  %211 = vmatpush1.xpose.msra.mxu0 0.0
  %212 = vmatprep.subr.mxu0 0.0
  %213 = vmatpush1.xpose.msra.mxu0 0.0
  %214 = vmatprep.subr.mxu0 0.0
  %215 = vmatpush1.xpose.msra.mxu0 0.0
  %216 = vmatprep.subr.mxu0 0.0
  %217 = vmatpush1.xpose.msra.mxu0 0.0
  %218 = vmatprep.subr.mxu0 0.0
  %219 = vmatpush1.xpose.msra.mxu0 0.0
  %220 = vmatprep.subr.mxu0 0.0
  %221 = vmatpush1.xpose.msra.mxu0 0.0
  %222 = vmatprep.subr.mxu0 0.0
  %223 = vmatpush1.xpose.msra.mxu0 0.0
  %224 = vmatprep.subr.mxu0 0.0
  %225 = vmatpush1.xpose.msra.mxu0 0.0
  %226 = vmatprep.subr.mxu0 0.0
  %227 = vmatpush1.xpose.msra.mxu0 0.0
  %228 = vmatprep.subr.mxu0 0.0
  %229 = vmatpush1.xpose.msra.mxu0 0.0
  %230 = vmatprep.subr.mxu0 0.0
  %231 = vmatpush1.xpose.msra.mxu0 0.0
  %232 = vmatprep.subr.mxu0 0.0
  %233 = vmatpush1.xpose.msra.mxu0 0.0
  %234 = vmatprep.subr.mxu0 0.0
  %235 = vmatpush1.xpose.msra.mxu0 0.0
  %236 = vmatprep.subr.mxu0 0.0
  %237 = vmatpush1.xpose.msra.mxu0 0.0
  %238 = vmatprep.subr.mxu0 0.0
  %239 = vmatpush1.xpose.msra.mxu0 0.0
  %240 = vmatprep.subr.mxu0 0.0
  %241 = vmatpush1.xpose.msra.mxu0 0.0
  %242 = vmatprep.subr.mxu0 0.0
  %243 = vmatpush1.xpose.msra.mxu0 0.0
  %244 = vmatprep.subr.mxu0 0.0
  %245 = vmatpush1.xpose.msra.mxu0 0.0
  %246 = vmatprep.subr.mxu0 0.0
  %247 = vmatpush1.xpose.msra.mxu0 0.0
  %248 = vmatprep.subr.mxu0 0.0
  %249 = vmatpush1.xpose.msra.mxu0 0.0
  %250 = vmatprep.subr.mxu0 0.0
  %251 = vmatpush1.xpose.msra.mxu0 0.0
  %252 = vmatprep.subr.mxu0 0.0
  %253 = vmatpush1.xpose.msra.mxu0 0.0
  %254 = vmatprep.subr.mxu0 0.0
  %255 = vmatpush1.xpose.msra.mxu0 0.0
  %256 = vmatprep.subr.mxu0 0.0
  %257 = vmatpush1.xpose.msra.mxu0 0.0
  %258 = vmatprep.subr.mxu0 0.0
  %259 = vmatpush1.xpose.msra.mxu0 0.0
  %260 = vmatprep.subr.mxu0 0.0
  %261 = vmatpush1.xpose.msra.mxu0 0.0
  %262 = vmatprep.subr.mxu0 0.0
  %263 = vmatpush1.xpose.msra.mxu0 0.0
  %264 = vmatprep.subr.mxu0 0.0
  %265 = vmatpush1.xpose.msra.mxu0 0.0
  %266 = vmatprep.subr.mxu0 0.0
  %267 = vmatpush1.xpose.msra.mxu0 0.0
  %268 = vmatprep.subr.mxu0 0.0
  %269 = vmatpush1.xpose.msra.mxu0 0.0
  %270 = vmatprep.subr.mxu0 0.0
  %271 = vmatpush1.xpose.msra.mxu0 0.0
  %272 = vmatprep.mubr.f32.mxu0 0.0
  %273 = vmatmul.mubr.f32.gmra.mrb[0].mxu0 %v204
  %v274 = vpop.f32.mrb[0].mxu0
  %v275 = vadd.f32 0.0, %v274
  %v276 = vpop.f32.mrb[0].mxu0
  %277 = vdwg.mxu0
  %v278 = vmul.f32 %v275, 0.25
  %v279 = vlaneseq
  %v280 = vshrl.u32 %v279, 7
  %v281 = vsub.s32 0, %v280
  %v282 = vrot.slane %v199, %v281
  %v283 = vadd.f32 %v278, %v282
  %vm284 = vcmask 64512
  %v285 = vsel %vm284, %v283, -inf
  %286 = vmax.xlane.f32.xlu0 %v285
  %v287 = vpop.xlane.xlu0 %286
  %v288 = vsub.f32 %v283, %v287
  %v289 = vmul.f32 %v288, 1.442695
  %v290 = vpow.pop %v289
  %v291 = vsel %vm284, %v290, 0.0
  %292 = vadd.xlane.f32.xlu0 %v291
  %v293 = vpop.xlane.xlu0 %292
  %v294 = vrcp.pop %v293
  %v295 = vmul.f32 %v290, %v294
  %296 = vrot.lane.b32.xlu0 %v191, 64
  %v297 = vpop.permute.xlu0 %296
  %v300 = vsel %vm284, %v295, 0
  %302 = vmatprep.subr.mxu0 0.0
  %303 = vmatpush1.msra.mxu0 %v297
  %304 = vmatprep.subr.mxu0 0.0
  %305 = vmatpush1.msra.mxu0 0.0
  %306 = vmatprep.subr.mxu0 0.0
  %307 = vmatpush1.msra.mxu0 0.0
  %308 = vmatprep.subr.mxu0 0.0
  %309 = vmatpush1.msra.mxu0 0.0
  %310 = vmatprep.subr.mxu0 0.0
  %311 = vmatpush1.msra.mxu0 0.0
  %312 = vmatprep.subr.mxu0 0.0
  %313 = vmatpush1.msra.mxu0 0.0
  %314 = vmatprep.subr.mxu0 0.0
  %315 = vmatpush1.msra.mxu0 0.0
  %316 = vmatprep.subr.mxu0 0.0
  %317 = vmatpush1.msra.mxu0 0.0
  %318 = vmatprep.subr.mxu0 0.0
  %319 = vmatpush1.msra.mxu0 0.0
  %320 = vmatprep.subr.mxu0 0.0
  %321 = vmatpush1.msra.mxu0 0.0
  %322 = vmatprep.subr.mxu0 0.0
  %323 = vmatpush1.msra.mxu0 0.0
  %324 = vmatprep.subr.mxu0 0.0
  %325 = vmatpush1.msra.mxu0 0.0
  %326 = vmatprep.subr.mxu0 0.0
  %327 = vmatpush1.msra.mxu0 0.0
  %328 = vmatprep.subr.mxu0 0.0
  %329 = vmatpush1.msra.mxu0 0.0
  %330 = vmatprep.subr.mxu0 0.0
  %331 = vmatpush1.msra.mxu0 0.0
  %332 = vmatprep.subr.mxu0 0.0
  %333 = vmatpush1.msra.mxu0 0.0
  %334 = vmatprep.subr.mxu0 0.0
  %335 = vmatpush1.msra.mxu0 0.0
  %336 = vmatprep.subr.mxu0 0.0
  %337 = vmatpush1.msra.mxu0 0.0
  %338 = vmatprep.subr.mxu0 0.0
  %339 = vmatpush1.msra.mxu0 0.0
  %340 = vmatprep.subr.mxu0 0.0
  %341 = vmatpush1.msra.mxu0 0.0
  %342 = vmatprep.subr.mxu0 0.0
  %343 = vmatpush1.msra.mxu0 0.0
  %344 = vmatprep.subr.mxu0 0.0
  %345 = vmatpush1.msra.mxu0 0.0
  %346 = vmatprep.subr.mxu0 0.0
  %347 = vmatpush1.msra.mxu0 0.0
  %348 = vmatprep.subr.mxu0 0.0
  %349 = vmatpush1.msra.mxu0 0.0
  %350 = vmatprep.subr.mxu0 0.0
  %351 = vmatpush1.msra.mxu0 0.0
  %352 = vmatprep.subr.mxu0 0.0
  %353 = vmatpush1.msra.mxu0 0.0
  %354 = vmatprep.subr.mxu0 0.0
  %355 = vmatpush1.msra.mxu0 0.0
  %356 = vmatprep.subr.mxu0 0.0
  %357 = vmatpush1.msra.mxu0 0.0
  %358 = vmatprep.subr.mxu0 0.0
  %359 = vmatpush1.msra.mxu0 0.0
  %360 = vmatprep.subr.mxu0 0.0
  %361 = vmatpush1.msra.mxu0 0.0
  %362 = vmatprep.subr.mxu0 0.0
  %363 = vmatpush1.msra.mxu0 0.0
  %364 = vmatprep.subr.mxu0 0.0
  %365 = vmatpush1.msra.mxu0 0.0
  %366 = vmatprep.mubr.f32.mxu0 0.0
  %367 = vmatmul.mubr.f32.gmra.mrb[0].mxu0 %v300
  %v368 = vpop.f32.mrb[0].mxu0
  %v369 = vadd.f32 0.0, %v368
  %v370 = vpop.f32.mrb[0].mxu0
  %371 = vdwg.mxu0
  %372 = vst.msk [vmem:[#allocation2] sm:$0xff] %vm203, %v369
  %373 = vrot.lane.b32.xlu0 %v191, 112
  %v374 = vpop.permute.xlu0 %373
  %375 = vrot.lane.b32.xlu0 %v191, 80
  %v376 = vpop.permute.xlu0 %375
  %v377 = vsel %vm203, %v374, 0
  %v379 = vsel %vm203, %v376, 0
  %381 = vmatprep.subr.mxu0 0.0
  %382 = vmatpush1.xpose.msra.mxu0 %v379
  %383 = vmatprep.subr.mxu0 0.0
  %384 = vmatpush1.xpose.msra.mxu0 0.0
  %385 = vmatprep.subr.mxu0 0.0
  %386 = vmatpush1.xpose.msra.mxu0 0.0
  %387 = vmatprep.subr.mxu0 0.0
  %388 = vmatpush1.xpose.msra.mxu0 0.0
  %389 = vmatprep.subr.mxu0 0.0
  %390 = vmatpush1.xpose.msra.mxu0 0.0
  %391 = vmatprep.subr.mxu0 0.0
  %392 = vmatpush1.xpose.msra.mxu0 0.0
  %393 = vmatprep.subr.mxu0 0.0
  %394 = vmatpush1.xpose.msra.mxu0 0.0
  %395 = vmatprep.subr.mxu0 0.0
  %396 = vmatpush1.xpose.msra.mxu0 0.0
  %397 = vmatprep.subr.mxu0 0.0
  %398 = vmatpush1.xpose.msra.mxu0 0.0
  %399 = vmatprep.subr.mxu0 0.0
  %400 = vmatpush1.xpose.msra.mxu0 0.0
  %401 = vmatprep.subr.mxu0 0.0
  %402 = vmatpush1.xpose.msra.mxu0 0.0
  %403 = vmatprep.subr.mxu0 0.0
  %404 = vmatpush1.xpose.msra.mxu0 0.0
  %405 = vmatprep.subr.mxu0 0.0
  %406 = vmatpush1.xpose.msra.mxu0 0.0
  %407 = vmatprep.subr.mxu0 0.0
  %408 = vmatpush1.xpose.msra.mxu0 0.0
  %409 = vmatprep.subr.mxu0 0.0
  %410 = vmatpush1.xpose.msra.mxu0 0.0
  %411 = vmatprep.subr.mxu0 0.0
  %412 = vmatpush1.xpose.msra.mxu0 0.0
  %413 = vmatprep.subr.mxu0 0.0
  %414 = vmatpush1.xpose.msra.mxu0 0.0
  %415 = vmatprep.subr.mxu0 0.0
  %416 = vmatpush1.xpose.msra.mxu0 0.0
  %417 = vmatprep.subr.mxu0 0.0
  %418 = vmatpush1.xpose.msra.mxu0 0.0
  %419 = vmatprep.subr.mxu0 0.0
  %420 = vmatpush1.xpose.msra.mxu0 0.0
  %421 = vmatprep.subr.mxu0 0.0
  %422 = vmatpush1.xpose.msra.mxu0 0.0
  %423 = vmatprep.subr.mxu0 0.0
  %424 = vmatpush1.xpose.msra.mxu0 0.0
  %425 = vmatprep.subr.mxu0 0.0
  %426 = vmatpush1.xpose.msra.mxu0 0.0
  %427 = vmatprep.subr.mxu0 0.0
  %428 = vmatpush1.xpose.msra.mxu0 0.0
  %429 = vmatprep.subr.mxu0 0.0
  %430 = vmatpush1.xpose.msra.mxu0 0.0
  %431 = vmatprep.subr.mxu0 0.0
  %432 = vmatpush1.xpose.msra.mxu0 0.0
  %433 = vmatprep.subr.mxu0 0.0
  %434 = vmatpush1.xpose.msra.mxu0 0.0
  %435 = vmatprep.subr.mxu0 0.0
  %436 = vmatpush1.xpose.msra.mxu0 0.0
  %437 = vmatprep.subr.mxu0 0.0
  %438 = vmatpush1.xpose.msra.mxu0 0.0
  %439 = vmatprep.subr.mxu0 0.0
  %440 = vmatpush1.xpose.msra.mxu0 0.0
  %441 = vmatprep.subr.mxu0 0.0
  %442 = vmatpush1.xpose.msra.mxu0 0.0
  %443 = vmatprep.subr.mxu0 0.0
  %444 = vmatpush1.xpose.msra.mxu0 0.0
  %445 = vmatprep.mubr.f32.mxu0 0.0
  %446 = vmatmul.mubr.f32.gmra.mrb[0].mxu0 %v377
  %v447 = vpop.f32.mrb[0].mxu0
  %v448 = vadd.f32 0.0, %v447
  %v449 = vpop.f32.mrb[0].mxu0
  %450 = vdwg.mxu0
  %v451 = vmul.f32 %v448, 0.25
  %v452 = vadd.f32 %v451, %v282
  %v453 = vsel %vm284, %v452, -inf
  %454 = vmax.xlane.f32.xlu0 %v453
  %v455 = vpop.xlane.xlu0 %454
  %v456 = vsub.f32 %v452, %v455
  %v457 = vmul.f32 %v456, 1.442695
  %v458 = vpow.pop %v457
  %v459 = vsel %vm284, %v458, 0.0
  %460 = vadd.xlane.f32.xlu0 %v459
  %v461 = vpop.xlane.xlu0 %460
  %v462 = vrcp.pop %v461
  %v463 = vmul.f32 %v458, %v462
  %464 = vrot.lane.b32.xlu0 %v191, 48
  %v465 = vpop.permute.xlu0 %464
  %v468 = vsel %vm284, %v463, 0
  %470 = vmatprep.subr.mxu0 0.0
  %471 = vmatpush1.msra.mxu0 %v465
  %472 = vmatprep.subr.mxu0 0.0
  %473 = vmatpush1.msra.mxu0 0.0
  %474 = vmatprep.subr.mxu0 0.0
  %475 = vmatpush1.msra.mxu0 0.0
  %476 = vmatprep.subr.mxu0 0.0
  %477 = vmatpush1.msra.mxu0 0.0
  %478 = vmatprep.subr.mxu0 0.0
  %479 = vmatpush1.msra.mxu0 0.0
  %480 = vmatprep.subr.mxu0 0.0
  %481 = vmatpush1.msra.mxu0 0.0
  %482 = vmatprep.subr.mxu0 0.0
  %483 = vmatpush1.msra.mxu0 0.0
  %484 = vmatprep.subr.mxu0 0.0
  %485 = vmatpush1.msra.mxu0 0.0
  %486 = vmatprep.subr.mxu0 0.0
  %487 = vmatpush1.msra.mxu0 0.0
  %488 = vmatprep.subr.mxu0 0.0
  %489 = vmatpush1.msra.mxu0 0.0
  %490 = vmatprep.subr.mxu0 0.0
  %491 = vmatpush1.msra.mxu0 0.0
  %492 = vmatprep.subr.mxu0 0.0
  %493 = vmatpush1.msra.mxu0 0.0
  %494 = vmatprep.subr.mxu0 0.0
  %495 = vmatpush1.msra.mxu0 0.0
  %496 = vmatprep.subr.mxu0 0.0
  %497 = vmatpush1.msra.mxu0 0.0
  %498 = vmatprep.subr.mxu0 0.0
  %499 = vmatpush1.msra.mxu0 0.0
  %500 = vmatprep.subr.mxu0 0.0
  %501 = vmatpush1.msra.mxu0 0.0
  %502 = vmatprep.subr.mxu0 0.0
  %503 = vmatpush1.msra.mxu0 0.0
  %504 = vmatprep.subr.mxu0 0.0
  %505 = vmatpush1.msra.mxu0 0.0
  %506 = vmatprep.subr.mxu0 0.0
  %507 = vmatpush1.msra.mxu0 0.0
  %508 = vmatprep.subr.mxu0 0.0
  %509 = vmatpush1.msra.mxu0 0.0
  %510 = vmatprep.subr.mxu0 0.0
  %511 = vmatpush1.msra.mxu0 0.0
  %512 = vmatprep.subr.mxu0 0.0
  %513 = vmatpush1.msra.mxu0 0.0
  %514 = vmatprep.subr.mxu0 0.0
  %515 = vmatpush1.msra.mxu0 0.0
  %516 = vmatprep.subr.mxu0 0.0
  %517 = vmatpush1.msra.mxu0 0.0
  %518 = vmatprep.subr.mxu0 0.0
  %519 = vmatpush1.msra.mxu0 0.0
  %520 = vmatprep.subr.mxu0 0.0
  %521 = vmatpush1.msra.mxu0 0.0
  %522 = vmatprep.subr.mxu0 0.0
  %523 = vmatpush1.msra.mxu0 0.0
  %524 = vmatprep.subr.mxu0 0.0
  %525 = vmatpush1.msra.mxu0 0.0
  %526 = vmatprep.subr.mxu0 0.0
  %527 = vmatpush1.msra.mxu0 0.0
  %528 = vmatprep.subr.mxu0 0.0
  %529 = vmatpush1.msra.mxu0 0.0
  %530 = vmatprep.subr.mxu0 0.0
  %531 = vmatpush1.msra.mxu0 0.0
  %532 = vmatprep.subr.mxu0 0.0
  %533 = vmatpush1.msra.mxu0 0.0
  %534 = vmatprep.mubr.f32.mxu0 0.0
  %535 = vmatmul.mubr.f32.gmra.mrb[0].mxu0 %v468
  %v536 = vpop.f32.mrb[0].mxu0
  %v537 = vadd.f32 0.0, %v536
  %v538 = vpop.f32.mrb[0].mxu0
  %539 = vdwg.mxu0
  %541 = vrot.lane.b32.xlu0 %v537, 16
  %v542 = vpop.permute.xlu0 %541
  %vm544 = vcmask 261248
  %545 = vst.msk [vmem:[#allocation2] sm:$0xff] %vm544, %v542
  %v546 = vld [vmem:[%s1 + $0x1] sm:$0x1]
  %548 = vrot.lane.b32.xlu0 %v196, 96
  %v549 = vpop.permute.xlu0 %548
  %v550 = vsel %vm203, %v196, 0
  %v552 = vsel %vm203, %v549, 0
  %554 = vmatprep.subr.mxu0 0.0
  %555 = vmatpush1.xpose.msra.mxu0 %v552
  %556 = vmatprep.subr.mxu0 0.0
  %557 = vmatpush1.xpose.msra.mxu0 0.0
  %558 = vmatprep.subr.mxu0 0.0
  %559 = vmatpush1.xpose.msra.mxu0 0.0
  %560 = vmatprep.subr.mxu0 0.0
  %561 = vmatpush1.xpose.msra.mxu0 0.0
  %562 = vmatprep.subr.mxu0 0.0
  %563 = vmatpush1.xpose.msra.mxu0 0.0
  %564 = vmatprep.subr.mxu0 0.0
  %565 = vmatpush1.xpose.msra.mxu0 0.0
  %566 = vmatprep.subr.mxu0 0.0
  %567 = vmatpush1.xpose.msra.mxu0 0.0
  %568 = vmatprep.subr.mxu0 0.0
  %569 = vmatpush1.xpose.msra.mxu0 0.0
  %570 = vmatprep.subr.mxu0 0.0
  %571 = vmatpush1.xpose.msra.mxu0 0.0
  %572 = vmatprep.subr.mxu0 0.0
  %573 = vmatpush1.xpose.msra.mxu0 0.0
  %574 = vmatprep.subr.mxu0 0.0
  %575 = vmatpush1.xpose.msra.mxu0 0.0
  %576 = vmatprep.subr.mxu0 0.0
  %577 = vmatpush1.xpose.msra.mxu0 0.0
  %578 = vmatprep.subr.mxu0 0.0
  %579 = vmatpush1.xpose.msra.mxu0 0.0
  %580 = vmatprep.subr.mxu0 0.0
  %581 = vmatpush1.xpose.msra.mxu0 0.0
  %582 = vmatprep.subr.mxu0 0.0
  %583 = vmatpush1.xpose.msra.mxu0 0.0
  %584 = vmatprep.subr.mxu0 0.0
  %585 = vmatpush1.xpose.msra.mxu0 0.0
  %586 = vmatprep.subr.mxu0 0.0
  %587 = vmatpush1.xpose.msra.mxu0 0.0
  %588 = vmatprep.subr.mxu0 0.0
  %589 = vmatpush1.xpose.msra.mxu0 0.0
  %590 = vmatprep.subr.mxu0 0.0
  %591 = vmatpush1.xpose.msra.mxu0 0.0
  %592 = vmatprep.subr.mxu0 0.0
  %593 = vmatpush1.xpose.msra.mxu0 0.0
  %594 = vmatprep.subr.mxu0 0.0
  %595 = vmatpush1.xpose.msra.mxu0 0.0
  %596 = vmatprep.subr.mxu0 0.0
  %597 = vmatpush1.xpose.msra.mxu0 0.0
  %598 = vmatprep.subr.mxu0 0.0
  %599 = vmatpush1.xpose.msra.mxu0 0.0
  %600 = vmatprep.subr.mxu0 0.0
  %601 = vmatpush1.xpose.msra.mxu0 0.0
  %602 = vmatprep.subr.mxu0 0.0
  %603 = vmatpush1.xpose.msra.mxu0 0.0
  %604 = vmatprep.subr.mxu0 0.0
  %605 = vmatpush1.xpose.msra.mxu0 0.0
  %606 = vmatprep.subr.mxu0 0.0
  %607 = vmatpush1.xpose.msra.mxu0 0.0
  %608 = vmatprep.subr.mxu0 0.0
  %609 = vmatpush1.xpose.msra.mxu0 0.0
  %610 = vmatprep.subr.mxu0 0.0
  %611 = vmatpush1.xpose.msra.mxu0 0.0
  %612 = vmatprep.subr.mxu0 0.0
  %613 = vmatpush1.xpose.msra.mxu0 0.0
  %614 = vmatprep.subr.mxu0 0.0
  %615 = vmatpush1.xpose.msra.mxu0 0.0
  %616 = vmatprep.subr.mxu0 0.0
  %617 = vmatpush1.xpose.msra.mxu0 0.0
  %618 = vmatprep.mubr.f32.mxu0 0.0
  %619 = vmatmul.mubr.f32.gmra.mrb[0].mxu0 %v550
  %v620 = vpop.f32.mrb[0].mxu0
  %v621 = vadd.f32 0.0, %v620
  %v622 = vpop.f32.mrb[0].mxu0
  %623 = vdwg.mxu0
  %v624 = vmul.f32 %v621, 0.25
  %v625 = vlaneseq
  %v626 = vshrl.u32 %v625, 7
  %v627 = vsub.s32 0, %v626
  %v628 = vrot.slane %v546, %v627
  %v629 = vadd.f32 %v624, %v628
  %v630 = vsel %vm284, %v629, -inf
  %631 = vmax.xlane.f32.xlu0 %v630
  %v632 = vpop.xlane.xlu0 %631
  %v633 = vsub.f32 %v629, %v632
  %v634 = vmul.f32 %v633, 1.442695
  %v635 = vpow.pop %v634
  %v636 = vsel %vm284, %v635, 0.0
  %637 = vadd.xlane.f32.xlu0 %v636
  %v638 = vpop.xlane.xlu0 %637
  %v639 = vrcp.pop %v638
  %v640 = vmul.f32 %v635, %v639
  %641 = vrot.lane.b32.xlu0 %v196, 64
  %v642 = vpop.permute.xlu0 %641
  %v645 = vsel %vm284, %v640, 0
  %647 = vmatprep.subr.mxu0 0.0
  %648 = vmatpush1.msra.mxu0 %v642
  %649 = vmatprep.subr.mxu0 0.0
  %650 = vmatpush1.msra.mxu0 0.0
  %651 = vmatprep.subr.mxu0 0.0
  %652 = vmatpush1.msra.mxu0 0.0
  %653 = vmatprep.subr.mxu0 0.0
  %654 = vmatpush1.msra.mxu0 0.0
  %655 = vmatprep.subr.mxu0 0.0
  %656 = vmatpush1.msra.mxu0 0.0
  %657 = vmatprep.subr.mxu0 0.0
  %658 = vmatpush1.msra.mxu0 0.0
  %659 = vmatprep.subr.mxu0 0.0
  %660 = vmatpush1.msra.mxu0 0.0
  %661 = vmatprep.subr.mxu0 0.0
  %662 = vmatpush1.msra.mxu0 0.0
  %663 = vmatprep.subr.mxu0 0.0
  %664 = vmatpush1.msra.mxu0 0.0
  %665 = vmatprep.subr.mxu0 0.0
  %666 = vmatpush1.msra.mxu0 0.0
  %667 = vmatprep.subr.mxu0 0.0
  %668 = vmatpush1.msra.mxu0 0.0
  %669 = vmatprep.subr.mxu0 0.0
  %670 = vmatpush1.msra.mxu0 0.0
  %671 = vmatprep.subr.mxu0 0.0
  %672 = vmatpush1.msra.mxu0 0.0
  %673 = vmatprep.subr.mxu0 0.0
  %674 = vmatpush1.msra.mxu0 0.0
  %675 = vmatprep.subr.mxu0 0.0
  %676 = vmatpush1.msra.mxu0 0.0
  %677 = vmatprep.subr.mxu0 0.0
  %678 = vmatpush1.msra.mxu0 0.0
  %679 = vmatprep.subr.mxu0 0.0
  %680 = vmatpush1.msra.mxu0 0.0
  %681 = vmatprep.subr.mxu0 0.0
  %682 = vmatpush1.msra.mxu0 0.0
  %683 = vmatprep.subr.mxu0 0.0
  %684 = vmatpush1.msra.mxu0 0.0
  %685 = vmatprep.subr.mxu0 0.0
  %686 = vmatpush1.msra.mxu0 0.0
  %687 = vmatprep.subr.mxu0 0.0
  %688 = vmatpush1.msra.mxu0 0.0
  %689 = vmatprep.subr.mxu0 0.0
  %690 = vmatpush1.msra.mxu0 0.0
  %691 = vmatprep.subr.mxu0 0.0
  %692 = vmatpush1.msra.mxu0 0.0
  %693 = vmatprep.subr.mxu0 0.0
  %694 = vmatpush1.msra.mxu0 0.0
  %695 = vmatprep.subr.mxu0 0.0
  %696 = vmatpush1.msra.mxu0 0.0
  %697 = vmatprep.subr.mxu0 0.0
  %698 = vmatpush1.msra.mxu0 0.0
  %699 = vmatprep.subr.mxu0 0.0
  %700 = vmatpush1.msra.mxu0 0.0
  %701 = vmatprep.subr.mxu0 0.0
  %702 = vmatpush1.msra.mxu0 0.0
  %703 = vmatprep.subr.mxu0 0.0
  %704 = vmatpush1.msra.mxu0 0.0
  %705 = vmatprep.subr.mxu0 0.0
  %706 = vmatpush1.msra.mxu0 0.0
  %707 = vmatprep.subr.mxu0 0.0
  %708 = vmatpush1.msra.mxu0 0.0
  %709 = vmatprep.subr.mxu0 0.0
  %710 = vmatpush1.msra.mxu0 0.0
  %711 = vmatprep.mubr.f32.mxu0 0.0
  %712 = vmatmul.mubr.f32.gmra.mrb[0].mxu0 %v645
  %v713 = vpop.f32.mrb[0].mxu0
  %v714 = vadd.f32 0.0, %v713
  %v715 = vpop.f32.mrb[0].mxu0
  %716 = vdwg.mxu0
  %717 = vst.msk [vmem:[#allocation2 + $0x8] sm:$0xff] %vm203, %v714
  %718 = vrot.lane.b32.xlu0 %v196, 112
  %v719 = vpop.permute.xlu0 %718
  %720 = vrot.lane.b32.xlu0 %v196, 80
  %v721 = vpop.permute.xlu0 %720
  %v722 = vsel %vm203, %v719, 0
  %v724 = vsel %vm203, %v721, 0
  %726 = vmatprep.subr.mxu0 0.0
  %727 = vmatpush1.xpose.msra.mxu0 %v724
  %728 = vmatprep.subr.mxu0 0.0
  %729 = vmatpush1.xpose.msra.mxu0 0.0
  %730 = vmatprep.subr.mxu0 0.0
  %731 = vmatpush1.xpose.msra.mxu0 0.0
  %732 = vmatprep.subr.mxu0 0.0
  %733 = vmatpush1.xpose.msra.mxu0 0.0
  %734 = vmatprep.subr.mxu0 0.0
  %735 = vmatpush1.xpose.msra.mxu0 0.0
  %736 = vmatprep.subr.mxu0 0.0
  %737 = vmatpush1.xpose.msra.mxu0 0.0
  %738 = vmatprep.subr.mxu0 0.0
  %739 = vmatpush1.xpose.msra.mxu0 0.0
  %740 = vmatprep.subr.mxu0 0.0
  %741 = vmatpush1.xpose.msra.mxu0 0.0
  %742 = vmatprep.subr.mxu0 0.0
  %743 = vmatpush1.xpose.msra.mxu0 0.0
  %744 = vmatprep.subr.mxu0 0.0
  %745 = vmatpush1.xpose.msra.mxu0 0.0
  %746 = vmatprep.subr.mxu0 0.0
  %747 = vmatpush1.xpose.msra.mxu0 0.0
  %748 = vmatprep.subr.mxu0 0.0
  %749 = vmatpush1.xpose.msra.mxu0 0.0
  %750 = vmatprep.subr.mxu0 0.0
  %751 = vmatpush1.xpose.msra.mxu0 0.0
  %752 = vmatprep.subr.mxu0 0.0
  %753 = vmatpush1.xpose.msra.mxu0 0.0
  %754 = vmatprep.subr.mxu0 0.0
  %755 = vmatpush1.xpose.msra.mxu0 0.0
  %756 = vmatprep.subr.mxu0 0.0
  %757 = vmatpush1.xpose.msra.mxu0 0.0
  %758 = vmatprep.subr.mxu0 0.0
  %759 = vmatpush1.xpose.msra.mxu0 0.0
  %760 = vmatprep.subr.mxu0 0.0
  %761 = vmatpush1.xpose.msra.mxu0 0.0
  %762 = vmatprep.subr.mxu0 0.0
  %763 = vmatpush1.xpose.msra.mxu0 0.0
  %764 = vmatprep.subr.mxu0 0.0
  %765 = vmatpush1.xpose.msra.mxu0 0.0
  %766 = vmatprep.subr.mxu0 0.0
  %767 = vmatpush1.xpose.msra.mxu0 0.0
  %768 = vmatprep.subr.mxu0 0.0
  %769 = vmatpush1.xpose.msra.mxu0 0.0
  %770 = vmatprep.subr.mxu0 0.0
  %771 = vmatpush1.xpose.msra.mxu0 0.0
  %772 = vmatprep.subr.mxu0 0.0
  %773 = vmatpush1.xpose.msra.mxu0 0.0
  %774 = vmatprep.subr.mxu0 0.0
  %775 = vmatpush1.xpose.msra.mxu0 0.0
  %776 = vmatprep.subr.mxu0 0.0
  %777 = vmatpush1.xpose.msra.mxu0 0.0
  %778 = vmatprep.subr.mxu0 0.0
  %779 = vmatpush1.xpose.msra.mxu0 0.0
  %780 = vmatprep.subr.mxu0 0.0
  %781 = vmatpush1.xpose.msra.mxu0 0.0
  %782 = vmatprep.subr.mxu0 0.0
  %783 = vmatpush1.xpose.msra.mxu0 0.0
  %784 = vmatprep.subr.mxu0 0.0
  %785 = vmatpush1.xpose.msra.mxu0 0.0
  %786 = vmatprep.subr.mxu0 0.0
  %787 = vmatpush1.xpose.msra.mxu0 0.0
  %788 = vmatprep.subr.mxu0 0.0
  %789 = vmatpush1.xpose.msra.mxu0 0.0
  %790 = vmatprep.mubr.f32.mxu0 0.0
  %791 = vmatmul.mubr.f32.gmra.mrb[0].mxu0 %v722
  %v792 = vpop.f32.mrb[0].mxu0
  %v793 = vadd.f32 0.0, %v792
  %v794 = vpop.f32.mrb[0].mxu0
  %795 = vdwg.mxu0
  %v796 = vmul.f32 %v793, 0.25
  %v797 = vadd.f32 %v796, %v628
  %v798 = vsel %vm284, %v797, -inf
  %799 = vmax.xlane.f32.xlu0 %v798
  %v800 = vpop.xlane.xlu0 %799
  %v801 = vsub.f32 %v797, %v800
  %v802 = vmul.f32 %v801, 1.442695
  %v803 = vpow.pop %v802
  %v804 = vsel %vm284, %v803, 0.0
  %805 = vadd.xlane.f32.xlu0 %v804
  %v806 = vpop.xlane.xlu0 %805
  %v807 = vrcp.pop %v806
  %v808 = vmul.f32 %v803, %v807
  %809 = vrot.lane.b32.xlu0 %v196, 48
  %v810 = vpop.permute.xlu0 %809
  %v813 = vsel %vm284, %v808, 0
  %815 = vmatprep.subr.mxu0 0.0
  %816 = vmatpush1.msra.mxu0 %v810
  %817 = vmatprep.subr.mxu0 0.0
  %818 = vmatpush1.msra.mxu0 0.0
  %819 = vmatprep.subr.mxu0 0.0
  %820 = vmatpush1.msra.mxu0 0.0
  %821 = vmatprep.subr.mxu0 0.0
  %822 = vmatpush1.msra.mxu0 0.0
  %823 = vmatprep.subr.mxu0 0.0
  %824 = vmatpush1.msra.mxu0 0.0
  %825 = vmatprep.subr.mxu0 0.0
  %826 = vmatpush1.msra.mxu0 0.0
  %827 = vmatprep.subr.mxu0 0.0
  %828 = vmatpush1.msra.mxu0 0.0
  %829 = vmatprep.subr.mxu0 0.0
  %830 = vmatpush1.msra.mxu0 0.0
  %831 = vmatprep.subr.mxu0 0.0
  %832 = vmatpush1.msra.mxu0 0.0
  %833 = vmatprep.subr.mxu0 0.0
  %834 = vmatpush1.msra.mxu0 0.0
  %835 = vmatprep.subr.mxu0 0.0
  %836 = vmatpush1.msra.mxu0 0.0
  %837 = vmatprep.subr.mxu0 0.0
  %838 = vmatpush1.msra.mxu0 0.0
  %839 = vmatprep.subr.mxu0 0.0
  %840 = vmatpush1.msra.mxu0 0.0
  %841 = vmatprep.subr.mxu0 0.0
  %842 = vmatpush1.msra.mxu0 0.0
  %843 = vmatprep.subr.mxu0 0.0
  %844 = vmatpush1.msra.mxu0 0.0
  %845 = vmatprep.subr.mxu0 0.0
  %846 = vmatpush1.msra.mxu0 0.0
  %847 = vmatprep.subr.mxu0 0.0
  %848 = vmatpush1.msra.mxu0 0.0
  %849 = vmatprep.subr.mxu0 0.0
  %850 = vmatpush1.msra.mxu0 0.0
  %851 = vmatprep.subr.mxu0 0.0
  %852 = vmatpush1.msra.mxu0 0.0
  %853 = vmatprep.subr.mxu0 0.0
  %854 = vmatpush1.msra.mxu0 0.0
  %855 = vmatprep.subr.mxu0 0.0
  %856 = vmatpush1.msra.mxu0 0.0
  %857 = vmatprep.subr.mxu0 0.0
  %858 = vmatpush1.msra.mxu0 0.0
  %859 = vmatprep.subr.mxu0 0.0
  %860 = vmatpush1.msra.mxu0 0.0
  %861 = vmatprep.subr.mxu0 0.0
  %862 = vmatpush1.msra.mxu0 0.0
  %863 = vmatprep.subr.mxu0 0.0
  %864 = vmatpush1.msra.mxu0 0.0
  %865 = vmatprep.subr.mxu0 0.0
  %866 = vmatpush1.msra.mxu0 0.0
  %867 = vmatprep.subr.mxu0 0.0
  %868 = vmatpush1.msra.mxu0 0.0
  %869 = vmatprep.subr.mxu0 0.0
  %870 = vmatpush1.msra.mxu0 0.0
  %871 = vmatprep.subr.mxu0 0.0
  %872 = vmatpush1.msra.mxu0 0.0
  %873 = vmatprep.subr.mxu0 0.0
  %874 = vmatpush1.msra.mxu0 0.0
  %875 = vmatprep.subr.mxu0 0.0
  %876 = vmatpush1.msra.mxu0 0.0
  %877 = vmatprep.subr.mxu0 0.0
  %878 = vmatpush1.msra.mxu0 0.0
  %879 = vmatprep.mubr.f32.mxu0 0.0
  %880 = vmatmul.mubr.f32.gmra.mrb[0].mxu0 %v813
  %v881 = vpop.f32.mrb[0].mxu0
  %v882 = vadd.f32 0.0, %v881
  %v883 = vpop.f32.mrb[0].mxu0
  %884 = vdwg.mxu0
  %886 = vrot.lane.b32.xlu0 %v882, 16
  %v887 = vpop.permute.xlu0 %886
  %889 = vst.msk [vmem:[#allocation2 + $0x8] sm:$0xff] %vm544, %v887
  %v890 = vld [vmem:[#allocation2] sm:$0xff]
  %v891 = vld [vmem:[#allocation2 + $0x8] sm:$0xff]
  %v892 = vld [vmem:[%s6] sm:$0xff]
  %v893 = vld [vmem:[%s6 + $0x8] sm:$0xff]
  %v894 = vld [vmem:[%s6 + $0x10] sm:$0xff]
  %v895 = vld [vmem:[%s6 + $0x18] sm:$0xff]
  %v896 = vld [vmem:[%s7] sm:$0x1]
  %v898 = vlaneseq
  %v899 = vshrl.u32 %v898, 7
  %v900 = vsub.s32 0, %v899
  %v901 = vrot.slane %v896, %v900
  %v904 = vsel %vm63, %v890, 0
  %v907 = vsel %vm63, %v891, 0
  %909 = vmatprep.subr.mxu0 0.0
  %910 = vmatpush1.msra.mxu0 %v892
  %911 = vmatprep.subr.mxu0 0.0
  %912 = vmatpush1.msra.mxu0 %v893
  %913 = vmatprep.subr.mxu0 0.0
  %914 = vmatpush1.msra.mxu0 %v894
  %915 = vmatprep.subr.mxu0 0.0
  %916 = vmatpush1.msra.mxu0 %v895
  %917 = vmatprep.subr.mxu0 0.0
  %918 = vmatpush1.msra.mxu0 0.0
  %919 = vmatprep.subr.mxu0 0.0
  %920 = vmatpush1.msra.mxu0 0.0
  %921 = vmatprep.subr.mxu0 0.0
  %922 = vmatpush1.msra.mxu0 0.0
  %923 = vmatprep.subr.mxu0 0.0
  %924 = vmatpush1.msra.mxu0 0.0
  %925 = vmatprep.subr.mxu0 0.0
  %926 = vmatpush1.msra.mxu0 0.0
  %927 = vmatprep.subr.mxu0 0.0
  %928 = vmatpush1.msra.mxu0 0.0
  %929 = vmatprep.subr.mxu0 0.0
  %930 = vmatpush1.msra.mxu0 0.0
  %931 = vmatprep.subr.mxu0 0.0
  %932 = vmatpush1.msra.mxu0 0.0
  %933 = vmatprep.subr.mxu0 0.0
  %934 = vmatpush1.msra.mxu0 0.0
  %935 = vmatprep.subr.mxu0 0.0
  %936 = vmatpush1.msra.mxu0 0.0
  %937 = vmatprep.subr.mxu0 0.0
  %938 = vmatpush1.msra.mxu0 0.0
  %939 = vmatprep.subr.mxu0 0.0
  %940 = vmatpush1.msra.mxu0 0.0
  %941 = vmatprep.subr.mxu0 0.0
  %942 = vmatpush1.msra.mxu0 0.0
  %943 = vmatprep.subr.mxu0 0.0
  %944 = vmatpush1.msra.mxu0 0.0
  %945 = vmatprep.subr.mxu0 0.0
  %946 = vmatpush1.msra.mxu0 0.0
  %947 = vmatprep.subr.mxu0 0.0
  %948 = vmatpush1.msra.mxu0 0.0
  %949 = vmatprep.subr.mxu0 0.0
  %950 = vmatpush1.msra.mxu0 0.0
  %951 = vmatprep.subr.mxu0 0.0
  %952 = vmatpush1.msra.mxu0 0.0
  %953 = vmatprep.subr.mxu0 0.0
  %954 = vmatpush1.msra.mxu0 0.0
  %955 = vmatprep.subr.mxu0 0.0
  %956 = vmatpush1.msra.mxu0 0.0
  %957 = vmatprep.subr.mxu0 0.0
  %958 = vmatpush1.msra.mxu0 0.0
  %959 = vmatprep.subr.mxu0 0.0
  %960 = vmatpush1.msra.mxu0 0.0
  %961 = vmatprep.subr.mxu0 0.0
  %962 = vmatpush1.msra.mxu0 0.0
  %963 = vmatprep.subr.mxu0 0.0
  %964 = vmatpush1.msra.mxu0 0.0
  %965 = vmatprep.subr.mxu0 0.0
  %966 = vmatpush1.msra.mxu0 0.0
  %967 = vmatprep.subr.mxu0 0.0
  %968 = vmatpush1.msra.mxu0 0.0
  %969 = vmatprep.subr.mxu0 0.0
  %970 = vmatpush1.msra.mxu0 0.0
  %971 = vmatprep.subr.mxu0 0.0
  %972 = vmatpush1.msra.mxu0 0.0
  %973 = vmatprep.mubr.f32.mxu0 0.0
  %974 = vmatmul.mubr.f32.gmra.mrb[0].mxu0 %v904
  %v975 = vpop.f32.mrb[0].mxu0
  %v976 = vadd.f32 %v901, %v975
  %v977 = vpop.f32.mrb[0].mxu0
  %978 = vmatprep.mubr.f32.mxu0 0.0
  %979 = vmatmul.mubr.f32.gmra.mrb[0].mxu0 %v907
  %v980 = vpop.f32.mrb[0].mxu0
  %v981 = vadd.f32 %v901, %v980
  %v982 = vpop.f32.mrb[0].mxu0
  %983 = vdwg.mxu0
  %v984 = vadd.f32 %v976, %v105
  %v985 = vadd.f32 %v981, %v106
  %v986 = vld [vmem:[%s8] sm:$0x1]
  %v987 = vld [vmem:[%s9] sm:$0x1]
  %v988 = vsel %vm63, %v984, 0.0
  %989 = vadd.xlane.f32.xlu0 %v988
  %v990 = vpop.xlane.xlu0 %989
  %v991 = vsel %vm63, %v985, 0.0
  %992 = vadd.xlane.f32.xlu0 %v991
  %v993 = vpop.xlane.xlu0 %992
  %v994 = vmul.f32 %v990, %v70
  %v995 = vmul.f32 %v993, %v70
  %v996 = vsub.f32 %v984, %v994
  %v997 = vsub.f32 %v985, %v995
  %v998 = vmul.f32 %v996, %v996
  %v999 = vmul.f32 %v997, %v997
  %v1000 = vsel %vm63, %v998, 0.0
  %1001 = vadd.xlane.f32.xlu0 %v1000
  %v1002 = vpop.xlane.xlu0 %1001
  %v1003 = vsel %vm63, %v999, 0.0
  %1004 = vadd.xlane.f32.xlu0 %v1003
  %v1005 = vpop.xlane.xlu0 %1004
  %v1006 = vmul.f32 %v1002, %v70
  %v1007 = vmul.f32 %v1005, %v70
  %v1008 = vadd.f32 %v1006, 1e-12
  %v1009 = vadd.f32 %v1007, 1e-12
  %v1010 = vrsqrt.pop %v1008
  %v1011 = vrsqrt.pop %v1009
  %v1012 = vmul.f32 %v996, %v1010
  %v1013 = vmul.f32 %v997, %v1011
  %v1015 = vlaneseq
  %v1016 = vshrl.u32 %v1015, 7
  %v1017 = vsub.s32 0, %v1016
  %v1018 = vrot.slane %v986, %v1017
  %v1020 = vmul.f32 %v1012, %v1018
  %v1021 = vmul.f32 %v1013, %v1018
  %v1023 = vlaneseq
  %v1024 = vshrl.u32 %v1023, 7
  %v1025 = vsub.s32 0, %v1024
  %v1026 = vrot.slane %v987, %v1025
  %v1028 = vadd.f32 %v1020, %v1026
  %v1029 = vadd.f32 %v1021, %v1026
  %v1030 = vld [vmem:[%s10] sm:$0xff]
  %v1031 = vld [vmem:[%s10 + $0x8] sm:$0xff]
  %v1032 = vld [vmem:[%s10 + $0x10] sm:$0xff]
  %v1033 = vld [vmem:[%s10 + $0x18] sm:$0xff]
  %v1034 = vld [vmem:[%s11] sm:$0x1]
  %v1036 = vlaneseq
  %v1037 = vshrl.u32 %v1036, 7
  %v1038 = vsub.s32 0, %v1037
  %v1039 = vrot.slane %v1034, %v1038
  %v1042 = vsel %vm63, %v1028, 0
  %v1045 = vsel %vm63, %v1029, 0
  %1047 = vmatprep.subr.mxu0 0.0
  %1048 = vmatpush1.msra.mxu0 %v1030
  %1049 = vmatprep.subr.mxu0 0.0
  %1050 = vmatpush1.msra.mxu0 %v1031
  %1051 = vmatprep.subr.mxu0 0.0
  %1052 = vmatpush1.msra.mxu0 %v1032
  %1053 = vmatprep.subr.mxu0 0.0
  %1054 = vmatpush1.msra.mxu0 %v1033
  %1055 = vmatprep.subr.mxu0 0.0
  %1056 = vmatpush1.msra.mxu0 0.0
  %1057 = vmatprep.subr.mxu0 0.0
  %1058 = vmatpush1.msra.mxu0 0.0
  %1059 = vmatprep.subr.mxu0 0.0
  %1060 = vmatpush1.msra.mxu0 0.0
  %1061 = vmatprep.subr.mxu0 0.0
  %1062 = vmatpush1.msra.mxu0 0.0
  %1063 = vmatprep.subr.mxu0 0.0
  %1064 = vmatpush1.msra.mxu0 0.0
  %1065 = vmatprep.subr.mxu0 0.0
  %1066 = vmatpush1.msra.mxu0 0.0
  %1067 = vmatprep.subr.mxu0 0.0
  %1068 = vmatpush1.msra.mxu0 0.0
  %1069 = vmatprep.subr.mxu0 0.0
  %1070 = vmatpush1.msra.mxu0 0.0
  %1071 = vmatprep.subr.mxu0 0.0
  %1072 = vmatpush1.msra.mxu0 0.0
  %1073 = vmatprep.subr.mxu0 0.0
  %1074 = vmatpush1.msra.mxu0 0.0
  %1075 = vmatprep.subr.mxu0 0.0
  %1076 = vmatpush1.msra.mxu0 0.0
  %1077 = vmatprep.subr.mxu0 0.0
  %1078 = vmatpush1.msra.mxu0 0.0
  %1079 = vmatprep.subr.mxu0 0.0
  %1080 = vmatpush1.msra.mxu0 0.0
  %1081 = vmatprep.subr.mxu0 0.0
  %1082 = vmatpush1.msra.mxu0 0.0
  %1083 = vmatprep.subr.mxu0 0.0
  %1084 = vmatpush1.msra.mxu0 0.0
  %1085 = vmatprep.subr.mxu0 0.0
  %1086 = vmatpush1.msra.mxu0 0.0
  %1087 = vmatprep.subr.mxu0 0.0
  %1088 = vmatpush1.msra.mxu0 0.0
  %1089 = vmatprep.subr.mxu0 0.0
  %1090 = vmatpush1.msra.mxu0 0.0
  %1091 = vmatprep.subr.mxu0 0.0
  %1092 = vmatpush1.msra.mxu0 0.0
  %1093 = vmatprep.subr.mxu0 0.0
  %1094 = vmatpush1.msra.mxu0 0.0
  %1095 = vmatprep.subr.mxu0 0.0
  %1096 = vmatpush1.msra.mxu0 0.0
  %1097 = vmatprep.subr.mxu0 0.0
  %1098 = vmatpush1.msra.mxu0 0.0
  %1099 = vmatprep.subr.mxu0 0.0
  %1100 = vmatpush1.msra.mxu0 0.0
  %1101 = vmatprep.subr.mxu0 0.0
  %1102 = vmatpush1.msra.mxu0 0.0
  %1103 = vmatprep.subr.mxu0 0.0
  %1104 = vmatpush1.msra.mxu0 0.0
  %1105 = vmatprep.subr.mxu0 0.0
  %1106 = vmatpush1.msra.mxu0 0.0
  %1107 = vmatprep.subr.mxu0 0.0
  %1108 = vmatpush1.msra.mxu0 0.0
  %1109 = vmatprep.subr.mxu0 0.0
  %1110 = vmatpush1.msra.mxu0 0.0
  %1111 = vmatprep.mubr.f32.mxu0 0.0
  %1112 = vmatmul.mubr.f32.gmra.mrb[0].mxu0 %v1042
  %v1113 = vpop.f32.mrb[0].mxu0
  %v1114 = vadd.f32 %v1039, %v1113
  %v1115 = vpop.f32.mrb[0].mxu0
  %1116 = vmatprep.mubr.f32.mxu0 0.0
  %1117 = vmatmul.mubr.f32.gmra.mrb[0].mxu0 %v1045
  %v1118 = vpop.f32.mrb[0].mxu0
  %v1119 = vadd.f32 %v1039, %v1118
  %v1120 = vpop.f32.mrb[0].mxu0
  %1121 = vdwg.mxu0
  %v1122 = vmul.f32 %v1114, %v1114
  %v1123 = vmul.f32 %v1119, %v1119
  %v1124 = vmul.f32 %v1114, %v1122
  %v1125 = vmul.f32 %v1119, %v1123
  %v1126 = vmul.f32 %v1124, 0.044715
  %v1127 = vmul.f32 %v1125, 0.044715
  %v1128 = vadd.f32 %v1114, %v1126
  %v1129 = vadd.f32 %v1119, %v1127
  %v1130 = vmul.f32 %v1128, 0.7978846
  %v1131 = vmul.f32 %v1129, 0.7978846
  %v1132 = vtanh.pop %v1130
  %v1133 = vtanh.pop %v1131
  %v1134 = vadd.f32 %v1132, 1.0
  %v1135 = vadd.f32 %v1133, 1.0
  %v1136 = vmul.f32 %v1134, 0.5
  %v1137 = vmul.f32 %v1135, 0.5
  %v1138 = vmul.f32 %v1114, %v1136
  %v1139 = vmul.f32 %v1119, %v1137
  %v1140 = vld [vmem:[%s12] sm:$0xff]
  %v1141 = vld [vmem:[%s12 + $0x8] sm:$0xff]
  %v1142 = vld [vmem:[%s12 + $0x10] sm:$0xff]
  %v1143 = vld [vmem:[%s12 + $0x18] sm:$0xff]
  %v1144 = vld [vmem:[%s12 + $0x20] sm:$0xff]
  %v1145 = vld [vmem:[%s12 + $0x28] sm:$0xff]
  %v1146 = vld [vmem:[%s12 + $0x30] sm:$0xff]
  %v1147 = vld [vmem:[%s12 + $0x38] sm:$0xff]
  %v1148 = vld [vmem:[%s13] sm:$0x1]
  %v1150 = vlaneseq
  %v1151 = vshrl.u32 %v1150, 7
  %v1152 = vsub.s32 0, %v1151
  %v1153 = vrot.slane %v1148, %v1152
  %vm1155 = vcmask 523264
  %v1157 = vsel %vm1155, %v1138, 0
  %v1160 = vsel %vm1155, %v1139, 0
  %1162 = vmatprep.subr.mxu0 0.0
  %1163 = vmatpush1.msra.mxu0 %v1140
  %1164 = vmatprep.subr.mxu0 0.0
  %1165 = vmatpush1.msra.mxu0 %v1141
  %1166 = vmatprep.subr.mxu0 0.0
  %1167 = vmatpush1.msra.mxu0 %v1142
  %1168 = vmatprep.subr.mxu0 0.0
  %1169 = vmatpush1.msra.mxu0 %v1143
  %1170 = vmatprep.subr.mxu0 0.0
  %1171 = vmatpush1.msra.mxu0 %v1144
  %1172 = vmatprep.subr.mxu0 0.0
  %1173 = vmatpush1.msra.mxu0 %v1145
  %1174 = vmatprep.subr.mxu0 0.0
  %1175 = vmatpush1.msra.mxu0 %v1146
  %1176 = vmatprep.subr.mxu0 0.0
  %1177 = vmatpush1.msra.mxu0 %v1147
  %1178 = vmatprep.subr.mxu0 0.0
  %1179 = vmatpush1.msra.mxu0 0.0
  %1180 = vmatprep.subr.mxu0 0.0
  %1181 = vmatpush1.msra.mxu0 0.0
  %1182 = vmatprep.subr.mxu0 0.0
  %1183 = vmatpush1.msra.mxu0 0.0
  %1184 = vmatprep.subr.mxu0 0.0
  %1185 = vmatpush1.msra.mxu0 0.0
  %1186 = vmatprep.subr.mxu0 0.0
  %1187 = vmatpush1.msra.mxu0 0.0
  %1188 = vmatprep.subr.mxu0 0.0
  %1189 = vmatpush1.msra.mxu0 0.0
  %1190 = vmatprep.subr.mxu0 0.0
  %1191 = vmatpush1.msra.mxu0 0.0
  %1192 = vmatprep.subr.mxu0 0.0
  %1193 = vmatpush1.msra.mxu0 0.0
  %1194 = vmatprep.subr.mxu0 0.0
  %1195 = vmatpush1.msra.mxu0 0.0
  %1196 = vmatprep.subr.mxu0 0.0
  %1197 = vmatpush1.msra.mxu0 0.0
  %1198 = vmatprep.subr.mxu0 0.0
  %1199 = vmatpush1.msra.mxu0 0.0
  %1200 = vmatprep.subr.mxu0 0.0
  %1201 = vmatpush1.msra.mxu0 0.0
  %1202 = vmatprep.subr.mxu0 0.0
  %1203 = vmatpush1.msra.mxu0 0.0
  %1204 = vmatprep.subr.mxu0 0.0
  %1205 = vmatpush1.msra.mxu0 0.0
  %1206 = vmatprep.subr.mxu0 0.0
  %1207 = vmatpush1.msra.mxu0 0.0
  %1208 = vmatprep.subr.mxu0 0.0
  %1209 = vmatpush1.msra.mxu0 0.0
  %1210 = vmatprep.subr.mxu0 0.0
  %1211 = vmatpush1.msra.mxu0 0.0
  %1212 = vmatprep.subr.mxu0 0.0
  %1213 = vmatpush1.msra.mxu0 0.0
  %1214 = vmatprep.subr.mxu0 0.0
  %1215 = vmatpush1.msra.mxu0 0.0
  %1216 = vmatprep.subr.mxu0 0.0
  %1217 = vmatpush1.msra.mxu0 0.0
  %1218 = vmatprep.subr.mxu0 0.0
  %1219 = vmatpush1.msra.mxu0 0.0
  %1220 = vmatprep.subr.mxu0 0.0
  %1221 = vmatpush1.msra.mxu0 0.0
  %1222 = vmatprep.subr.mxu0 0.0
  %1223 = vmatpush1.msra.mxu0 0.0
  %1224 = vmatprep.subr.mxu0 0.0
  %1225 = vmatpush1.msra.mxu0 0.0
  %1226 = vmatprep.mubr.f32.mxu0 0.0
  %1227 = vmatmul.mubr.f32.gmra.mrb[0].mxu0 %v1157
  %v1228 = vpop.f32.mrb[0].mxu0
  %v1229 = vadd.f32 %v1153, %v1228
  %v1230 = vpop.f32.mrb[0].mxu0
  %1231 = vmatprep.mubr.f32.mxu0 0.0
  %1232 = vmatmul.mubr.f32.gmra.mrb[0].mxu0 %v1160
  %v1233 = vpop.f32.mrb[0].mxu0
  %v1234 = vadd.f32 %v1153, %v1233
  %v1235 = vpop.f32.mrb[0].mxu0
  %1236 = vdwg.mxu0
  %v1237 = vadd.f32 %v1229, %v1028
  %v1238 = vadd.f32 %v1234, %v1029
  %v1239 = vld [vmem:[%s14] sm:$0x1]
  %v1240 = vld [vmem:[%s15] sm:$0x1]
  %v1241 = vsel %vm63, %v1237, 0.0
  %1242 = vadd.xlane.f32.xlu0 %v1241
  %v1243 = vpop.xlane.xlu0 %1242
  %v1244 = vsel %vm63, %v1238, 0.0
  %1245 = vadd.xlane.f32.xlu0 %v1244
  %v1246 = vpop.xlane.xlu0 %1245
  %v1247 = vmul.f32 %v1243, %v70
  %v1248 = vmul.f32 %v1246, %v70
  %v1249 = vsub.f32 %v1237, %v1247
  %v1250 = vsub.f32 %v1238, %v1248
  %v1251 = vmul.f32 %v1249, %v1249
  %v1252 = vmul.f32 %v1250, %v1250
  %v1253 = vsel %vm63, %v1251, 0.0
  %1254 = vadd.xlane.f32.xlu0 %v1253
  %v1255 = vpop.xlane.xlu0 %1254
  %v1256 = vsel %vm63, %v1252, 0.0
  %1257 = vadd.xlane.f32.xlu0 %v1256
  %v1258 = vpop.xlane.xlu0 %1257
  %v1259 = vmul.f32 %v1255, %v70
  %v1260 = vmul.f32 %v1258, %v70
  %v1261 = vadd.f32 %v1259, 1e-12
  %v1262 = vadd.f32 %v1260, 1e-12
  %v1263 = vrsqrt.pop %v1261
  %v1264 = vrsqrt.pop %v1262
  %v1265 = vmul.f32 %v1249, %v1263
  %v1266 = vmul.f32 %v1250, %v1264
  %v1268 = vlaneseq
  %v1269 = vshrl.u32 %v1268, 7
  %v1270 = vsub.s32 0, %v1269
  %v1271 = vrot.slane %v1239, %v1270
  %v1273 = vmul.f32 %v1265, %v1271
  %v1274 = vmul.f32 %v1266, %v1271
  %v1276 = vlaneseq
  %v1277 = vshrl.u32 %v1276, 7
  %v1278 = vsub.s32 0, %v1277
  %v1279 = vrot.slane %v1240, %v1278
  %v1281 = vadd.f32 %v1273, %v1279
  %v1282 = vadd.f32 %v1274, %v1279
  %s1283 = scalar_lea.vmem %s4, 32
  %v1284 = vld [vmem:[%s1283] sm:$0xff]
  %v1285 = vld [vmem:[%s1283 + $0x8] sm:$0xff]
  %v1286 = vld [vmem:[%s1283 + $0x10] sm:$0xff]
  %v1287 = vld [vmem:[%s1283 + $0x18] sm:$0xff]
  %s1288 = scalar_lea.vmem %s5, 1
  %v1289 = vld [vmem:[%s1288] sm:$0x1]
  %v1291 = vlaneseq
  %v1292 = vshrl.u32 %v1291, 7
  %v1293 = vsub.s32 0, %v1292
  %v1294 = vrot.slane %v1289, %v1293
  %v1297 = vsel %vm63, %v1281, 0
  %v1300 = vsel %vm63, %v1282, 0
  %1302 = vmatprep.subr.mxu0 0.0
  %1303 = vmatpush1.msra.mxu0 %v1284
  %1304 = vmatprep.subr.mxu0 0.0
  %1305 = vmatpush1.msra.mxu0 %v1285
  %1306 = vmatprep.subr.mxu0 0.0
  %1307 = vmatpush1.msra.mxu0 %v1286
  %1308 = vmatprep.subr.mxu0 0.0
  %1309 = vmatpush1.msra.mxu0 %v1287
  %1310 = vmatprep.subr.mxu0 0.0
  %1311 = vmatpush1.msra.mxu0 0.0
  %1312 = vmatprep.subr.mxu0 0.0
  %1313 = vmatpush1.msra.mxu0 0.0
  %1314 = vmatprep.subr.mxu0 0.0
  %1315 = vmatpush1.msra.mxu0 0.0
  %1316 = vmatprep.subr.mxu0 0.0
  %1317 = vmatpush1.msra.mxu0 0.0
  %1318 = vmatprep.subr.mxu0 0.0
  %1319 = vmatpush1.msra.mxu0 0.0
  %1320 = vmatprep.subr.mxu0 0.0
  %1321 = vmatpush1.msra.mxu0 0.0
  %1322 = vmatprep.subr.mxu0 0.0
  %1323 = vmatpush1.msra.mxu0 0.0
  %1324 = vmatprep.subr.mxu0 0.0
  %1325 = vmatpush1.msra.mxu0 0.0
  %1326 = vmatprep.subr.mxu0 0.0
  %1327 = vmatpush1.msra.mxu0 0.0
  %1328 = vmatprep.subr.mxu0 0.0
  %1329 = vmatpush1.msra.mxu0 0.0
  %1330 = vmatprep.subr.mxu0 0.0
  %1331 = vmatpush1.msra.mxu0 0.0
  %1332 = vmatprep.subr.mxu0 0.0
  %1333 = vmatpush1.msra.mxu0 0.0
  %1334 = vmatprep.subr.mxu0 0.0
  %1335 = vmatpush1.msra.mxu0 0.0
  %1336 = vmatprep.subr.mxu0 0.0
  %1337 = vmatpush1.msra.mxu0 0.0
  %1338 = vmatprep.subr.mxu0 0.0
  %1339 = vmatpush1.msra.mxu0 0.0
  %1340 = vmatprep.subr.mxu0 0.0
  %1341 = vmatpush1.msra.mxu0 0.0
  %1342 = vmatprep.subr.mxu0 0.0
  %1343 = vmatpush1.msra.mxu0 0.0
  %1344 = vmatprep.subr.mxu0 0.0
  %1345 = vmatpush1.msra.mxu0 0.0
  %1346 = vmatprep.subr.mxu0 0.0
  %1347 = vmatpush1.msra.mxu0 0.0
  %1348 = vmatprep.subr.mxu0 0.0
  %1349 = vmatpush1.msra.mxu0 0.0
  %1350 = vmatprep.subr.mxu0 0.0
  %1351 = vmatpush1.msra.mxu0 0.0
  %1352 = vmatprep.subr.mxu0 0.0
  %1353 = vmatpush1.msra.mxu0 0.0
  %1354 = vmatprep.subr.mxu0 0.0
  %1355 = vmatpush1.msra.mxu0 0.0
  %1356 = vmatprep.subr.mxu0 0.0
  %1357 = vmatpush1.msra.mxu0 0.0
  %1358 = vmatprep.subr.mxu0 0.0
  %1359 = vmatpush1.msra.mxu0 0.0
  %1360 = vmatprep.subr.mxu0 0.0
  %1361 = vmatpush1.msra.mxu0 0.0
  %1362 = vmatprep.subr.mxu0 0.0
  %1363 = vmatpush1.msra.mxu0 0.0
  %1364 = vmatprep.subr.mxu0 0.0
  %1365 = vmatpush1.msra.mxu0 0.0
  %1366 = vmatprep.mubr.f32.mxu0 0.0
  %1367 = vmatmul.mubr.f32.gmra.mrb[0].mxu0 %v1297
  %v1368 = vpop.f32.mrb[0].mxu0
  %v1369 = vadd.f32 %v1294, %v1368
  %v1370 = vpop.f32.mrb[0].mxu0
  %1371 = vmatprep.mubr.f32.mxu0 0.0
  %1372 = vmatmul.mubr.f32.gmra.mrb[0].mxu0 %v1300
  %v1373 = vpop.f32.mrb[0].mxu0
  %v1374 = vadd.f32 %v1294, %v1373
  %v1375 = vpop.f32.mrb[0].mxu0
  %1376 = vdwg.mxu0
  %v1377 = vld [vmem:[%s1] sm:$0x1]
  %1379 = vrot.lane.b32.xlu0 %v1369, 96
  %v1380 = vpop.permute.xlu0 %1379
  %v1381 = vsel %vm203, %v1369, 0
  %v1383 = vsel %vm203, %v1380, 0
  %1385 = vmatprep.subr.mxu0 0.0
  %1386 = vmatpush1.xpose.msra.mxu0 %v1383
  %1387 = vmatprep.subr.mxu0 0.0
  %1388 = vmatpush1.xpose.msra.mxu0 0.0
  %1389 = vmatprep.subr.mxu0 0.0
  %1390 = vmatpush1.xpose.msra.mxu0 0.0
  %1391 = vmatprep.subr.mxu0 0.0
  %1392 = vmatpush1.xpose.msra.mxu0 0.0
  %1393 = vmatprep.subr.mxu0 0.0
  %1394 = vmatpush1.xpose.msra.mxu0 0.0
  %1395 = vmatprep.subr.mxu0 0.0
  %1396 = vmatpush1.xpose.msra.mxu0 0.0
  %1397 = vmatprep.subr.mxu0 0.0
  %1398 = vmatpush1.xpose.msra.mxu0 0.0
  %1399 = vmatprep.subr.mxu0 0.0
  %1400 = vmatpush1.xpose.msra.mxu0 0.0
  %1401 = vmatprep.subr.mxu0 0.0
  %1402 = vmatpush1.xpose.msra.mxu0 0.0
  %1403 = vmatprep.subr.mxu0 0.0
  %1404 = vmatpush1.xpose.msra.mxu0 0.0
  %1405 = vmatprep.subr.mxu0 0.0
  %1406 = vmatpush1.xpose.msra.mxu0 0.0
  %1407 = vmatprep.subr.mxu0 0.0
  %1408 = vmatpush1.xpose.msra.mxu0 0.0
  %1409 = vmatprep.subr.mxu0 0.0
  %1410 = vmatpush1.xpose.msra.mxu0 0.0
  %1411 = vmatprep.subr.mxu0 0.0
  %1412 = vmatpush1.xpose.msra.mxu0 0.0
  %1413 = vmatprep.subr.mxu0 0.0
  %1414 = vmatpush1.xpose.msra.mxu0 0.0
  %1415 = vmatprep.subr.mxu0 0.0
  %1416 = vmatpush1.xpose.msra.mxu0 0.0
  %1417 = vmatprep.subr.mxu0 0.0
  %1418 = vmatpush1.xpose.msra.mxu0 0.0
  %1419 = vmatprep.subr.mxu0 0.0
  %1420 = vmatpush1.xpose.msra.mxu0 0.0
  %1421 = vmatprep.subr.mxu0 0.0
  %1422 = vmatpush1.xpose.msra.mxu0 0.0
  %1423 = vmatprep.subr.mxu0 0.0
  %1424 = vmatpush1.xpose.msra.mxu0 0.0
  %1425 = vmatprep.subr.mxu0 0.0
  %1426 = vmatpush1.xpose.msra.mxu0 0.0
  %1427 = vmatprep.subr.mxu0 0.0
  %1428 = vmatpush1.xpose.msra.mxu0 0.0
  %1429 = vmatprep.subr.mxu0 0.0
  %1430 = vmatpush1.xpose.msra.mxu0 0.0
  %1431 = vmatprep.subr.mxu0 0.0
  %1432 = vmatpush1.xpose.msra.mxu0 0.0
  %1433 = vmatprep.subr.mxu0 0.0
  %1434 = vmatpush1.xpose.msra.mxu0 0.0
  %1435 = vmatprep.subr.mxu0 0.0
  %1436 = vmatpush1.xpose.msra.mxu0 0.0
  %1437 = vmatprep.subr.mxu0 0.0
  %1438 = vmatpush1.xpose.msra.mxu0 0.0
  %1439 = vmatprep.subr.mxu0 0.0
  %1440 = vmatpush1.xpose.msra.mxu0 0.0
  %1441 = vmatprep.subr.mxu0 0.0
  %1442 = vmatpush1.xpose.msra.mxu0 0.0
  %1443 = vmatprep.subr.mxu0 0.0
  %1444 = vmatpush1.xpose.msra.mxu0 0.0
  %1445 = vmatprep.subr.mxu0 0.0
  %1446 = vmatpush1.xpose.msra.mxu0 0.0
  %1447 = vmatprep.subr.mxu0 0.0
  %1448 = vmatpush1.xpose.msra.mxu0 0.0
  %1449 = vmatprep.mubr.f32.mxu0 0.0
  %1450 = vmatmul.mubr.f32.gmra.mrb[0].mxu0 %v1381
  %v1451 = vpop.f32.mrb[0].mxu0
  %v1452 = vadd.f32 0.0, %v1451
  %v1453 = vpop.f32.mrb[0].mxu0
  %1454 = vdwg.mxu0
  %v1455 = vmul.f32 %v1452, 0.25
  %v1456 = vlaneseq
  %v1457 = vshrl.u32 %v1456, 7
  %v1458 = vsub.s32 0, %v1457
  %v1459 = vrot.slane %v1377, %v1458
  %v1460 = vadd.f32 %v1455, %v1459
  %v1461 = vsel %vm284, %v1460, -inf
  %1462 = vmax.xlane.f32.xlu0 %v1461
  %v1463 = vpop.xlane.xlu0 %1462
  %v1464 = vsub.f32 %v1460, %v1463
  %v1465 = vmul.f32 %v1464, 1.442695
  %v1466 = vpow.pop %v1465
  %v1467 = vsel %vm284, %v1466, 0.0
  %1468 = vadd.xlane.f32.xlu0 %v1467
  %v1469 = vpop.xlane.xlu0 %1468
  %v1470 = vrcp.pop %v1469
  %v1471 = vmul.f32 %v1466, %v1470
  %1472 = vrot.lane.b32.xlu0 %v1369, 64
  %v1473 = vpop.permute.xlu0 %1472
  %v1476 = vsel %vm284, %v1471, 0
  %1478 = vmatprep.subr.mxu0 0.0
  %1479 = vmatpush1.msra.mxu0 %v1473
  %1480 = vmatprep.subr.mxu0 0.0
  %1481 = vmatpush1.msra.mxu0 0.0
  %1482 = vmatprep.subr.mxu0 0.0
  %1483 = vmatpush1.msra.mxu0 0.0
  %1484 = vmatprep.subr.mxu0 0.0
  %1485 = vmatpush1.msra.mxu0 0.0
  %1486 = vmatprep.subr.mxu0 0.0
  %1487 = vmatpush1.msra.mxu0 0.0
  %1488 = vmatprep.subr.mxu0 0.0
  %1489 = vmatpush1.msra.mxu0 0.0
  %1490 = vmatprep.subr.mxu0 0.0
  %1491 = vmatpush1.msra.mxu0 0.0
  %1492 = vmatprep.subr.mxu0 0.0
  %1493 = vmatpush1.msra.mxu0 0.0
  %1494 = vmatprep.subr.mxu0 0.0
  %1495 = vmatpush1.msra.mxu0 0.0
  %1496 = vmatprep.subr.mxu0 0.0
  %1497 = vmatpush1.msra.mxu0 0.0
  %1498 = vmatprep.subr.mxu0 0.0
  %1499 = vmatpush1.msra.mxu0 0.0
  %1500 = vmatprep.subr.mxu0 0.0
  %1501 = vmatpush1.msra.mxu0 0.0
  %1502 = vmatprep.subr.mxu0 0.0
  %1503 = vmatpush1.msra.mxu0 0.0
  %1504 = vmatprep.subr.mxu0 0.0
  %1505 = vmatpush1.msra.mxu0 0.0
  %1506 = vmatprep.subr.mxu0 0.0
  %1507 = vmatpush1.msra.mxu0 0.0
  %1508 = vmatprep.subr.mxu0 0.0
  %1509 = vmatpush1.msra.mxu0 0.0
  %1510 = vmatprep.subr.mxu0 0.0
  %1511 = vmatpush1.msra.mxu0 0.0
  %1512 = vmatprep.subr.mxu0 0.0
  %1513 = vmatpush1.msra.mxu0 0.0
  %1514 = vmatprep.subr.mxu0 0.0
  %1515 = vmatpush1.msra.mxu0 0.0
  %1516 = vmatprep.subr.mxu0 0.0
  %1517 = vmatpush1.msra.mxu0 0.0
  %1518 = vmatprep.subr.mxu0 0.0
  %1519 = vmatpush1.msra.mxu0 0.0
  %1520 = vmatprep.subr.mxu0 0.0
  %1521 = vmatpush1.msra.mxu0 0.0
  %1522 = vmatprep.subr.mxu0 0.0
  %1523 = vmatpush1.msra.mxu0 0.0
  %1524 = vmatprep.subr.mxu0 0.0
  %1525 = vmatpush1.msra.mxu0 0.0
  %1526 = vmatprep.subr.mxu0 0.0
  %1527 = vmatpush1.msra.mxu0 0.0
  %1528 = vmatprep.subr.mxu0 0.0
  %1529 = vmatpush1.msra.mxu0 0.0
  %1530 = vmatprep.subr.mxu0 0.0
  %1531 = vmatpush1.msra.mxu0 0.0
  %1532 = vmatprep.subr.mxu0 0.0
  %1533 = vmatpush1.msra.mxu0 0.0
  %1534 = vmatprep.subr.mxu0 0.0
  %1535 = vmatpush1.msra.mxu0 0.0
  %1536 = vmatprep.subr.mxu0 0.0
  %1537 = vmatpush1.msra.mxu0 0.0
  %1538 = vmatprep.subr.mxu0 0.0
  %1539 = vmatpush1.msra.mxu0 0.0
  %1540 = vmatprep.subr.mxu0 0.0
  %1541 = vmatpush1.msra.mxu0 0.0
  %1542 = vmatprep.mubr.f32.mxu0 0.0
  %1543 = vmatmul.mubr.f32.gmra.mrb[0].mxu0 %v1476
  %v1544 = vpop.f32.mrb[0].mxu0
  %v1545 = vadd.f32 0.0, %v1544
  %v1546 = vpop.f32.mrb[0].mxu0
  %1547 = vdwg.mxu0
  %1548 = vst.msk [vmem:[#allocation2] sm:$0xff] %vm203, %v1545
  %1549 = vrot.lane.b32.xlu0 %v1369, 112
  %v1550 = vpop.permute.xlu0 %1549
  %1551 = vrot.lane.b32.xlu0 %v1369, 80
  %v1552 = vpop.permute.xlu0 %1551
  %v1553 = vsel %vm203, %v1550, 0
  %v1555 = vsel %vm203, %v1552, 0
  %1557 = vmatprep.subr.mxu0 0.0
  %1558 = vmatpush1.xpose.msra.mxu0 %v1555
  %1559 = vmatprep.subr.mxu0 0.0
  %1560 = vmatpush1.xpose.msra.mxu0 0.0
  %1561 = vmatprep.subr.mxu0 0.0
  %1562 = vmatpush1.xpose.msra.mxu0 0.0
  %1563 = vmatprep.subr.mxu0 0.0
  %1564 = vmatpush1.xpose.msra.mxu0 0.0
  %1565 = vmatprep.subr.mxu0 0.0
  %1566 = vmatpush1.xpose.msra.mxu0 0.0
  %1567 = vmatprep.subr.mxu0 0.0
  %1568 = vmatpush1.xpose.msra.mxu0 0.0
  %1569 = vmatprep.subr.mxu0 0.0
  %1570 = vmatpush1.xpose.msra.mxu0 0.0
  %1571 = vmatprep.subr.mxu0 0.0
  %1572 = vmatpush1.xpose.msra.mxu0 0.0
  %1573 = vmatprep.subr.mxu0 0.0
  %1574 = vmatpush1.xpose.msra.mxu0 0.0
  %1575 = vmatprep.subr.mxu0 0.0
  %1576 = vmatpush1.xpose.msra.mxu0 0.0
  %1577 = vmatprep.subr.mxu0 0.0
  %1578 = vmatpush1.xpose.msra.mxu0 0.0
  %1579 = vmatprep.subr.mxu0 0.0
  %1580 = vmatpush1.xpose.msra.mxu0 0.0
  %1581 = vmatprep.subr.mxu0 0.0
  %1582 = vmatpush1.xpose.msra.mxu0 0.0
  %1583 = vmatprep.subr.mxu0 0.0
  %1584 = vmatpush1.xpose.msra.mxu0 0.0
  %1585 = vmatprep.subr.mxu0 0.0
  %1586 = vmatpush1.xpose.msra.mxu0 0.0
  %1587 = vmatprep.subr.mxu0 0.0
  %1588 = vmatpush1.xpose.msra.mxu0 0.0
  %1589 = vmatprep.subr.mxu0 0.0
  %1590 = vmatpush1.xpose.msra.mxu0 0.0
  %1591 = vmatprep.subr.mxu0 0.0
  %1592 = vmatpush1.xpose.msra.mxu0 0.0
  %1593 = vmatprep.subr.mxu0 0.0
  %1594 = vmatpush1.xpose.msra.mxu0 0.0
  %1595 = vmatprep.subr.mxu0 0.0
  %1596 = vmatpush1.xpose.msra.mxu0 0.0
  %1597 = vmatprep.subr.mxu0 0.0
  %1598 = vmatpush1.xpose.msra.mxu0 0.0
  %1599 = vmatprep.subr.mxu0 0.0
  %1600 = vmatpush1.xpose.msra.mxu0 0.0
  %1601 = vmatprep.subr.mxu0 0.0
  %1602 = vmatpush1.xpose.msra.mxu0 0.0
  %1603 = vmatprep.subr.mxu0 0.0
  %1604 = vmatpush1.xpose.msra.mxu0 0.0
  %1605 = vmatprep.subr.mxu0 0.0
  %1606 = vmatpush1.xpose.msra.mxu0 0.0
  %1607 = vmatprep.subr.mxu0 0.0
  %1608 = vmatpush1.xpose.msra.mxu0 0.0
  %1609 = vmatprep.subr.mxu0 0.0
  %1610 = vmatpush1.xpose.msra.mxu0 0.0
  %1611 = vmatprep.subr.mxu0 0.0
  %1612 = vmatpush1.xpose.msra.mxu0 0.0
  %1613 = vmatprep.subr.mxu0 0.0
  %1614 = vmatpush1.xpose.msra.mxu0 0.0
  %1615 = vmatprep.subr.mxu0 0.0
  %1616 = vmatpush1.xpose.msra.mxu0 0.0
  %1617 = vmatprep.subr.mxu0 0.0
  %1618 = vmatpush1.xpose.msra.mxu0 0.0
  %1619 = vmatprep.subr.mxu0 0.0
  %1620 = vmatpush1.xpose.msra.mxu0 0.0
  %1621 = vmatprep.mubr.f32.mxu0 0.0
  %1622 = vmatmul.mubr.f32.gmra.mrb[0].mxu0 %v1553
  %v1623 = vpop.f32.mrb[0].mxu0
  %v1624 = vadd.f32 0.0, %v1623
  %v1625 = vpop.f32.mrb[0].mxu0
  %1626 = vdwg.mxu0
  %v1627 = vmul.f32 %v1624, 0.25
  %v1628 = vadd.f32 %v1627, %v1459
  %v1629 = vsel %vm284, %v1628, -inf
  %1630 = vmax.xlane.f32.xlu0 %v1629
  %v1631 = vpop.xlane.xlu0 %1630
  %v1632 = vsub.f32 %v1628, %v1631
  %v1633 = vmul.f32 %v1632, 1.442695
  %v1634 = vpow.pop %v1633
  %v1635 = vsel %vm284, %v1634, 0.0
  %1636 = vadd.xlane.f32.xlu0 %v1635
  %v1637 = vpop.xlane.xlu0 %1636
  %v1638 = vrcp.pop %v1637
  %v1639 = vmul.f32 %v1634, %v1638
  %1640 = vrot.lane.b32.xlu0 %v1369, 48
  %v1641 = vpop.permute.xlu0 %1640
  %v1644 = vsel %vm284, %v1639, 0
  %1646 = vmatprep.subr.mxu0 0.0
  %1647 = vmatpush1.msra.mxu0 %v1641
  %1648 = vmatprep.subr.mxu0 0.0
  %1649 = vmatpush1.msra.mxu0 0.0
  %1650 = vmatprep.subr.mxu0 0.0
  %1651 = vmatpush1.msra.mxu0 0.0
  %1652 = vmatprep.subr.mxu0 0.0
  %1653 = vmatpush1.msra.mxu0 0.0
  %1654 = vmatprep.subr.mxu0 0.0
  %1655 = vmatpush1.msra.mxu0 0.0
  %1656 = vmatprep.subr.mxu0 0.0
  %1657 = vmatpush1.msra.mxu0 0.0
  %1658 = vmatprep.subr.mxu0 0.0
  %1659 = vmatpush1.msra.mxu0 0.0
  %1660 = vmatprep.subr.mxu0 0.0
  %1661 = vmatpush1.msra.mxu0 0.0
  %1662 = vmatprep.subr.mxu0 0.0
  %1663 = vmatpush1.msra.mxu0 0.0
  %1664 = vmatprep.subr.mxu0 0.0
  %1665 = vmatpush1.msra.mxu0 0.0
  %1666 = vmatprep.subr.mxu0 0.0
  %1667 = vmatpush1.msra.mxu0 0.0
  %1668 = vmatprep.subr.mxu0 0.0
  %1669 = vmatpush1.msra.mxu0 0.0
  %1670 = vmatprep.subr.mxu0 0.0
  %1671 = vmatpush1.msra.mxu0 0.0
  %1672 = vmatprep.subr.mxu0 0.0
  %1673 = vmatpush1.msra.mxu0 0.0
  %1674 = vmatprep.subr.mxu0 0.0
  %1675 = vmatpush1.msra.mxu0 0.0
  %1676 = vmatprep.subr.mxu0 0.0
  %1677 = vmatpush1.msra.mxu0 0.0
  %1678 = vmatprep.subr.mxu0 0.0
  %1679 = vmatpush1.msra.mxu0 0.0
  %1680 = vmatprep.subr.mxu0 0.0
  %1681 = vmatpush1.msra.mxu0 0.0
  %1682 = vmatprep.subr.mxu0 0.0
  %1683 = vmatpush1.msra.mxu0 0.0
  %1684 = vmatprep.subr.mxu0 0.0
  %1685 = vmatpush1.msra.mxu0 0.0
  %1686 = vmatprep.subr.mxu0 0.0
  %1687 = vmatpush1.msra.mxu0 0.0
  %1688 = vmatprep.subr.mxu0 0.0
  %1689 = vmatpush1.msra.mxu0 0.0
  %1690 = vmatprep.subr.mxu0 0.0
  %1691 = vmatpush1.msra.mxu0 0.0
  %1692 = vmatprep.subr.mxu0 0.0
  %1693 = vmatpush1.msra.mxu0 0.0
  %1694 = vmatprep.subr.mxu0 0.0
  %1695 = vmatpush1.msra.mxu0 0.0
  %1696 = vmatprep.subr.mxu0 0.0
  %1697 = vmatpush1.msra.mxu0 0.0
  %1698 = vmatprep.subr.mxu0 0.0
  %1699 = vmatpush1.msra.mxu0 0.0
  %1700 = vmatprep.subr.mxu0 0.0
  %1701 = vmatpush1.msra.mxu0 0.0
  %1702 = vmatprep.subr.mxu0 0.0
  %1703 = vmatpush1.msra.mxu0 0.0
  %1704 = vmatprep.subr.mxu0 0.0
  %1705 = vmatpush1.msra.mxu0 0.0
  %1706 = vmatprep.subr.mxu0 0.0
  %1707 = vmatpush1.msra.mxu0 0.0
  %1708 = vmatprep.subr.mxu0 0.0
  %1709 = vmatpush1.msra.mxu0 0.0
  %1710 = vmatprep.mubr.f32.mxu0 0.0
  %1711 = vmatmul.mubr.f32.gmra.mrb[0].mxu0 %v1644
  %v1712 = vpop.f32.mrb[0].mxu0
  %v1713 = vadd.f32 0.0, %v1712
  %v1714 = vpop.f32.mrb[0].mxu0
  %1715 = vdwg.mxu0
  %1717 = vrot.lane.b32.xlu0 %v1713, 16
  %v1718 = vpop.permute.xlu0 %1717
  %1720 = vst.msk [vmem:[#allocation2] sm:$0xff] %vm544, %v1718
  %v1721 = vld [vmem:[%s1 + $0x1] sm:$0x1]
  %1723 = vrot.lane.b32.xlu0 %v1374, 96
  %v1724 = vpop.permute.xlu0 %1723
  %v1725 = vsel %vm203, %v1374, 0
  %v1727 = vsel %vm203, %v1724, 0
  %1729 = vmatprep.subr.mxu0 0.0
  %1730 = vmatpush1.xpose.msra.mxu0 %v1727
  %1731 = vmatprep.subr.mxu0 0.0
  %1732 = vmatpush1.xpose.msra.mxu0 0.0
  %1733 = vmatprep.subr.mxu0 0.0
  %1734 = vmatpush1.xpose.msra.mxu0 0.0
  %1735 = vmatprep.subr.mxu0 0.0
  %1736 = vmatpush1.xpose.msra.mxu0 0.0
  %1737 = vmatprep.subr.mxu0 0.0
  %1738 = vmatpush1.xpose.msra.mxu0 0.0
  %1739 = vmatprep.subr.mxu0 0.0
  %1740 = vmatpush1.xpose.msra.mxu0 0.0
  %1741 = vmatprep.subr.mxu0 0.0
  %1742 = vmatpush1.xpose.msra.mxu0 0.0
  %1743 = vmatprep.subr.mxu0 0.0
  %1744 = vmatpush1.xpose.msra.mxu0 0.0
  %1745 = vmatprep.subr.mxu0 0.0
  %1746 = vmatpush1.xpose.msra.mxu0 0.0
  %1747 = vmatprep.subr.mxu0 0.0
  %1748 = vmatpush1.xpose.msra.mxu0 0.0
  %1749 = vmatprep.subr.mxu0 0.0
  %1750 = vmatpush1.xpose.msra.mxu0 0.0
  %1751 = vmatprep.subr.mxu0 0.0
  %1752 = vmatpush1.xpose.msra.mxu0 0.0
  %1753 = vmatprep.subr.mxu0 0.0
  %1754 = vmatpush1.xpose.msra.mxu0 0.0
  %1755 = vmatprep.subr.mxu0 0.0
  %1756 = vmatpush1.xpose.msra.mxu0 0.0
  %1757 = vmatprep.subr.mxu0 0.0
  %1758 = vmatpush1.xpose.msra.mxu0 0.0
  %1759 = vmatprep.subr.mxu0 0.0
  %1760 = vmatpush1.xpose.msra.mxu0 0.0
  %1761 = vmatprep.subr.mxu0 0.0
  %1762 = vmatpush1.xpose.msra.mxu0 0.0
  %1763 = vmatprep.subr.mxu0 0.0
  %1764 = vmatpush1.xpose.msra.mxu0 0.0
  %1765 = vmatprep.subr.mxu0 0.0
  %1766 = vmatpush1.xpose.msra.mxu0 0.0
  %1767 = vmatprep.subr.mxu0 0.0
  %1768 = vmatpush1.xpose.msra.mxu0 0.0
  %1769 = vmatprep.subr.mxu0 0.0
  %1770 = vmatpush1.xpose.msra.mxu0 0.0
  %1771 = vmatprep.subr.mxu0 0.0
  %1772 = vmatpush1.xpose.msra.mxu0 0.0
  %1773 = vmatprep.subr.mxu0 0.0
  %1774 = vmatpush1.xpose.msra.mxu0 0.0
  %1775 = vmatprep.subr.mxu0 0.0
  %1776 = vmatpush1.xpose.msra.mxu0 0.0
  %1777 = vmatprep.subr.mxu0 0.0
  %1778 = vmatpush1.xpose.msra.mxu0 0.0
  %1779 = vmatprep.subr.mxu0 0.0
  %1780 = vmatpush1.xpose.msra.mxu0 0.0
  %1781 = vmatprep.subr.mxu0 0.0
  %1782 = vmatpush1.xpose.msra.mxu0 0.0
  %1783 = vmatprep.subr.mxu0 0.0
  %1784 = vmatpush1.xpose.msra.mxu0 0.0
  %1785 = vmatprep.subr.mxu0 0.0
  %1786 = vmatpush1.xpose.msra.mxu0 0.0
  %1787 = vmatprep.subr.mxu0 0.0
  %1788 = vmatpush1.xpose.msra.mxu0 0.0
  %1789 = vmatprep.subr.mxu0 0.0
  %1790 = vmatpush1.xpose.msra.mxu0 0.0
  %1791 = vmatprep.subr.mxu0 0.0
  %1792 = vmatpush1.xpose.msra.mxu0 0.0
  %1793 = vmatprep.mubr.f32.mxu0 0.0
  %1794 = vmatmul.mubr.f32.gmra.mrb[0].mxu0 %v1725
  %v1795 = vpop.f32.mrb[0].mxu0
  %v1796 = vadd.f32 0.0, %v1795
  %v1797 = vpop.f32.mrb[0].mxu0
  %1798 = vdwg.mxu0
  %v1799 = vmul.f32 %v1796, 0.25
  %v1800 = vlaneseq
  %v1801 = vshrl.u32 %v1800, 7
  %v1802 = vsub.s32 0, %v1801
  %v1803 = vrot.slane %v1721, %v1802
  %v1804 = vadd.f32 %v1799, %v1803
  %v1805 = vsel %vm284, %v1804, -inf
  %1806 = vmax.xlane.f32.xlu0 %v1805
  %v1807 = vpop.xlane.xlu0 %1806
  %v1808 = vsub.f32 %v1804, %v1807
  %v1809 = vmul.f32 %v1808, 1.442695
  %v1810 = vpow.pop %v1809
  %v1811 = vsel %vm284, %v1810, 0.0
  %1812 = vadd.xlane.f32.xlu0 %v1811
  %v1813 = vpop.xlane.xlu0 %1812
  %v1814 = vrcp.pop %v1813
  %v1815 = vmul.f32 %v1810, %v1814
  %1816 = vrot.lane.b32.xlu0 %v1374, 64
  %v1817 = vpop.permute.xlu0 %1816
  %v1820 = vsel %vm284, %v1815, 0
  %1822 = vmatprep.subr.mxu0 0.0
  %1823 = vmatpush1.msra.mxu0 %v1817
  %1824 = vmatprep.subr.mxu0 0.0
  %1825 = vmatpush1.msra.mxu0 0.0
  %1826 = vmatprep.subr.mxu0 0.0
  %1827 = vmatpush1.msra.mxu0 0.0
  %1828 = vmatprep.subr.mxu0 0.0
  %1829 = vmatpush1.msra.mxu0 0.0
  %1830 = vmatprep.subr.mxu0 0.0
  %1831 = vmatpush1.msra.mxu0 0.0
  %1832 = vmatprep.subr.mxu0 0.0
  %1833 = vmatpush1.msra.mxu0 0.0
  %1834 = vmatprep.subr.mxu0 0.0
  %1835 = vmatpush1.msra.mxu0 0.0
  %1836 = vmatprep.subr.mxu0 0.0
  %1837 = vmatpush1.msra.mxu0 0.0
  %1838 = vmatprep.subr.mxu0 0.0
  %1839 = vmatpush1.msra.mxu0 0.0
  %1840 = vmatprep.subr.mxu0 0.0
  %1841 = vmatpush1.msra.mxu0 0.0
  %1842 = vmatprep.subr.mxu0 0.0
  %1843 = vmatpush1.msra.mxu0 0.0
  %1844 = vmatprep.subr.mxu0 0.0
  %1845 = vmatpush1.msra.mxu0 0.0
  %1846 = vmatprep.subr.mxu0 0.0
  %1847 = vmatpush1.msra.mxu0 0.0
  %1848 = vmatprep.subr.mxu0 0.0
  %1849 = vmatpush1.msra.mxu0 0.0
  %1850 = vmatprep.subr.mxu0 0.0
  %1851 = vmatpush1.msra.mxu0 0.0
  %1852 = vmatprep.subr.mxu0 0.0
  %1853 = vmatpush1.msra.mxu0 0.0
  %1854 = vmatprep.subr.mxu0 0.0
  %1855 = vmatpush1.msra.mxu0 0.0
  %1856 = vmatprep.subr.mxu0 0.0
  %1857 = vmatpush1.msra.mxu0 0.0
  %1858 = vmatprep.subr.mxu0 0.0
  %1859 = vmatpush1.msra.mxu0 0.0
  %1860 = vmatprep.subr.mxu0 0.0
  %1861 = vmatpush1.msra.mxu0 0.0
  %1862 = vmatprep.subr.mxu0 0.0
  %1863 = vmatpush1.msra.mxu0 0.0
  %1864 = vmatprep.subr.mxu0 0.0
  %1865 = vmatpush1.msra.mxu0 0.0
  %1866 = vmatprep.subr.mxu0 0.0
  %1867 = vmatpush1.msra.mxu0 0.0
  %1868 = vmatprep.subr.mxu0 0.0
  %1869 = vmatpush1.msra.mxu0 0.0
  %1870 = vmatprep.subr.mxu0 0.0
  %1871 = vmatpush1.msra.mxu0 0.0
  %1872 = vmatprep.subr.mxu0 0.0
  %1873 = vmatpush1.msra.mxu0 0.0
  %1874 = vmatprep.subr.mxu0 0.0
  %1875 = vmatpush1.msra.mxu0 0.0
  %1876 = vmatprep.subr.mxu0 0.0
  %1877 = vmatpush1.msra.mxu0 0.0
  %1878 = vmatprep.subr.mxu0 0.0
  %1879 = vmatpush1.msra.mxu0 0.0
  %1880 = vmatprep.subr.mxu0 0.0
  %1881 = vmatpush1.msra.mxu0 0.0
  %1882 = vmatprep.subr.mxu0 0.0
  %1883 = vmatpush1.msra.mxu0 0.0
  %1884 = vmatprep.subr.mxu0 0.0
  %1885 = vmatpush1.msra.mxu0 0.0
  %1886 = vmatprep.mubr.f32.mxu0 0.0
  %1887 = vmatmul.mubr.f32.gmra.mrb[0].mxu0 %v1820
  %v1888 = vpop.f32.mrb[0].mxu0
  %v1889 = vadd.f32 0.0, %v1888
  %v1890 = vpop.f32.mrb[0].mxu0
  %1891 = vdwg.mxu0
  %1892 = vst.msk [vmem:[#allocation2 + $0x8] sm:$0xff] %vm203, %v1889
  %1893 = vrot.lane.b32.xlu0 %v1374, 112
  %v1894 = vpop.permute.xlu0 %1893
  %1895 = vrot.lane.b32.xlu0 %v1374, 80
  %v1896 = vpop.permute.xlu0 %1895
  %v1897 = vsel %vm203, %v1894, 0
  %v1899 = vsel %vm203, %v1896, 0
  %1901 = vmatprep.subr.mxu0 0.0
  %1902 = vmatpush1.xpose.msra.mxu0 %v1899
  %1903 = vmatprep.subr.mxu0 0.0
  %1904 = vmatpush1.xpose.msra.mxu0 0.0
  %1905 = vmatprep.subr.mxu0 0.0
  %1906 = vmatpush1.xpose.msra.mxu0 0.0
  %1907 = vmatprep.subr.mxu0 0.0
  %1908 = vmatpush1.xpose.msra.mxu0 0.0
  %1909 = vmatprep.subr.mxu0 0.0
  %1910 = vmatpush1.xpose.msra.mxu0 0.0
  %1911 = vmatprep.subr.mxu0 0.0
  %1912 = vmatpush1.xpose.msra.mxu0 0.0
  %1913 = vmatprep.subr.mxu0 0.0
  %1914 = vmatpush1.xpose.msra.mxu0 0.0
  %1915 = vmatprep.subr.mxu0 0.0
  %1916 = vmatpush1.xpose.msra.mxu0 0.0
  %1917 = vmatprep.subr.mxu0 0.0
  %1918 = vmatpush1.xpose.msra.mxu0 0.0
  %1919 = vmatprep.subr.mxu0 0.0
  %1920 = vmatpush1.xpose.msra.mxu0 0.0
  %1921 = vmatprep.subr.mxu0 0.0
  %1922 = vmatpush1.xpose.msra.mxu0 0.0
  %1923 = vmatprep.subr.mxu0 0.0
  %1924 = vmatpush1.xpose.msra.mxu0 0.0
  %1925 = vmatprep.subr.mxu0 0.0
  %1926 = vmatpush1.xpose.msra.mxu0 0.0
  %1927 = vmatprep.subr.mxu0 0.0
  %1928 = vmatpush1.xpose.msra.mxu0 0.0
  %1929 = vmatprep.subr.mxu0 0.0
  %1930 = vmatpush1.xpose.msra.mxu0 0.0
  %1931 = vmatprep.subr.mxu0 0.0
  %1932 = vmatpush1.xpose.msra.mxu0 0.0
  %1933 = vmatprep.subr.mxu0 0.0
  %1934 = vmatpush1.xpose.msra.mxu0 0.0
  %1935 = vmatprep.subr.mxu0 0.0
  %1936 = vmatpush1.xpose.msra.mxu0 0.0
  %1937 = vmatprep.subr.mxu0 0.0
  %1938 = vmatpush1.xpose.msra.mxu0 0.0
  %1939 = vmatprep.subr.mxu0 0.0
  %1940 = vmatpush1.xpose.msra.mxu0 0.0
  %1941 = vmatprep.subr.mxu0 0.0
  %1942 = vmatpush1.xpose.msra.mxu0 0.0
  %1943 = vmatprep.subr.mxu0 0.0
  %1944 = vmatpush1.xpose.msra.mxu0 0.0
  %1945 = vmatprep.subr.mxu0 0.0
  %1946 = vmatpush1.xpose.msra.mxu0 0.0
  %1947 = vmatprep.subr.mxu0 0.0
  %1948 = vmatpush1.xpose.msra.mxu0 0.0
  %1949 = vmatprep.subr.mxu0 0.0
  %1950 = vmatpush1.xpose.msra.mxu0 0.0
  %1951 = vmatprep.subr.mxu0 0.0
  %1952 = vmatpush1.xpose.msra.mxu0 0.0
  %1953 = vmatprep.subr.mxu0 0.0
  %1954 = vmatpush1.xpose.msra.mxu0 0.0
  %1955 = vmatprep.subr.mxu0 0.0
  %1956 = vmatpush1.xpose.msra.mxu0 0.0
  %1957 = vmatprep.subr.mxu0 0.0
  %1958 = vmatpush1.xpose.msra.mxu0 0.0
  %1959 = vmatprep.subr.mxu0 0.0
  %1960 = vmatpush1.xpose.msra.mxu0 0.0
  %1961 = vmatprep.subr.mxu0 0.0
  %1962 = vmatpush1.xpose.msra.mxu0 0.0
  %1963 = vmatprep.subr.mxu0 0.0
  %1964 = vmatpush1.xpose.msra.mxu0 0.0
  %1965 = vmatprep.mubr.f32.mxu0 0.0
  %1966 = vmatmul.mubr.f32.gmra.mrb[0].mxu0 %v1897
  %v1967 = vpop.f32.mrb[0].mxu0
  %v1968 = vadd.f32 0.0, %v1967
  %v1969 = vpop.f32.mrb[0].mxu0
  %1970 = vdwg.mxu0
  %v1971 = vmul.f32 %v1968, 0.25
  %v1972 = vadd.f32 %v1971, %v1803
  %v1973 = vsel %vm284, %v1972, -inf
  %1974 = vmax.xlane.f32.xlu0 %v1973
  %v1975 = vpop.xlane.xlu0 %1974
  %v1976 = vsub.f32 %v1972, %v1975
  %v1977 = vmul.f32 %v1976, 1.442695
  %v1978 = vpow.pop %v1977
  %v1979 = vsel %vm284, %v1978, 0.0
  %1980 = vadd.xlane.f32.xlu0 %v1979
  %v1981 = vpop.xlane.xlu0 %1980
  %v1982 = vrcp.pop %v1981
  %v1983 = vmul.f32 %v1978, %v1982
  %1984 = vrot.lane.b32.xlu0 %v1374, 48
  %v1985 = vpop.permute.xlu0 %1984
  %v1988 = vsel %vm284, %v1983, 0
  %1990 = vmatprep.subr.mxu0 0.0
  %1991 = vmatpush1.msra.mxu0 %v1985
  %1992 = vmatprep.subr.mxu0 0.0
  %1993 = vmatpush1.msra.mxu0 0.0
  %1994 = vmatprep.subr.mxu0 0.0
  %1995 = vmatpush1.msra.mxu0 0.0
  %1996 = vmatprep.subr.mxu0 0.0
  %1997 = vmatpush1.msra.mxu0 0.0
  %1998 = vmatprep.subr.mxu0 0.0
  %1999 = vmatpush1.msra.mxu0 0.0
  %2000 = vmatprep.subr.mxu0 0.0
  %2001 = vmatpush1.msra.mxu0 0.0
  %2002 = vmatprep.subr.mxu0 0.0
  %2003 = vmatpush1.msra.mxu0 0.0
  %2004 = vmatprep.subr.mxu0 0.0
  %2005 = vmatpush1.msra.mxu0 0.0
  %2006 = vmatprep.subr.mxu0 0.0
  %2007 = vmatpush1.msra.mxu0 0.0
  %2008 = vmatprep.subr.mxu0 0.0
  %2009 = vmatpush1.msra.mxu0 0.0
  %2010 = vmatprep.subr.mxu0 0.0
  %2011 = vmatpush1.msra.mxu0 0.0
  %2012 = vmatprep.subr.mxu0 0.0
  %2013 = vmatpush1.msra.mxu0 0.0
  %2014 = vmatprep.subr.mxu0 0.0
  %2015 = vmatpush1.msra.mxu0 0.0
  %2016 = vmatprep.subr.mxu0 0.0
  %2017 = vmatpush1.msra.mxu0 0.0
  %2018 = vmatprep.subr.mxu0 0.0
  %2019 = vmatpush1.msra.mxu0 0.0
  %2020 = vmatprep.subr.mxu0 0.0
  %2021 = vmatpush1.msra.mxu0 0.0
  %2022 = vmatprep.subr.mxu0 0.0
  %2023 = vmatpush1.msra.mxu0 0.0
  %2024 = vmatprep.subr.mxu0 0.0
  %2025 = vmatpush1.msra.mxu0 0.0
  %2026 = vmatprep.subr.mxu0 0.0
  %2027 = vmatpush1.msra.mxu0 0.0
  %2028 = vmatprep.subr.mxu0 0.0
  %2029 = vmatpush1.msra.mxu0 0.0
  %2030 = vmatprep.subr.mxu0 0.0
  %2031 = vmatpush1.msra.mxu0 0.0
  %2032 = vmatprep.subr.mxu0 0.0
  %2033 = vmatpush1.msra.mxu0 0.0
  %2034 = vmatprep.subr.mxu0 0.0
  %2035 = vmatpush1.msra.mxu0 0.0
  %2036 = vmatprep.subr.mxu0 0.0
  %2037 = vmatpush1.msra.mxu0 0.0
  %2038 = vmatprep.subr.mxu0 0.0
  %2039 = vmatpush1.msra.mxu0 0.0
  %2040 = vmatprep.subr.mxu0 0.0
  %2041 = vmatpush1.msra.mxu0 0.0
  %2042 = vmatprep.subr.mxu0 0.0
  %2043 = vmatpush1.msra.mxu0 0.0
  %2044 = vmatprep.subr.mxu0 0.0
  %2045 = vmatpush1.msra.mxu0 0.0
  %2046 = vmatprep.subr.mxu0 0.0
  %2047 = vmatpush1.msra.mxu0 0.0
  %2048 = vmatprep.subr.mxu0 0.0
  %2049 = vmatpush1.msra.mxu0 0.0
  %2050 = vmatprep.subr.mxu0 0.0
  %2051 = vmatpush1.msra.mxu0 0.0
  %2052 = vmatprep.subr.mxu0 0.0
  %2053 = vmatpush1.msra.mxu0 0.0
  %2054 = vmatprep.mubr.f32.mxu0 0.0
  %2055 = vmatmul.mubr.f32.gmra.mrb[0].mxu0 %v1988
  %v2056 = vpop.f32.mrb[0].mxu0
  %v2057 = vadd.f32 0.0, %v2056
  %v2058 = vpop.f32.mrb[0].mxu0
  %2059 = vdwg.mxu0
  %2061 = vrot.lane.b32.xlu0 %v2057, 16
  %v2062 = vpop.permute.xlu0 %2061
  %2064 = vst.msk [vmem:[#allocation2 + $0x8] sm:$0xff] %vm544, %v2062
  %v2065 = vld [vmem:[#allocation2] sm:$0xff]
  %v2066 = vld [vmem:[#allocation2 + $0x8] sm:$0xff]
  %s2067 = scalar_lea.vmem %s6, 32
  %v2068 = vld [vmem:[%s2067] sm:$0xff]
  %v2069 = vld [vmem:[%s2067 + $0x8] sm:$0xff]
  %v2070 = vld [vmem:[%s2067 + $0x10] sm:$0xff]
  %v2071 = vld [vmem:[%s2067 + $0x18] sm:$0xff]
  %s2072 = scalar_lea.vmem %s7, 1
  %v2073 = vld [vmem:[%s2072] sm:$0x1]
  %v2075 = vlaneseq
  %v2076 = vshrl.u32 %v2075, 7
  %v2077 = vsub.s32 0, %v2076
  %v2078 = vrot.slane %v2073, %v2077
  %v2081 = vsel %vm63, %v2065, 0
  %v2084 = vsel %vm63, %v2066, 0
  %2086 = vmatprep.subr.mxu0 0.0
  %2087 = vmatpush1.msra.mxu0 %v2068
  %2088 = vmatprep.subr.mxu0 0.0
  %2089 = vmatpush1.msra.mxu0 %v2069
  %2090 = vmatprep.subr.mxu0 0.0
  %2091 = vmatpush1.msra.mxu0 %v2070
  %2092 = vmatprep.subr.mxu0 0.0
  %2093 = vmatpush1.msra.mxu0 %v2071
  %2094 = vmatprep.subr.mxu0 0.0
  %2095 = vmatpush1.msra.mxu0 0.0
  %2096 = vmatprep.subr.mxu0 0.0
  %2097 = vmatpush1.msra.mxu0 0.0
  %2098 = vmatprep.subr.mxu0 0.0
  %2099 = vmatpush1.msra.mxu0 0.0
  %2100 = vmatprep.subr.mxu0 0.0
  %2101 = vmatpush1.msra.mxu0 0.0
  %2102 = vmatprep.subr.mxu0 0.0
  %2103 = vmatpush1.msra.mxu0 0.0
  %2104 = vmatprep.subr.mxu0 0.0
  %2105 = vmatpush1.msra.mxu0 0.0
  %2106 = vmatprep.subr.mxu0 0.0
  %2107 = vmatpush1.msra.mxu0 0.0
  %2108 = vmatprep.subr.mxu0 0.0
  %2109 = vmatpush1.msra.mxu0 0.0
  %2110 = vmatprep.subr.mxu0 0.0
  %2111 = vmatpush1.msra.mxu0 0.0
  %2112 = vmatprep.subr.mxu0 0.0
  %2113 = vmatpush1.msra.mxu0 0.0
  %2114 = vmatprep.subr.mxu0 0.0
  %2115 = vmatpush1.msra.mxu0 0.0
  %2116 = vmatprep.subr.mxu0 0.0
  %2117 = vmatpush1.msra.mxu0 0.0
  %2118 = vmatprep.subr.mxu0 0.0
  %2119 = vmatpush1.msra.mxu0 0.0
  %2120 = vmatprep.subr.mxu0 0.0
  %2121 = vmatpush1.msra.mxu0 0.0
  %2122 = vmatprep.subr.mxu0 0.0
  %2123 = vmatpush1.msra.mxu0 0.0
  %2124 = vmatprep.subr.mxu0 0.0
  %2125 = vmatpush1.msra.mxu0 0.0
  %2126 = vmatprep.subr.mxu0 0.0
  %2127 = vmatpush1.msra.mxu0 0.0
  %2128 = vmatprep.subr.mxu0 0.0
  %2129 = vmatpush1.msra.mxu0 0.0
  %2130 = vmatprep.subr.mxu0 0.0
  %2131 = vmatpush1.msra.mxu0 0.0
  %2132 = vmatprep.subr.mxu0 0.0
  %2133 = vmatpush1.msra.mxu0 0.0
  %2134 = vmatprep.subr.mxu0 0.0
  %2135 = vmatpush1.msra.mxu0 0.0
  %2136 = vmatprep.subr.mxu0 0.0
  %2137 = vmatpush1.msra.mxu0 0.0
  %2138 = vmatprep.subr.mxu0 0.0
  %2139 = vmatpush1.msra.mxu0 0.0
  %2140 = vmatprep.subr.mxu0 0.0
  %2141 = vmatpush1.msra.mxu0 0.0
  %2142 = vmatprep.subr.mxu0 0.0
  %2143 = vmatpush1.msra.mxu0 0.0
  %2144 = vmatprep.subr.mxu0 0.0
  %2145 = vmatpush1.msra.mxu0 0.0
  %2146 = vmatprep.subr.mxu0 0.0
  %2147 = vmatpush1.msra.mxu0 0.0
  %2148 = vmatprep.subr.mxu0 0.0
  %2149 = vmatpush1.msra.mxu0 0.0
  %2150 = vmatprep.mubr.f32.mxu0 0.0
  %2151 = vmatmul.mubr.f32.gmra.mrb[0].mxu0 %v2081
  %v2152 = vpop.f32.mrb[0].mxu0
  %v2153 = vadd.f32 %v2078, %v2152
  %v2154 = vpop.f32.mrb[0].mxu0
  %2155 = vmatprep.mubr.f32.mxu0 0.0
  %2156 = vmatmul.mubr.f32.gmra.mrb[0].mxu0 %v2084
  %v2157 = vpop.f32.mrb[0].mxu0
  %v2158 = vadd.f32 %v2078, %v2157
  %v2159 = vpop.f32.mrb[0].mxu0
  %2160 = vdwg.mxu0
  %v2161 = vadd.f32 %v2153, %v1281
  %v2162 = vadd.f32 %v2158, %v1282
  %s2163 = scalar_lea.vmem %s8, 1
  %v2164 = vld [vmem:[%s2163] sm:$0x1]
  %s2165 = scalar_lea.vmem %s9, 1
  %v2166 = vld [vmem:[%s2165] sm:$0x1]
  %v2167 = vsel %vm63, %v2161, 0.0
  %2168 = vadd.xlane.f32.xlu0 %v2167
  %v2169 = vpop.xlane.xlu0 %2168
  %v2170 = vsel %vm63, %v2162, 0.0
  %2171 = vadd.xlane.f32.xlu0 %v2170
  %v2172 = vpop.xlane.xlu0 %2171
  %v2173 = vmul.f32 %v2169, %v70
  %v2174 = vmul.f32 %v2172, %v70
  %v2175 = vsub.f32 %v2161, %v2173
  %v2176 = vsub.f32 %v2162, %v2174
  %v2177 = vmul.f32 %v2175, %v2175
  %v2178 = vmul.f32 %v2176, %v2176
  %v2179 = vsel %vm63, %v2177, 0.0
  %2180 = vadd.xlane.f32.xlu0 %v2179
  %v2181 = vpop.xlane.xlu0 %2180
  %v2182 = vsel %vm63, %v2178, 0.0
  %2183 = vadd.xlane.f32.xlu0 %v2182
  %v2184 = vpop.xlane.xlu0 %2183
  %v2185 = vmul.f32 %v2181, %v70
  %v2186 = vmul.f32 %v2184, %v70
  %v2187 = vadd.f32 %v2185, 1e-12
  %v2188 = vadd.f32 %v2186, 1e-12
  %v2189 = vrsqrt.pop %v2187
  %v2190 = vrsqrt.pop %v2188
  %v2191 = vmul.f32 %v2175, %v2189
  %v2192 = vmul.f32 %v2176, %v2190
  %v2194 = vlaneseq
  %v2195 = vshrl.u32 %v2194, 7
  %v2196 = vsub.s32 0, %v2195
  %v2197 = vrot.slane %v2164, %v2196
  %v2199 = vmul.f32 %v2191, %v2197
  %v2200 = vmul.f32 %v2192, %v2197
  %v2202 = vlaneseq
  %v2203 = vshrl.u32 %v2202, 7
  %v2204 = vsub.s32 0, %v2203
  %v2205 = vrot.slane %v2166, %v2204
  %v2207 = vadd.f32 %v2199, %v2205
  %v2208 = vadd.f32 %v2200, %v2205
  %s2209 = scalar_lea.vmem %s10, 32
  %v2210 = vld [vmem:[%s2209] sm:$0xff]
  %v2211 = vld [vmem:[%s2209 + $0x8] sm:$0xff]
  %v2212 = vld [vmem:[%s2209 + $0x10] sm:$0xff]
  %v2213 = vld [vmem:[%s2209 + $0x18] sm:$0xff]
  %s2214 = scalar_lea.vmem %s11, 1
  %v2215 = vld [vmem:[%s2214] sm:$0x1]
  %v2217 = vlaneseq
  %v2218 = vshrl.u32 %v2217, 7
  %v2219 = vsub.s32 0, %v2218
  %v2220 = vrot.slane %v2215, %v2219
  %v2223 = vsel %vm63, %v2207, 0
  %v2226 = vsel %vm63, %v2208, 0
  %2228 = vmatprep.subr.mxu0 0.0
  %2229 = vmatpush1.msra.mxu0 %v2210
  %2230 = vmatprep.subr.mxu0 0.0
  %2231 = vmatpush1.msra.mxu0 %v2211
  %2232 = vmatprep.subr.mxu0 0.0
  %2233 = vmatpush1.msra.mxu0 %v2212
  %2234 = vmatprep.subr.mxu0 0.0
  %2235 = vmatpush1.msra.mxu0 %v2213
  %2236 = vmatprep.subr.mxu0 0.0
  %2237 = vmatpush1.msra.mxu0 0.0
  %2238 = vmatprep.subr.mxu0 0.0
  %2239 = vmatpush1.msra.mxu0 0.0
  %2240 = vmatprep.subr.mxu0 0.0
  %2241 = vmatpush1.msra.mxu0 0.0
  %2242 = vmatprep.subr.mxu0 0.0
  %2243 = vmatpush1.msra.mxu0 0.0
  %2244 = vmatprep.subr.mxu0 0.0
  %2245 = vmatpush1.msra.mxu0 0.0
  %2246 = vmatprep.subr.mxu0 0.0
  %2247 = vmatpush1.msra.mxu0 0.0
  %2248 = vmatprep.subr.mxu0 0.0
  %2249 = vmatpush1.msra.mxu0 0.0
  %2250 = vmatprep.subr.mxu0 0.0
  %2251 = vmatpush1.msra.mxu0 0.0
  %2252 = vmatprep.subr.mxu0 0.0
  %2253 = vmatpush1.msra.mxu0 0.0
  %2254 = vmatprep.subr.mxu0 0.0
  %2255 = vmatpush1.msra.mxu0 0.0
  %2256 = vmatprep.subr.mxu0 0.0
  %2257 = vmatpush1.msra.mxu0 0.0
  %2258 = vmatprep.subr.mxu0 0.0
  %2259 = vmatpush1.msra.mxu0 0.0
  %2260 = vmatprep.subr.mxu0 0.0
  %2261 = vmatpush1.msra.mxu0 0.0
  %2262 = vmatprep.subr.mxu0 0.0
  %2263 = vmatpush1.msra.mxu0 0.0
  %2264 = vmatprep.subr.mxu0 0.0
  %2265 = vmatpush1.msra.mxu0 0.0
  %2266 = vmatprep.subr.mxu0 0.0
  %2267 = vmatpush1.msra.mxu0 0.0
  %2268 = vmatprep.subr.mxu0 0.0
  %2269 = vmatpush1.msra.mxu0 0.0
  %2270 = vmatprep.subr.mxu0 0.0
  %2271 = vmatpush1.msra.mxu0 0.0
  %2272 = vmatprep.subr.mxu0 0.0
  %2273 = vmatpush1.msra.mxu0 0.0
  %2274 = vmatprep.subr.mxu0 0.0
  %2275 = vmatpush1.msra.mxu0 0.0
  %2276 = vmatprep.subr.mxu0 0.0
  %2277 = vmatpush1.msra.mxu0 0.0
  %2278 = vmatprep.subr.mxu0 0.0
  %2279 = vmatpush1.msra.mxu0 0.0
  %2280 = vmatprep.subr.mxu0 0.0
  %2281 = vmatpush1.msra.mxu0 0.0
  %2282 = vmatprep.subr.mxu0 0.0
  %2283 = vmatpush1.msra.mxu0 0.0
  %2284 = vmatprep.subr.mxu0 0.0
  %2285 = vmatpush1.msra.mxu0 0.0
  %2286 = vmatprep.subr.mxu0 0.0
  %2287 = vmatpush1.msra.mxu0 0.0
  %2288 = vmatprep.subr.mxu0 0.0
  %2289 = vmatpush1.msra.mxu0 0.0
  %2290 = vmatprep.subr.mxu0 0.0
  %2291 = vmatpush1.msra.mxu0 0.0
  %2292 = vmatprep.mubr.f32.mxu0 0.0
  %2293 = vmatmul.mubr.f32.gmra.mrb[0].mxu0 %v2223
  %v2294 = vpop.f32.mrb[0].mxu0
  %v2295 = vadd.f32 %v2220, %v2294
  %v2296 = vpop.f32.mrb[0].mxu0
  %2297 = vmatprep.mubr.f32.mxu0 0.0
  %2298 = vmatmul.mubr.f32.gmra.mrb[0].mxu0 %v2226
  %v2299 = vpop.f32.mrb[0].mxu0
  %v2300 = vadd.f32 %v2220, %v2299
  %v2301 = vpop.f32.mrb[0].mxu0
  %2302 = vdwg.mxu0
  %v2303 = vmul.f32 %v2295, %v2295
  %v2304 = vmul.f32 %v2300, %v2300
  %v2305 = vmul.f32 %v2295, %v2303
  %v2306 = vmul.f32 %v2300, %v2304
  %v2307 = vmul.f32 %v2305, 0.044715
  %v2308 = vmul.f32 %v2306, 0.044715
  %v2309 = vadd.f32 %v2295, %v2307
  %v2310 = vadd.f32 %v2300, %v2308
  %v2311 = vmul.f32 %v2309, 0.7978846
  %v2312 = vmul.f32 %v2310, 0.7978846
  %v2313 = vtanh.pop %v2311
  %v2314 = vtanh.pop %v2312
  %v2315 = vadd.f32 %v2313, 1.0
  %v2316 = vadd.f32 %v2314, 1.0
  %v2317 = vmul.f32 %v2315, 0.5
  %v2318 = vmul.f32 %v2316, 0.5
  %v2319 = vmul.f32 %v2295, %v2317
  %v2320 = vmul.f32 %v2300, %v2318
  %s2321 = scalar_lea.vmem %s12, 64
  %v2322 = vld [vmem:[%s2321] sm:$0xff]
  %v2323 = vld [vmem:[%s2321 + $0x8] sm:$0xff]
  %v2324 = vld [vmem:[%s2321 + $0x10] sm:$0xff]
  %v2325 = vld [vmem:[%s2321 + $0x18] sm:$0xff]
  %v2326 = vld [vmem:[%s2321 + $0x20] sm:$0xff]
  %v2327 = vld [vmem:[%s2321 + $0x28] sm:$0xff]
  %v2328 = vld [vmem:[%s2321 + $0x30] sm:$0xff]
  %v2329 = vld [vmem:[%s2321 + $0x38] sm:$0xff]
  %s2330 = scalar_lea.vmem %s13, 1
  %v2331 = vld [vmem:[%s2330] sm:$0x1]
  %v2333 = vlaneseq
  %v2334 = vshrl.u32 %v2333, 7
  %v2335 = vsub.s32 0, %v2334
  %v2336 = vrot.slane %v2331, %v2335
  %v2339 = vsel %vm1155, %v2319, 0
  %v2342 = vsel %vm1155, %v2320, 0
  %2344 = vmatprep.subr.mxu0 0.0
  %2345 = vmatpush1.msra.mxu0 %v2322
  %2346 = vmatprep.subr.mxu0 0.0
  %2347 = vmatpush1.msra.mxu0 %v2323
  %2348 = vmatprep.subr.mxu0 0.0
  %2349 = vmatpush1.msra.mxu0 %v2324
  %2350 = vmatprep.subr.mxu0 0.0
  %2351 = vmatpush1.msra.mxu0 %v2325
  %2352 = vmatprep.subr.mxu0 0.0
  %2353 = vmatpush1.msra.mxu0 %v2326
  %2354 = vmatprep.subr.mxu0 0.0
  %2355 = vmatpush1.msra.mxu0 %v2327
  %2356 = vmatprep.subr.mxu0 0.0
  %2357 = vmatpush1.msra.mxu0 %v2328
  %2358 = vmatprep.subr.mxu0 0.0
  %2359 = vmatpush1.msra.mxu0 %v2329
  %2360 = vmatprep.subr.mxu0 0.0
  %2361 = vmatpush1.msra.mxu0 0.0
  %2362 = vmatprep.subr.mxu0 0.0
  %2363 = vmatpush1.msra.mxu0 0.0
  %2364 = vmatprep.subr.mxu0 0.0
  %2365 = vmatpush1.msra.mxu0 0.0
  %2366 = vmatprep.subr.mxu0 0.0
  %2367 = vmatpush1.msra.mxu0 0.0
  %2368 = vmatprep.subr.mxu0 0.0
  %2369 = vmatpush1.msra.mxu0 0.0
  %2370 = vmatprep.subr.mxu0 0.0
  %2371 = vmatpush1.msra.mxu0 0.0
  %2372 = vmatprep.subr.mxu0 0.0
  %2373 = vmatpush1.msra.mxu0 0.0
  %2374 = vmatprep.subr.mxu0 0.0
  %2375 = vmatpush1.msra.mxu0 0.0
  %2376 = vmatprep.subr.mxu0 0.0
  %2377 = vmatpush1.msra.mxu0 0.0
  %2378 = vmatprep.subr.mxu0 0.0
  %2379 = vmatpush1.msra.mxu0 0.0
  %2380 = vmatprep.subr.mxu0 0.0
  %2381 = vmatpush1.msra.mxu0 0.0
  %2382 = vmatprep.subr.mxu0 0.0
  %2383 = vmatpush1.msra.mxu0 0.0
  %2384 = vmatprep.subr.mxu0 0.0
  %2385 = vmatpush1.msra.mxu0 0.0
  %2386 = vmatprep.subr.mxu0 0.0
  %2387 = vmatpush1.msra.mxu0 0.0
  %2388 = vmatprep.subr.mxu0 0.0
  %2389 = vmatpush1.msra.mxu0 0.0
  %2390 = vmatprep.subr.mxu0 0.0
  %2391 = vmatpush1.msra.mxu0 0.0
  %2392 = vmatprep.subr.mxu0 0.0
  %2393 = vmatpush1.msra.mxu0 0.0
  %2394 = vmatprep.subr.mxu0 0.0
  %2395 = vmatpush1.msra.mxu0 0.0
  %2396 = vmatprep.subr.mxu0 0.0
  %2397 = vmatpush1.msra.mxu0 0.0
  %2398 = vmatprep.subr.mxu0 0.0
  %2399 = vmatpush1.msra.mxu0 0.0
  %2400 = vmatprep.subr.mxu0 0.0
  %2401 = vmatpush1.msra.mxu0 0.0
  %2402 = vmatprep.subr.mxu0 0.0
  %2403 = vmatpush1.msra.mxu0 0.0
  %2404 = vmatprep.subr.mxu0 0.0
  %2405 = vmatpush1.msra.mxu0 0.0
  %2406 = vmatprep.subr.mxu0 0.0
  %2407 = vmatpush1.msra.mxu0 0.0
  %2408 = vmatprep.mubr.f32.mxu0 0.0
  %2409 = vmatmul.mubr.f32.gmra.mrb[0].mxu0 %v2339
  %v2410 = vpop.f32.mrb[0].mxu0
  %v2411 = vadd.f32 %v2336, %v2410
  %v2412 = vpop.f32.mrb[0].mxu0
  %2413 = vmatprep.mubr.f32.mxu0 0.0
  %2414 = vmatmul.mubr.f32.gmra.mrb[0].mxu0 %v2342
  %v2415 = vpop.f32.mrb[0].mxu0
  %v2416 = vadd.f32 %v2336, %v2415
  %v2417 = vpop.f32.mrb[0].mxu0
  %2418 = vdwg.mxu0
  %v2419 = vadd.f32 %v2411, %v2207
  %v2420 = vadd.f32 %v2416, %v2208
  %s2421 = scalar_lea.vmem %s14, 1
  %v2422 = vld [vmem:[%s2421] sm:$0x1]
  %s2423 = scalar_lea.vmem %s15, 1
  %v2424 = vld [vmem:[%s2423] sm:$0x1]
  %v2425 = vsel %vm63, %v2419, 0.0
  %2426 = vadd.xlane.f32.xlu0 %v2425
  %v2427 = vpop.xlane.xlu0 %2426
  %v2428 = vsel %vm63, %v2420, 0.0
  %2429 = vadd.xlane.f32.xlu0 %v2428
  %v2430 = vpop.xlane.xlu0 %2429
  %v2431 = vmul.f32 %v2427, %v70
  %v2432 = vmul.f32 %v2430, %v70
  %v2433 = vsub.f32 %v2419, %v2431
  %v2434 = vsub.f32 %v2420, %v2432
  %v2435 = vmul.f32 %v2433, %v2433
  %v2436 = vmul.f32 %v2434, %v2434
  %v2437 = vsel %vm63, %v2435, 0.0
  %2438 = vadd.xlane.f32.xlu0 %v2437
  %v2439 = vpop.xlane.xlu0 %2438
  %v2440 = vsel %vm63, %v2436, 0.0
  %2441 = vadd.xlane.f32.xlu0 %v2440
  %v2442 = vpop.xlane.xlu0 %2441
  %v2443 = vmul.f32 %v2439, %v70
  %v2444 = vmul.f32 %v2442, %v70
  %v2445 = vadd.f32 %v2443, 1e-12
  %v2446 = vadd.f32 %v2444, 1e-12
  %v2447 = vrsqrt.pop %v2445
  %v2448 = vrsqrt.pop %v2446
  %v2449 = vmul.f32 %v2433, %v2447
  %v2450 = vmul.f32 %v2434, %v2448
  %v2452 = vlaneseq
  %v2453 = vshrl.u32 %v2452, 7
  %v2454 = vsub.s32 0, %v2453
  %v2455 = vrot.slane %v2422, %v2454
  %v2457 = vmul.f32 %v2449, %v2455
  %v2458 = vmul.f32 %v2450, %v2455
  %v2460 = vlaneseq
  %v2461 = vshrl.u32 %v2460, 7
  %v2462 = vsub.s32 0, %v2461
  %v2463 = vrot.slane %v2424, %v2462
  %v2465 = vadd.f32 %v2457, %v2463
  %v2466 = vadd.f32 %v2458, %v2463
  %v2467 = vld [vmem:[%s16] sm:$0xff]
  %v2468 = vld [vmem:[%s16 + $0x8] sm:$0xff]
  %v2469 = vld [vmem:[%s16 + $0x10] sm:$0xff]
  %v2470 = vld [vmem:[%s16 + $0x18] sm:$0xff]
  %v2471 = vld [vmem:[%s17] sm:$0x1]
  %v2473 = vlaneseq
  %v2474 = vshrl.u32 %v2473, 7
  %v2475 = vsub.s32 0, %v2474
  %v2476 = vrot.slane %v2471, %v2475
  %v2479 = vsel %vm63, %v2465, 0
  %v2482 = vsel %vm63, %v2466, 0
  %2484 = vmatprep.subr.mxu0 0.0
  %2485 = vmatpush1.msra.mxu0 %v2467
  %2486 = vmatprep.subr.mxu0 0.0
  %2487 = vmatpush1.msra.mxu0 %v2468
  %2488 = vmatprep.subr.mxu0 0.0
  %2489 = vmatpush1.msra.mxu0 %v2469
  %2490 = vmatprep.subr.mxu0 0.0
  %2491 = vmatpush1.msra.mxu0 %v2470
  %2492 = vmatprep.subr.mxu0 0.0
  %2493 = vmatpush1.msra.mxu0 0.0
  %2494 = vmatprep.subr.mxu0 0.0
  %2495 = vmatpush1.msra.mxu0 0.0
  %2496 = vmatprep.subr.mxu0 0.0
  %2497 = vmatpush1.msra.mxu0 0.0
  %2498 = vmatprep.subr.mxu0 0.0
  %2499 = vmatpush1.msra.mxu0 0.0
  %2500 = vmatprep.subr.mxu0 0.0
  %2501 = vmatpush1.msra.mxu0 0.0
  %2502 = vmatprep.subr.mxu0 0.0
  %2503 = vmatpush1.msra.mxu0 0.0
  %2504 = vmatprep.subr.mxu0 0.0
  %2505 = vmatpush1.msra.mxu0 0.0
  %2506 = vmatprep.subr.mxu0 0.0
  %2507 = vmatpush1.msra.mxu0 0.0
  %2508 = vmatprep.subr.mxu0 0.0
  %2509 = vmatpush1.msra.mxu0 0.0
  %2510 = vmatprep.subr.mxu0 0.0
  %2511 = vmatpush1.msra.mxu0 0.0
  %2512 = vmatprep.subr.mxu0 0.0
  %2513 = vmatpush1.msra.mxu0 0.0
  %2514 = vmatprep.subr.mxu0 0.0
  %2515 = vmatpush1.msra.mxu0 0.0
  %2516 = vmatprep.subr.mxu0 0.0
  %2517 = vmatpush1.msra.mxu0 0.0
  %2518 = vmatprep.subr.mxu0 0.0
  %2519 = vmatpush1.msra.mxu0 0.0
  %2520 = vmatprep.subr.mxu0 0.0
  %2521 = vmatpush1.msra.mxu0 0.0
  %2522 = vmatprep.subr.mxu0 0.0
  %2523 = vmatpush1.msra.mxu0 0.0
  %2524 = vmatprep.subr.mxu0 0.0
  %2525 = vmatpush1.msra.mxu0 0.0
  %2526 = vmatprep.subr.mxu0 0.0
  %2527 = vmatpush1.msra.mxu0 0.0
  %2528 = vmatprep.subr.mxu0 0.0
  %2529 = vmatpush1.msra.mxu0 0.0
  %2530 = vmatprep.subr.mxu0 0.0
  %2531 = vmatpush1.msra.mxu0 0.0
  %2532 = vmatprep.subr.mxu0 0.0
  %2533 = vmatpush1.msra.mxu0 0.0
  %2534 = vmatprep.subr.mxu0 0.0
  %2535 = vmatpush1.msra.mxu0 0.0
  %2536 = vmatprep.subr.mxu0 0.0
  %2537 = vmatpush1.msra.mxu0 0.0
  %2538 = vmatprep.subr.mxu0 0.0
  %2539 = vmatpush1.msra.mxu0 0.0
  %2540 = vmatprep.subr.mxu0 0.0
  %2541 = vmatpush1.msra.mxu0 0.0
  %2542 = vmatprep.subr.mxu0 0.0
  %2543 = vmatpush1.msra.mxu0 0.0
  %2544 = vmatprep.subr.mxu0 0.0
  %2545 = vmatpush1.msra.mxu0 0.0
  %2546 = vmatprep.subr.mxu0 0.0
  %2547 = vmatpush1.msra.mxu0 0.0
  %2548 = vmatprep.mubr.f32.mxu0 0.0
  %2549 = vmatmul.mubr.f32.gmra.mrb[0].mxu0 %v2479
  %v2550 = vpop.f32.mrb[0].mxu0
  %v2551 = vadd.f32 %v2476, %v2550
  %v2552 = vpop.f32.mrb[0].mxu0
  %2553 = vmatprep.mubr.f32.mxu0 0.0
  %2554 = vmatmul.mubr.f32.gmra.mrb[0].mxu0 %v2482
  %v2555 = vpop.f32.mrb[0].mxu0
  %v2556 = vadd.f32 %v2476, %v2555
  %v2557 = vpop.f32.mrb[0].mxu0
  %2558 = vdwg.mxu0
  %2559 = vst [vmem:[%s18] sm:$0xff] %v2551
  %2560 = vst [vmem:[%s18 + $0x8] sm:$0xff] %v2556
  // Predicated region
  $region74: #{model_bert_forward.1} parent=0 // pred_check
    _
  $region75: #{model_bert_forward.1} parent=0 // pred_check_branch
    %2562 = sbr.rel (0) target = $region77
  $region76: #{model_bert_forward.1} parent=0 // pred_region
    _
  $region77: #{model_bert_forward.1} parent=0 // pred_fallthru
    _
  // Predicated region
  $region78: #{model_bert_forward.1} parent=0 // pred_check
    _
  $region79: #{model_bert_forward.1} parent=0 // pred_check_branch
    %2564 = sbr.rel (0) target = $region81
  $region80: #{model_bert_forward.1} parent=0 // pred_region
    _
  $region81: #{model_bert_forward.1} parent=0 // pred_fallthru
    _

</llo_original>
